<compile_context>
chip_gen: v7x
topology: tpu7x:2x2x1
jax: 0.10.0
libtpu: 0.0.40
codegen_flags: <defaults>
</compile_context>

<pallas_src>
import functools
from collections import namedtuple

import jax
import jax.numpy as jnp
from jax.experimental import pallas as pl
from jax.experimental.pallas import tpu as pltpu

LEAKY_SLOPE = 0.01  # torch.nn.LeakyReLU default negative_slope

BlockMeta = namedtuple("BlockMeta", "c_in c_out dilation pad align has_ds")


def _leaky_relu(x):
    return jnp.where(x >= 0, x, LEAKY_SLOPE * x)


def _weight_norm(v, g):
    """torch.nn.utils.weight_norm with dim=0: w = g * v / ||v||_{(in,k)}."""
    norm = jnp.sqrt(jnp.sum(v * v, axis=(1, 2), keepdims=True))
    return g[:, None, None] * v / norm


def _pick_l_tile(L, cap=2048):
    """Largest lane-dense (multiple of 128) time tile <= cap dividing L."""
    if L <= cap:
        return L
    for t in range(cap - cap % 128, 127, -128):
        if L % t == 0:
            return t
    return cap  # non-divisible fallback: ragged edge tile is masked at the pool


# -------------------- fused CausalCNN + AdaptiveMaxPool1d kernel --------------
def _encoder_kernel(*refs, metas, K, L_tile, L_total):
    """One (batch row, time tile) step.  Layout (C, L): time on lanes.

    refs (in order):
      x_ref  (1, C_in0, L_tile)                        input time tile
      per block i:
        w1_ref (K, C_out, C_in)   tap-major conv1 weight (weight-normed)
        b1_ref (C_out, 1)
        w2_ref (K, C_out, C_out)  tap-major conv2 weight
        b2_ref (C_out, 1)
        [wd_ref (C_out, C_in), bd_ref (C_out, 1)]      iff has_downsample
      o_ref  (1, R, 1)                                 running max (resident in l)
      per block i (scratch):
        xp_i  (C_in,  ALIGN_i + L_tile)   [.. halo | tile] conv1 input staging
        h1p_i (C_out, ALIGN_i + L_tile)   [.. halo | tile] conv2 input staging
    """
    n_blocks = len(metas)

    # ---- unpack refs ---------------------------------------------------------
    idx = 0
    x_ref = refs[idx]
    idx += 1
    block_refs = []
    for m in metas:
        if m.has_ds:
            block_refs.append(tuple(refs[idx:idx + 6]))
            idx += 6
        else:
            block_refs.append(tuple(refs[idx:idx + 4]) + (None, None))
            idx += 4
    o_ref = refs[idx]
    idx += 1
    scratch = refs[idx:]
    assert len(scratch) == 2 * n_blocks

    l = pl.program_id(1)

    h = x_ref[0].astype(jnp.float32)                  # (C_in0, L_tile)

    for bi, (m, (w1_ref, b1_ref, w2_ref, b2_ref, wd_ref, bd_ref)) in enumerate(
            zip(metas, block_refs)):
        xp = scratch[2 * bi]
        h1p = scratch[2 * bi + 1]
        pad, A, d = m.pad, m.align, m.dilation

        # First time tile of each batch row: the causal halo is the left
        # zero-padding of the PyTorch conv (chomp already folded in).
        @pl.when(l == 0)
        def _(xp=xp, h1p=h1p, m=m, pad=pad, A=A):
            xp[:, A - pad:A] = jnp.zeros((m.c_in, pad), jnp.float32)
            h1p[:, A - pad:A] = jnp.zeros((m.c_out, pad), jnp.float32)

        # ---- conv1: K accumulated MXU dots over shifted windows --------------
        xp[:, A:] = h                                  # lane-aligned big store
        acc = jnp.dot(w1_ref[K - 1], h, preferred_element_type=jnp.float32)
        for j in range(K - 1):
            s = A - pad + j * d
            acc = acc + jnp.dot(w1_ref[j], xp[:, s:s + L_tile],
                                preferred_element_type=jnp.float32)
        h1 = _leaky_relu(acc + b1_ref[...])

        # ---- conv2 ------------------------------------------------------------
        h1p[:, A:] = h1
        acc2 = jnp.dot(w2_ref[K - 1], h1, preferred_element_type=jnp.float32)
        for j in range(K - 1):
            s = A - pad + j * d
            acc2 = acc2 + jnp.dot(w2_ref[j], h1p[:, s:s + L_tile],
                                  preferred_element_type=jnp.float32)
        h2 = _leaky_relu(acc2 + b2_ref[...])

        # ---- residual branch (final=False inside CausalCNN) -------------------
        if m.has_ds:
            res = jnp.dot(wd_ref[...], h,
                          preferred_element_type=jnp.float32) + bd_ref[...]
        else:
            res = h
        h_next = h2 + res

        # ---- carry the trailing `pad` columns into the next time tile ---------
        xp[:, A - pad:A] = xp[:, A + L_tile - pad:A + L_tile]
        h1p[:, A - pad:A] = h1p[:, A + L_tile - pad:A + L_tile]

        h = h_next

    # ---- fused AdaptiveMaxPool1d(1): running max over time tiles -------------
    R = h.shape[0]
    lane = jax.lax.broadcasted_iota(jnp.int32, (R, L_tile), 1)
    valid = lane < (L_total - l * L_tile)              # mask ragged edge tile
    masked = jnp.where(valid, h, -jnp.inf)
    tile_max = jnp.max(masked, axis=1, keepdims=True)  # (R, 1)

    @pl.when(l == 0)
    def _():
        o_ref[0] = tile_max

    @pl.when(l != 0)
    def _():
        o_ref[0] = jnp.maximum(o_ref[0], tile_max)


# --------------------------------- encoder ------------------------------------
def causal_cnn_encoder(x, params, *, kernel_size, l_tile=None):
    """CausalCNNEncoder forward.  x: (B, in_channels, L) -> (B, out_channels)."""
    B, C_in0, L = (int(d) for d in x.shape)
    K = int(kernel_size)
    assert K >= 2, "kernel_size must be >= 2 for the causal-halo kernel"

    if l_tile is None:
        l_tile = _pick_l_tile(L)
    l_tile = min(int(l_tile), L)
    nL = pl.cdiv(L, l_tile)

    metas = []
    inputs = [x.astype(jnp.float32)]
    in_specs = [pl.BlockSpec((1, C_in0, l_tile), lambda b, l: (b, 0, l))]
    scratch_shapes = []

    c_prev = C_in0
    for bp in params["blocks"]:
        d = int(bp["dilation"])
        w1 = _weight_norm(bp["v1"], bp["g1"])          # (C_out, C_in, K)
        w2 = _weight_norm(bp["v2"], bp["g2"])          # (C_out, C_out, K)
        c_out, c_in = int(w1.shape[0]), int(w1.shape[1])
        assert c_in == c_prev
        pad = (K - 1) * d
        align = max(128, ((pad + 127) // 128) * 128)   # lane-aligned tile offset
        has_ds = (c_in != c_out)
        metas.append(BlockMeta(c_in, c_out, d, pad, align, has_ds))

        # Tap-major weights: w[j] is the (C_out, C_in) matrix of tap j.
        w1_t = jnp.transpose(w1, (2, 0, 1)).astype(jnp.float32)
        w2_t = jnp.transpose(w2, (2, 0, 1)).astype(jnp.float32)
        b1 = bp["b1"].reshape(c_out, 1).astype(jnp.float32)
        b2 = bp["b2"].reshape(c_out, 1).astype(jnp.float32)
        inputs += [w1_t, b1, w2_t, b2]
        in_specs += [
            pl.BlockSpec((K, c_out, c_in), lambda b, l: (0, 0, 0)),
            pl.BlockSpec((c_out, 1), lambda b, l: (0, 0)),
            pl.BlockSpec((K, c_out, c_out), lambda b, l: (0, 0, 0)),
            pl.BlockSpec((c_out, 1), lambda b, l: (0, 0)),
        ]
        if has_ds:
            wd = bp["wd"][:, :, 0].astype(jnp.float32)  # (C_out, C_in)
            bd = bp["bd"].reshape(c_out, 1).astype(jnp.float32)
            inputs += [wd, bd]
            in_specs += [pl.BlockSpec((c_out, c_in), lambda b, l: (0, 0)),
                         pl.BlockSpec((c_out, 1), lambda b, l: (0, 0))]

        scratch_shapes += [
            pltpu.VMEM((c_in, align + l_tile), jnp.float32),   # conv1 staging
            pltpu.VMEM((c_out, align + l_tile), jnp.float32),  # conv2 staging
        ]
        c_prev = c_out

    R = c_prev  # reduced_size

    kernel = functools.partial(_encoder_kernel, metas=tuple(metas), K=K,
                               L_tile=l_tile, L_total=L)

    # ---- cost / VMEM bookkeeping ---------------------------------------------
    flops = 0
    bytes_accessed = 4 * (B * C_in0 * L + B * R)
    per_step_f32 = 2 * C_in0 * l_tile + 2 * R          # dbl-buffered x tile + out
    for m in metas:
        flops += 2 * B * L * K * m.c_out * (m.c_in + m.c_out)
        bytes_accessed += 4 * (K * m.c_out * (m.c_in + m.c_out) + 2 * m.c_out)
        per_step_f32 += (m.c_in + m.c_out) * (m.align + l_tile)      # staging
        per_step_f32 += K * m.c_out * (m.c_in + m.c_out) + 2 * m.c_out
        per_step_f32 += 3 * m.c_out * l_tile                          # live vals
        if m.has_ds:
            flops += 2 * B * L * m.c_in * m.c_out
            bytes_accessed += 4 * (m.c_out * m.c_in + m.c_out)
            per_step_f32 += m.c_out * (m.c_in + 1)
    # Cap well below v7x's 64 MiB per-TC VMEM; v5e/v6e (128 MiB) unaffected.
    vmem_limit = int(min(max(4 * 4 * per_step_f32, 8 << 20), 48 << 20))

    pooled = pl.pallas_call(
        kernel,
        out_shape=jax.ShapeDtypeStruct((B, R, 1), jnp.float32),
        grid=(B, nL),
        in_specs=in_specs,
        out_specs=pl.BlockSpec((1, R, 1), lambda b, l: (b, 0, 0)),
        scratch_shapes=scratch_shapes,
        compiler_params=pltpu.CompilerParams(
            dimension_semantics=("parallel", "arbitrary"),
            vmem_limit_bytes=vmem_limit),
        cost_estimate=pl.CostEstimate(flops=int(flops), transcendentals=0,
                                      bytes_accessed=int(bytes_accessed)),
    )(*inputs)

    # Tiny (B, R) x (R, O) Linear head: plain XLA matmul is the right tool.
    pooled = pooled.reshape(B, R)
    return (jnp.dot(pooled, params["linear_w"].T.astype(jnp.float32),
                    precision=jax.lax.Precision.HIGHEST)
            + params["linear_b"][None, :].astype(jnp.float32))


# ----------------------- pure-JAX reference for checking ----------------------
def _reference_block(x, p, *, kernel_size, dilation):
    pad = (kernel_size - 1) * dilation
    w1 = _weight_norm(p["v1"], p["g1"])
    w2 = _weight_norm(p["v2"], p["g2"])
    C_in = x.shape[1]
    C_out = w1.shape[0]
    dn = ("NCH", "OIH", "NCH")
    prec = jax.lax.Precision.HIGHEST

    def conv(h, w, b, dil, padl):
        y = jax.lax.conv_general_dilated(
            h, w, window_strides=(1,), padding=[(padl, 0)],
            rhs_dilation=(dil,), dimension_numbers=dn, precision=prec)
        return y + b[None, :, None]

    h = _leaky_relu(conv(x, w1, p["b1"], dilation, pad))
    h = _leaky_relu(conv(h, w2, p["b2"], dilation, pad))
    res = conv(x, p["wd"], p["bd"], 1, 0) if C_in != C_out else x
    return h + res          # final=False inside CausalCNN


def _reference_encoder(x, params, *, kernel_size):
    h = x
    for bp in params["blocks"]:
        h = _reference_block(h, bp, kernel_size=kernel_size,
                             dilation=bp["dilation"])
    pooled = jnp.max(h, axis=2)                                # (B, R)
    return (jnp.dot(pooled, params["linear_w"].T,
                    precision=jax.lax.Precision.HIGHEST)
            + params["linear_b"][None, :])


if __name__ == "__main__":
    # Small deterministic config: CausalCNNEncoder(4, 8, 2, 16, 32, 3), L=256.
    B, L = 2, 256
    in_channels, channels, depth, reduced_size, out_channels = 4, 8, 2, 16, 32
    kernel_size = 3
    l_tile = 128        # 2 time tiles per batch row -> exercises the halo carry

    key = jax.random.PRNGKey(0)

    # Block topology of CausalCNN: depth blocks (dilation 2^i) + one final block.
    block_io = []
    c_prev = in_channels
    for i in range(depth):
        block_io.append((c_prev, channels, 2 ** i))
        c_prev = channels
    block_io.append((channels, reduced_size, 2 ** depth))

    blocks = []
    for cin, cout, dil in block_io:
        key, *ks = jax.random.split(key, 7)
        v1 = jax.random.normal(ks[0], (cout, cin, kernel_size), jnp.float32) * 0.3
        v2 = jax.random.normal(ks[1], (cout, cout, kernel_size), jnp.float32) * 0.3
        bp = {
            "dilation": dil,
            "v1": v1, "g1": jnp.sqrt(jnp.sum(v1 * v1, axis=(1, 2))),  # torch init g=||v||
            "b1": jax.random.normal(ks[2], (cout,), jnp.float32) * 0.1,
            "v2": v2, "g2": jnp.sqrt(jnp.sum(v2 * v2, axis=(1, 2))),
            "b2": jax.random.normal(ks[3], (cout,), jnp.float32) * 0.1,
        }
        if cin != cout:
            bp["wd"] = jax.random.normal(ks[4], (cout, cin, 1), jnp.float32) * 0.3
            bp["bd"] = jax.random.normal(ks[5], (cout,), jnp.float32) * 0.1
        blocks.append(bp)

    key, k_w, k_b, k_x = jax.random.split(key, 4)
    params = {
        "blocks": blocks,
        "linear_w": jax.random.normal(k_w, (out_channels, reduced_size),
                                      jnp.float32) * 0.2,
        "linear_b": jax.random.normal(k_b, (out_channels,), jnp.float32) * 0.1,
    }
    x = jax.random.normal(k_x, (B, in_channels, L), jnp.float32)

    out = causal_cnn_encoder(x, params, kernel_size=kernel_size, l_tile=l_tile)
    out = jax.block_until_ready(out)

    ref = _reference_encoder(x, params, kernel_size=kernel_size)
    assert out.shape == (B, out_channels)
    max_err = float(jnp.max(jnp.abs(out - ref)))
    assert jnp.allclose(out, ref, atol=2e-3, rtol=2e-3), (
        f"mismatch vs reference (max abs err {max_err})")

    print("KERNEL_OK")
</pallas_src>

<mosaic_0001>
module attributes {stable_mosaic.version = 11 : i64} {
  func.func @_encoder_kernel(%arg0: i32, %arg1: i32, %arg2: memref<1x4x128xf32, #tpu.memory_space<vmem>>, %arg3: memref<3x8x4xf32, #tpu.memory_space<vmem>>, %arg4: memref<8x1xf32, #tpu.memory_space<vmem>>, %arg5: memref<3x8x8xf32, #tpu.memory_space<vmem>>, %arg6: memref<8x1xf32, #tpu.memory_space<vmem>>, %arg7: memref<8x4xf32, #tpu.memory_space<vmem>>, %arg8: memref<8x1xf32, #tpu.memory_space<vmem>>, %arg9: memref<3x8x8xf32, #tpu.memory_space<vmem>>, %arg10: memref<8x1xf32, #tpu.memory_space<vmem>>, %arg11: memref<3x8x8xf32, #tpu.memory_space<vmem>>, %arg12: memref<8x1xf32, #tpu.memory_space<vmem>>, %arg13: memref<3x16x8xf32, #tpu.memory_space<vmem>>, %arg14: memref<16x1xf32, #tpu.memory_space<vmem>>, %arg15: memref<3x16x16xf32, #tpu.memory_space<vmem>>, %arg16: memref<16x1xf32, #tpu.memory_space<vmem>>, %arg17: memref<16x8xf32, #tpu.memory_space<vmem>>, %arg18: memref<16x1xf32, #tpu.memory_space<vmem>>, %arg19: memref<1x16x1xf32, #tpu.memory_space<vmem>>, %arg20: memref<4x256xf32, #tpu.memory_space<vmem>>, %arg21: memref<8x256xf32, #tpu.memory_space<vmem>>, %arg22: memref<8x256xf32, #tpu.memory_space<vmem>>, %arg23: memref<8x256xf32, #tpu.memory_space<vmem>>, %arg24: memref<8x256xf32, #tpu.memory_space<vmem>>, %arg25: memref<16x256xf32, #tpu.memory_space<vmem>>) attributes {dimension_semantics = [#tpu.dimension_semantics<parallel>, #tpu.dimension_semantics<arbitrary>], iteration_bounds = array<i64: 2, 2>, scalar_prefetch = 0 : i64, scratch_operands = 6 : i64, tpu.core_type = #tpu.core_type<tc>, window_params = [{transform_indices = @transform_0, window_bounds = array<i64: 1, 4, 128>}, {pipeline_mode = #tpu.pipeline_mode<synchronous>, transform_indices = @transform_1, window_bounds = array<i64: 3, 8, 4>}, {pipeline_mode = #tpu.pipeline_mode<synchronous>, transform_indices = @transform_2, window_bounds = array<i64: 8, 1>}, {pipeline_mode = #tpu.pipeline_mode<synchronous>, transform_indices = @transform_3, window_bounds = array<i64: 3, 8, 8>}, {pipeline_mode = #tpu.pipeline_mode<synchronous>, transform_indices = @transform_4, window_bounds = array<i64: 8, 1>}, {pipeline_mode = #tpu.pipeline_mode<synchronous>, transform_indices = @transform_5, window_bounds = array<i64: 8, 4>}, {pipeline_mode = #tpu.pipeline_mode<synchronous>, transform_indices = @transform_6, window_bounds = array<i64: 8, 1>}, {pipeline_mode = #tpu.pipeline_mode<synchronous>, transform_indices = @transform_7, window_bounds = array<i64: 3, 8, 8>}, {pipeline_mode = #tpu.pipeline_mode<synchronous>, transform_indices = @transform_8, window_bounds = array<i64: 8, 1>}, {pipeline_mode = #tpu.pipeline_mode<synchronous>, transform_indices = @transform_9, window_bounds = array<i64: 3, 8, 8>}, {pipeline_mode = #tpu.pipeline_mode<synchronous>, transform_indices = @transform_10, window_bounds = array<i64: 8, 1>}, {pipeline_mode = #tpu.pipeline_mode<synchronous>, transform_indices = @transform_11, window_bounds = array<i64: 3, 16, 8>}, {pipeline_mode = #tpu.pipeline_mode<synchronous>, transform_indices = @transform_12, window_bounds = array<i64: 16, 1>}, {pipeline_mode = #tpu.pipeline_mode<synchronous>, transform_indices = @transform_13, window_bounds = array<i64: 3, 16, 16>}, {pipeline_mode = #tpu.pipeline_mode<synchronous>, transform_indices = @transform_14, window_bounds = array<i64: 16, 1>}, {pipeline_mode = #tpu.pipeline_mode<synchronous>, transform_indices = @transform_15, window_bounds = array<i64: 16, 8>}, {pipeline_mode = #tpu.pipeline_mode<synchronous>, transform_indices = @transform_16, window_bounds = array<i64: 16, 1>}, {transform_indices = @transform_17, window_bounds = array<i64: 1, 16, 1>}]} {
    %c0 = arith.constant 0 : index
    %c0_0 = arith.constant 0 : index
    %c0_1 = arith.constant 0 : index
    %0 = vector.load %arg2[%c0, %c0_0, %c0_1] : memref<1x4x128xf32, #tpu.memory_space<vmem>>, vector<1x4x128xf32>
    %1 = vector.shape_cast %0 : vector<1x4x128xf32> to vector<4x128xf32>
    %c0_i32 = arith.constant 0 : i32
    %2 = arith.cmpi eq, %arg1, %c0_i32 : i32
    %3 = arith.extui %2 : i1 to i32
    %c0_i32_2 = arith.constant 0 : i32
    %4 = arith.cmpi ne, %3, %c0_i32_2 : i32
    scf.if %4 {
      %cst_168 = arith.constant 0.000000e+00 : f32
      %183 = vector.broadcast %cst_168 : f32 to vector<4x2xf32>
      %c0_169 = arith.constant 0 : index
      %c126_170 = arith.constant 126 : index
      %184 = vector.load %arg20[%c0_169, %c126_170] : memref<4x256xf32, #tpu.memory_space<vmem>>, vector<4x2xf32>
      tpu.vector_store %arg20[%c0_169, %c126_170], %183 {strides = array<i32>} : memref<4x256xf32, #tpu.memory_space<vmem>>, vector<4x2xf32>,
      %cst_171 = arith.constant 0.000000e+00 : f32
      %185 = vector.broadcast %cst_171 : f32 to vector<8x2xf32>
      %c0_172 = arith.constant 0 : index
      %c126_173 = arith.constant 126 : index
      %186 = vector.load %arg21[%c0_172, %c126_173] : memref<8x256xf32, #tpu.memory_space<vmem>>, vector<8x2xf32>
      tpu.vector_store %arg21[%c0_172, %c126_173], %185 {strides = array<i32>} : memref<8x256xf32, #tpu.memory_space<vmem>>, vector<8x2xf32>,
    } else {
    }
    %c0_3 = arith.constant 0 : index
    %c128 = arith.constant 128 : index
    %5 = vector.load %arg20[%c0_3, %c128] : memref<4x256xf32, #tpu.memory_space<vmem>>, vector<4x128xf32>
    tpu.vector_store %arg20[%c0_3, %c128], %1 {strides = array<i32>} : memref<4x256xf32, #tpu.memory_space<vmem>>, vector<4x128xf32>,
    %c2 = arith.constant 2 : index
    %c0_4 = arith.constant 0 : index
    %c0_5 = arith.constant 0 : index
    %6 = vector.load %arg3[%c2, %c0_4, %c0_5] : memref<3x8x4xf32, #tpu.memory_space<vmem>>, vector<1x8x4xf32>
    %7 = vector.shape_cast %6 : vector<1x8x4xf32> to vector<8x4xf32>
    %cst = arith.constant dense<0.000000e+00> : vector<8x128xf32>
    %8 = tpu.matmul %7, %1, %cst {dimension_numbers = #tpu.dot_dimension_numbers<[1], [0], [0], [1], [0, 0, 1, 1], [], []>} : vector<8x4xf32>, vector<4x128xf32>, vector<8x128xf32> -> vector<8x128xf32>
    %c0_6 = arith.constant 0 : index
    %c0_7 = arith.constant 0 : index
    %c0_8 = arith.constant 0 : index
    %9 = vector.load %arg3[%c0_6, %c0_7, %c0_8] : memref<3x8x4xf32, #tpu.memory_space<vmem>>, vector<1x8x4xf32>
    %10 = vector.shape_cast %9 : vector<1x8x4xf32> to vector<8x4xf32>
    %c0_9 = arith.constant 0 : index
    %c126 = arith.constant 126 : index
    %11 = vector.load %arg20[%c0_9, %c126] : memref<4x256xf32, #tpu.memory_space<vmem>>, vector<4x128xf32>
    %cst_10 = arith.constant dense<0.000000e+00> : vector<8x128xf32>
    %12 = tpu.matmul %10, %11, %cst_10 {dimension_numbers = #tpu.dot_dimension_numbers<[1], [0], [0], [1], [0, 0, 1, 1], [], []>} : vector<8x4xf32>, vector<4x128xf32>, vector<8x128xf32> -> vector<8x128xf32>
    %13 = arith.addf %8, %12 : vector<8x128xf32>
    %c1 = arith.constant 1 : index
    %c0_11 = arith.constant 0 : index
    %c0_12 = arith.constant 0 : index
    %14 = vector.load %arg3[%c1, %c0_11, %c0_12] : memref<3x8x4xf32, #tpu.memory_space<vmem>>, vector<1x8x4xf32>
    %15 = vector.shape_cast %14 : vector<1x8x4xf32> to vector<8x4xf32>
    %c0_13 = arith.constant 0 : index
    %c127 = arith.constant 127 : index
    %16 = vector.load %arg20[%c0_13, %c127] : memref<4x256xf32, #tpu.memory_space<vmem>>, vector<4x128xf32>
    %cst_14 = arith.constant dense<0.000000e+00> : vector<8x128xf32>
    %17 = tpu.matmul %15, %16, %cst_14 {dimension_numbers = #tpu.dot_dimension_numbers<[1], [0], [0], [1], [0, 0, 1, 1], [], []>} : vector<8x4xf32>, vector<4x128xf32>, vector<8x128xf32> -> vector<8x128xf32>
    %18 = arith.addf %13, %17 : vector<8x128xf32>
    %c0_15 = arith.constant 0 : index
    %c0_16 = arith.constant 0 : index
    %19 = vector.load %arg4[%c0_15, %c0_16] : memref<8x1xf32, #tpu.memory_space<vmem>>, vector<8x1xf32>
    %20 = vector.broadcast %19 : vector<8x1xf32> to vector<8x128xf32>
    %21 = arith.addf %18, %20 : vector<8x128xf32>
    %cst_17 = arith.constant 0.000000e+00 : f32
    %22 = vector.broadcast %cst_17 : f32 to vector<8x128xf32>
    %23 = arith.cmpf oge, %21, %22 : vector<8x128xf32>
    %cst_18 = arith.constant 0.00999999977 : f32
    %24 = vector.broadcast %cst_18 : f32 to vector<8x128xf32>
    %25 = arith.mulf %24, %21 : vector<8x128xf32>
    %26 = arith.select %23, %21, %25 : vector<8x128xi1>, vector<8x128xf32>
    %c0_19 = arith.constant 0 : index
    %c128_20 = arith.constant 128 : index
    %27 = vector.load %arg21[%c0_19, %c128_20] : memref<8x256xf32, #tpu.memory_space<vmem>>, vector<8x128xf32>
    tpu.vector_store %arg21[%c0_19, %c128_20], %26 {strides = array<i32>} : memref<8x256xf32, #tpu.memory_space<vmem>>, vector<8x128xf32>,
    %c2_21 = arith.constant 2 : index
    %c0_22 = arith.constant 0 : index
    %c0_23 = arith.constant 0 : index
    %28 = vector.load %arg5[%c2_21, %c0_22, %c0_23] : memref<3x8x8xf32, #tpu.memory_space<vmem>>, vector<1x8x8xf32>
    %29 = vector.shape_cast %28 : vector<1x8x8xf32> to vector<8x8xf32>
    %cst_24 = arith.constant dense<0.000000e+00> : vector<8x128xf32>
    %30 = tpu.matmul %29, %26, %cst_24 {dimension_numbers = #tpu.dot_dimension_numbers<[1], [0], [0], [1], [0, 0, 1, 1], [], []>} : vector<8x8xf32>, vector<8x128xf32>, vector<8x128xf32> -> vector<8x128xf32>
    %c0_25 = arith.constant 0 : index
    %c0_26 = arith.constant 0 : index
    %c0_27 = arith.constant 0 : index
    %31 = vector.load %arg5[%c0_25, %c0_26, %c0_27] : memref<3x8x8xf32, #tpu.memory_space<vmem>>, vector<1x8x8xf32>
    %32 = vector.shape_cast %31 : vector<1x8x8xf32> to vector<8x8xf32>
    %c0_28 = arith.constant 0 : index
    %c126_29 = arith.constant 126 : index
    %33 = vector.load %arg21[%c0_28, %c126_29] : memref<8x256xf32, #tpu.memory_space<vmem>>, vector<8x128xf32>
    %cst_30 = arith.constant dense<0.000000e+00> : vector<8x128xf32>
    %34 = tpu.matmul %32, %33, %cst_30 {dimension_numbers = #tpu.dot_dimension_numbers<[1], [0], [0], [1], [0, 0, 1, 1], [], []>} : vector<8x8xf32>, vector<8x128xf32>, vector<8x128xf32> -> vector<8x128xf32>
    %35 = arith.addf %30, %34 : vector<8x128xf32>
    %c1_31 = arith.constant 1 : index
    %c0_32 = arith.constant 0 : index
    %c0_33 = arith.constant 0 : index
    %36 = vector.load %arg5[%c1_31, %c0_32, %c0_33] : memref<3x8x8xf32, #tpu.memory_space<vmem>>, vector<1x8x8xf32>
    %37 = vector.shape_cast %36 : vector<1x8x8xf32> to vector<8x8xf32>
    %c0_34 = arith.constant 0 : index
    %c127_35 = arith.constant 127 : index
    %38 = vector.load %arg21[%c0_34, %c127_35] : memref<8x256xf32, #tpu.memory_space<vmem>>, vector<8x128xf32>
    %cst_36 = arith.constant dense<0.000000e+00> : vector<8x128xf32>
    %39 = tpu.matmul %37, %38, %cst_36 {dimension_numbers = #tpu.dot_dimension_numbers<[1], [0], [0], [1], [0, 0, 1, 1], [], []>} : vector<8x8xf32>, vector<8x128xf32>, vector<8x128xf32> -> vector<8x128xf32>
    %40 = arith.addf %35, %39 : vector<8x128xf32>
    %c0_37 = arith.constant 0 : index
    %c0_38 = arith.constant 0 : index
    %41 = vector.load %arg6[%c0_37, %c0_38] : memref<8x1xf32, #tpu.memory_space<vmem>>, vector<8x1xf32>
    %42 = vector.broadcast %41 : vector<8x1xf32> to vector<8x128xf32>
    %43 = arith.addf %40, %42 : vector<8x128xf32>
    %cst_39 = arith.constant 0.000000e+00 : f32
    %44 = vector.broadcast %cst_39 : f32 to vector<8x128xf32>
    %45 = arith.cmpf oge, %43, %44 : vector<8x128xf32>
    %cst_40 = arith.constant 0.00999999977 : f32
    %46 = vector.broadcast %cst_40 : f32 to vector<8x128xf32>
    %47 = arith.mulf %46, %43 : vector<8x128xf32>
    %48 = arith.select %45, %43, %47 : vector<8x128xi1>, vector<8x128xf32>
    %c0_41 = arith.constant 0 : index
    %c0_42 = arith.constant 0 : index
    %49 = vector.load %arg7[%c0_41, %c0_42] : memref<8x4xf32, #tpu.memory_space<vmem>>, vector<8x4xf32>
    %cst_43 = arith.constant dense<0.000000e+00> : vector<8x128xf32>
    %50 = tpu.matmul %49, %1, %cst_43 {dimension_numbers = #tpu.dot_dimension_numbers<[1], [0], [0], [1], [0, 0, 1, 1], [], []>} : vector<8x4xf32>, vector<4x128xf32>, vector<8x128xf32> -> vector<8x128xf32>
    %c0_44 = arith.constant 0 : index
    %c0_45 = arith.constant 0 : index
    %51 = vector.load %arg8[%c0_44, %c0_45] : memref<8x1xf32, #tpu.memory_space<vmem>>, vector<8x1xf32>
    %52 = vector.broadcast %51 : vector<8x1xf32> to vector<8x128xf32>
    %53 = arith.addf %50, %52 : vector<8x128xf32>
    %54 = arith.addf %48, %53 : vector<8x128xf32>
    %c0_46 = arith.constant 0 : index
    %c254 = arith.constant 254 : index
    %55 = vector.load %arg20[%c0_46, %c254] : memref<4x256xf32, #tpu.memory_space<vmem>>, vector<4x2xf32>
    %c0_47 = arith.constant 0 : index
    %c126_48 = arith.constant 126 : index
    %56 = vector.load %arg20[%c0_47, %c126_48] : memref<4x256xf32, #tpu.memory_space<vmem>>, vector<4x2xf32>
    tpu.vector_store %arg20[%c0_47, %c126_48], %55 {strides = array<i32>} : memref<4x256xf32, #tpu.memory_space<vmem>>, vector<4x2xf32>,
    %c0_49 = arith.constant 0 : index
    %c254_50 = arith.constant 254 : index
    %57 = vector.load %arg21[%c0_49, %c254_50] : memref<8x256xf32, #tpu.memory_space<vmem>>, vector<8x2xf32>
    %c0_51 = arith.constant 0 : index
    %c126_52 = arith.constant 126 : index
    %58 = vector.load %arg21[%c0_51, %c126_52] : memref<8x256xf32, #tpu.memory_space<vmem>>, vector<8x2xf32>
    tpu.vector_store %arg21[%c0_51, %c126_52], %57 {strides = array<i32>} : memref<8x256xf32, #tpu.memory_space<vmem>>, vector<8x2xf32>,
    %c0_i32_53 = arith.constant 0 : i32
    %59 = arith.cmpi eq, %arg1, %c0_i32_53 : i32
    %60 = arith.extui %59 : i1 to i32
    %c0_i32_54 = arith.constant 0 : i32
    %61 = arith.cmpi ne, %60, %c0_i32_54 : i32
    scf.if %61 {
      %cst_168 = arith.constant 0.000000e+00 : f32
      %183 = vector.broadcast %cst_168 : f32 to vector<8x4xf32>
      %c0_169 = arith.constant 0 : index
      %c124_170 = arith.constant 124 : index
      %184 = vector.load %arg22[%c0_169, %c124_170] : memref<8x256xf32, #tpu.memory_space<vmem>>, vector<8x4xf32>
      tpu.vector_store %arg22[%c0_169, %c124_170], %183 {strides = array<i32>} : memref<8x256xf32, #tpu.memory_space<vmem>>, vector<8x4xf32>,
      %cst_171 = arith.constant 0.000000e+00 : f32
      %185 = vector.broadcast %cst_171 : f32 to vector<8x4xf32>
      %c0_172 = arith.constant 0 : index
      %c124_173 = arith.constant 124 : index
      %186 = vector.load %arg23[%c0_172, %c124_173] : memref<8x256xf32, #tpu.memory_space<vmem>>, vector<8x4xf32>
      tpu.vector_store %arg23[%c0_172, %c124_173], %185 {strides = array<i32>} : memref<8x256xf32, #tpu.memory_space<vmem>>, vector<8x4xf32>,
    } else {
    }
    %c0_55 = arith.constant 0 : index
    %c128_56 = arith.constant 128 : index
    %62 = vector.load %arg22[%c0_55, %c128_56] : memref<8x256xf32, #tpu.memory_space<vmem>>, vector<8x128xf32>
    tpu.vector_store %arg22[%c0_55, %c128_56], %54 {strides = array<i32>} : memref<8x256xf32, #tpu.memory_space<vmem>>, vector<8x128xf32>,
    %c2_57 = arith.constant 2 : index
    %c0_58 = arith.constant 0 : index
    %c0_59 = arith.constant 0 : index
    %63 = vector.load %arg9[%c2_57, %c0_58, %c0_59] : memref<3x8x8xf32, #tpu.memory_space<vmem>>, vector<1x8x8xf32>
    %64 = vector.shape_cast %63 : vector<1x8x8xf32> to vector<8x8xf32>
    %cst_60 = arith.constant dense<0.000000e+00> : vector<8x128xf32>
    %65 = tpu.matmul %64, %54, %cst_60 {dimension_numbers = #tpu.dot_dimension_numbers<[1], [0], [0], [1], [0, 0, 1, 1], [], []>} : vector<8x8xf32>, vector<8x128xf32>, vector<8x128xf32> -> vector<8x128xf32>
    %c0_61 = arith.constant 0 : index
    %c0_62 = arith.constant 0 : index
    %c0_63 = arith.constant 0 : index
    %66 = vector.load %arg9[%c0_61, %c0_62, %c0_63] : memref<3x8x8xf32, #tpu.memory_space<vmem>>, vector<1x8x8xf32>
    %67 = vector.shape_cast %66 : vector<1x8x8xf32> to vector<8x8xf32>
    %c0_64 = arith.constant 0 : index
    %c124 = arith.constant 124 : index
    %68 = vector.load %arg22[%c0_64, %c124] : memref<8x256xf32, #tpu.memory_space<vmem>>, vector<8x128xf32>
    %cst_65 = arith.constant dense<0.000000e+00> : vector<8x128xf32>
    %69 = tpu.matmul %67, %68, %cst_65 {dimension_numbers = #tpu.dot_dimension_numbers<[1], [0], [0], [1], [0, 0, 1, 1], [], []>} : vector<8x8xf32>, vector<8x128xf32>, vector<8x128xf32> -> vector<8x128xf32>
    %70 = arith.addf %65, %69 : vector<8x128xf32>
    %c1_66 = arith.constant 1 : index
    %c0_67 = arith.constant 0 : index
    %c0_68 = arith.constant 0 : index
    %71 = vector.load %arg9[%c1_66, %c0_67, %c0_68] : memref<3x8x8xf32, #tpu.memory_space<vmem>>, vector<1x8x8xf32>
    %72 = vector.shape_cast %71 : vector<1x8x8xf32> to vector<8x8xf32>
    %c0_69 = arith.constant 0 : index
    %c126_70 = arith.constant 126 : index
    %73 = vector.load %arg22[%c0_69, %c126_70] : memref<8x256xf32, #tpu.memory_space<vmem>>, vector<8x128xf32>
    %cst_71 = arith.constant dense<0.000000e+00> : vector<8x128xf32>
    %74 = tpu.matmul %72, %73, %cst_71 {dimension_numbers = #tpu.dot_dimension_numbers<[1], [0], [0], [1], [0, 0, 1, 1], [], []>} : vector<8x8xf32>, vector<8x128xf32>, vector<8x128xf32> -> vector<8x128xf32>
    %75 = arith.addf %70, %74 : vector<8x128xf32>
    %c0_72 = arith.constant 0 : index
    %c0_73 = arith.constant 0 : index
    %76 = vector.load %arg10[%c0_72, %c0_73] : memref<8x1xf32, #tpu.memory_space<vmem>>, vector<8x1xf32>
    %77 = vector.broadcast %76 : vector<8x1xf32> to vector<8x128xf32>
    %78 = arith.addf %75, %77 : vector<8x128xf32>
    %cst_74 = arith.constant 0.000000e+00 : f32
    %79 = vector.broadcast %cst_74 : f32 to vector<8x128xf32>
    %80 = arith.cmpf oge, %78, %79 : vector<8x128xf32>
    %cst_75 = arith.constant 0.00999999977 : f32
    %81 = vector.broadcast %cst_75 : f32 to vector<8x128xf32>
    %82 = arith.mulf %81, %78 : vector<8x128xf32>
    %83 = arith.select %80, %78, %82 : vector<8x128xi1>, vector<8x128xf32>
    %c0_76 = arith.constant 0 : index
    %c128_77 = arith.constant 128 : index
    %84 = vector.load %arg23[%c0_76, %c128_77] : memref<8x256xf32, #tpu.memory_space<vmem>>, vector<8x128xf32>
    tpu.vector_store %arg23[%c0_76, %c128_77], %83 {strides = array<i32>} : memref<8x256xf32, #tpu.memory_space<vmem>>, vector<8x128xf32>,
    %c2_78 = arith.constant 2 : index
    %c0_79 = arith.constant 0 : index
    %c0_80 = arith.constant 0 : index
    %85 = vector.load %arg11[%c2_78, %c0_79, %c0_80] : memref<3x8x8xf32, #tpu.memory_space<vmem>>, vector<1x8x8xf32>
    %86 = vector.shape_cast %85 : vector<1x8x8xf32> to vector<8x8xf32>
    %cst_81 = arith.constant dense<0.000000e+00> : vector<8x128xf32>
    %87 = tpu.matmul %86, %83, %cst_81 {dimension_numbers = #tpu.dot_dimension_numbers<[1], [0], [0], [1], [0, 0, 1, 1], [], []>} : vector<8x8xf32>, vector<8x128xf32>, vector<8x128xf32> -> vector<8x128xf32>
    %c0_82 = arith.constant 0 : index
    %c0_83 = arith.constant 0 : index
    %c0_84 = arith.constant 0 : index
    %88 = vector.load %arg11[%c0_82, %c0_83, %c0_84] : memref<3x8x8xf32, #tpu.memory_space<vmem>>, vector<1x8x8xf32>
    %89 = vector.shape_cast %88 : vector<1x8x8xf32> to vector<8x8xf32>
    %c0_85 = arith.constant 0 : index
    %c124_86 = arith.constant 124 : index
    %90 = vector.load %arg23[%c0_85, %c124_86] : memref<8x256xf32, #tpu.memory_space<vmem>>, vector<8x128xf32>
    %cst_87 = arith.constant dense<0.000000e+00> : vector<8x128xf32>
    %91 = tpu.matmul %89, %90, %cst_87 {dimension_numbers = #tpu.dot_dimension_numbers<[1], [0], [0], [1], [0, 0, 1, 1], [], []>} : vector<8x8xf32>, vector<8x128xf32>, vector<8x128xf32> -> vector<8x128xf32>
    %92 = arith.addf %87, %91 : vector<8x128xf32>
    %c1_88 = arith.constant 1 : index
    %c0_89 = arith.constant 0 : index
    %c0_90 = arith.constant 0 : index
    %93 = vector.load %arg11[%c1_88, %c0_89, %c0_90] : memref<3x8x8xf32, #tpu.memory_space<vmem>>, vector<1x8x8xf32>
    %94 = vector.shape_cast %93 : vector<1x8x8xf32> to vector<8x8xf32>
    %c0_91 = arith.constant 0 : index
    %c126_92 = arith.constant 126 : index
    %95 = vector.load %arg23[%c0_91, %c126_92] : memref<8x256xf32, #tpu.memory_space<vmem>>, vector<8x128xf32>
    %cst_93 = arith.constant dense<0.000000e+00> : vector<8x128xf32>
    %96 = tpu.matmul %94, %95, %cst_93 {dimension_numbers = #tpu.dot_dimension_numbers<[1], [0], [0], [1], [0, 0, 1, 1], [], []>} : vector<8x8xf32>, vector<8x128xf32>, vector<8x128xf32> -> vector<8x128xf32>
    %97 = arith.addf %92, %96 : vector<8x128xf32>
    %c0_94 = arith.constant 0 : index
    %c0_95 = arith.constant 0 : index
    %98 = vector.load %arg12[%c0_94, %c0_95] : memref<8x1xf32, #tpu.memory_space<vmem>>, vector<8x1xf32>
    %99 = vector.broadcast %98 : vector<8x1xf32> to vector<8x128xf32>
    %100 = arith.addf %97, %99 : vector<8x128xf32>
    %cst_96 = arith.constant 0.000000e+00 : f32
    %101 = vector.broadcast %cst_96 : f32 to vector<8x128xf32>
    %102 = arith.cmpf oge, %100, %101 : vector<8x128xf32>
    %cst_97 = arith.constant 0.00999999977 : f32
    %103 = vector.broadcast %cst_97 : f32 to vector<8x128xf32>
    %104 = arith.mulf %103, %100 : vector<8x128xf32>
    %105 = arith.select %102, %100, %104 : vector<8x128xi1>, vector<8x128xf32>
    %106 = arith.addf %105, %54 : vector<8x128xf32>
    %c0_98 = arith.constant 0 : index
    %c252 = arith.constant 252 : index
    %107 = vector.load %arg22[%c0_98, %c252] : memref<8x256xf32, #tpu.memory_space<vmem>>, vector<8x4xf32>
    %c0_99 = arith.constant 0 : index
    %c124_100 = arith.constant 124 : index
    %108 = vector.load %arg22[%c0_99, %c124_100] : memref<8x256xf32, #tpu.memory_space<vmem>>, vector<8x4xf32>
    tpu.vector_store %arg22[%c0_99, %c124_100], %107 {strides = array<i32>} : memref<8x256xf32, #tpu.memory_space<vmem>>, vector<8x4xf32>,
    %c0_101 = arith.constant 0 : index
    %c252_102 = arith.constant 252 : index
    %109 = vector.load %arg23[%c0_101, %c252_102] : memref<8x256xf32, #tpu.memory_space<vmem>>, vector<8x4xf32>
    %c0_103 = arith.constant 0 : index
    %c124_104 = arith.constant 124 : index
    %110 = vector.load %arg23[%c0_103, %c124_104] : memref<8x256xf32, #tpu.memory_space<vmem>>, vector<8x4xf32>
    tpu.vector_store %arg23[%c0_103, %c124_104], %109 {strides = array<i32>} : memref<8x256xf32, #tpu.memory_space<vmem>>, vector<8x4xf32>,
    %c0_i32_105 = arith.constant 0 : i32
    %111 = arith.cmpi eq, %arg1, %c0_i32_105 : i32
    %112 = arith.extui %111 : i1 to i32
    %c0_i32_106 = arith.constant 0 : i32
    %113 = arith.cmpi ne, %112, %c0_i32_106 : i32
    scf.if %113 {
      %cst_168 = arith.constant 0.000000e+00 : f32
      %183 = vector.broadcast %cst_168 : f32 to vector<8x8xf32>
      %c0_169 = arith.constant 0 : index
      %c120_170 = arith.constant 120 : index
      %184 = vector.load %arg24[%c0_169, %c120_170] : memref<8x256xf32, #tpu.memory_space<vmem>>, vector<8x8xf32>
      tpu.vector_store %arg24[%c0_169, %c120_170], %183 {strides = array<i32>} : memref<8x256xf32, #tpu.memory_space<vmem>>, vector<8x8xf32>,
      %cst_171 = arith.constant 0.000000e+00 : f32
      %185 = vector.broadcast %cst_171 : f32 to vector<16x8xf32>
      %c0_172 = arith.constant 0 : index
      %c120_173 = arith.constant 120 : index
      %186 = vector.load %arg25[%c0_172, %c120_173] : memref<16x256xf32, #tpu.memory_space<vmem>>, vector<16x8xf32>
      tpu.vector_store %arg25[%c0_172, %c120_173], %185 {strides = array<i32>} : memref<16x256xf32, #tpu.memory_space<vmem>>, vector<16x8xf32>,
    } else {
    }
    %c0_107 = arith.constant 0 : index
    %c128_108 = arith.constant 128 : index
    %114 = vector.load %arg24[%c0_107, %c128_108] : memref<8x256xf32, #tpu.memory_space<vmem>>, vector<8x128xf32>
    tpu.vector_store %arg24[%c0_107, %c128_108], %106 {strides = array<i32>} : memref<8x256xf32, #tpu.memory_space<vmem>>, vector<8x128xf32>,
    %c2_109 = arith.constant 2 : index
    %c0_110 = arith.constant 0 : index
    %c0_111 = arith.constant 0 : index
    %115 = vector.load %arg13[%c2_109, %c0_110, %c0_111] : memref<3x16x8xf32, #tpu.memory_space<vmem>>, vector<1x16x8xf32>
    %116 = vector.shape_cast %115 : vector<1x16x8xf32> to vector<16x8xf32>
    %cst_112 = arith.constant dense<0.000000e+00> : vector<16x128xf32>
    %117 = tpu.matmul %116, %106, %cst_112 {dimension_numbers = #tpu.dot_dimension_numbers<[1], [0], [0], [1], [0, 0, 1, 1], [], []>} : vector<16x8xf32>, vector<8x128xf32>, vector<16x128xf32> -> vector<16x128xf32>
    %c0_113 = arith.constant 0 : index
    %c0_114 = arith.constant 0 : index
    %c0_115 = arith.constant 0 : index
    %118 = vector.load %arg13[%c0_113, %c0_114, %c0_115] : memref<3x16x8xf32, #tpu.memory_space<vmem>>, vector<1x16x8xf32>
    %119 = vector.shape_cast %118 : vector<1x16x8xf32> to vector<16x8xf32>
    %c0_116 = arith.constant 0 : index
    %c120 = arith.constant 120 : index
    %120 = vector.load %arg24[%c0_116, %c120] : memref<8x256xf32, #tpu.memory_space<vmem>>, vector<8x128xf32>
    %cst_117 = arith.constant dense<0.000000e+00> : vector<16x128xf32>
    %121 = tpu.matmul %119, %120, %cst_117 {dimension_numbers = #tpu.dot_dimension_numbers<[1], [0], [0], [1], [0, 0, 1, 1], [], []>} : vector<16x8xf32>, vector<8x128xf32>, vector<16x128xf32> -> vector<16x128xf32>
    %122 = arith.addf %117, %121 : vector<16x128xf32>
    %c1_118 = arith.constant 1 : index
    %c0_119 = arith.constant 0 : index
    %c0_120 = arith.constant 0 : index
    %123 = vector.load %arg13[%c1_118, %c0_119, %c0_120] : memref<3x16x8xf32, #tpu.memory_space<vmem>>, vector<1x16x8xf32>
    %124 = vector.shape_cast %123 : vector<1x16x8xf32> to vector<16x8xf32>
    %c0_121 = arith.constant 0 : index
    %c124_122 = arith.constant 124 : index
    %125 = vector.load %arg24[%c0_121, %c124_122] : memref<8x256xf32, #tpu.memory_space<vmem>>, vector<8x128xf32>
    %cst_123 = arith.constant dense<0.000000e+00> : vector<16x128xf32>
    %126 = tpu.matmul %124, %125, %cst_123 {dimension_numbers = #tpu.dot_dimension_numbers<[1], [0], [0], [1], [0, 0, 1, 1], [], []>} : vector<16x8xf32>, vector<8x128xf32>, vector<16x128xf32> -> vector<16x128xf32>
    %127 = arith.addf %122, %126 : vector<16x128xf32>
    %c0_124 = arith.constant 0 : index
    %c0_125 = arith.constant 0 : index
    %128 = vector.load %arg14[%c0_124, %c0_125] : memref<16x1xf32, #tpu.memory_space<vmem>>, vector<16x1xf32>
    %129 = vector.broadcast %128 : vector<16x1xf32> to vector<16x128xf32>
    %130 = arith.addf %127, %129 : vector<16x128xf32>
    %cst_126 = arith.constant 0.000000e+00 : f32
    %131 = vector.broadcast %cst_126 : f32 to vector<16x128xf32>
    %132 = arith.cmpf oge, %130, %131 : vector<16x128xf32>
    %cst_127 = arith.constant 0.00999999977 : f32
    %133 = vector.broadcast %cst_127 : f32 to vector<16x128xf32>
    %134 = arith.mulf %133, %130 : vector<16x128xf32>
    %135 = arith.select %132, %130, %134 : vector<16x128xi1>, vector<16x128xf32>
    %c0_128 = arith.constant 0 : index
    %c128_129 = arith.constant 128 : index
    %136 = vector.load %arg25[%c0_128, %c128_129] : memref<16x256xf32, #tpu.memory_space<vmem>>, vector<16x128xf32>
    tpu.vector_store %arg25[%c0_128, %c128_129], %135 {strides = array<i32>} : memref<16x256xf32, #tpu.memory_space<vmem>>, vector<16x128xf32>,
    %c2_130 = arith.constant 2 : index
    %c0_131 = arith.constant 0 : index
    %c0_132 = arith.constant 0 : index
    %137 = vector.load %arg15[%c2_130, %c0_131, %c0_132] : memref<3x16x16xf32, #tpu.memory_space<vmem>>, vector<1x16x16xf32>
    %138 = vector.shape_cast %137 : vector<1x16x16xf32> to vector<16x16xf32>
    %cst_133 = arith.constant dense<0.000000e+00> : vector<16x128xf32>
    %139 = tpu.matmul %138, %135, %cst_133 {dimension_numbers = #tpu.dot_dimension_numbers<[1], [0], [0], [1], [0, 0, 1, 1], [], []>} : vector<16x16xf32>, vector<16x128xf32>, vector<16x128xf32> -> vector<16x128xf32>
    %c0_134 = arith.constant 0 : index
    %c0_135 = arith.constant 0 : index
    %c0_136 = arith.constant 0 : index
    %140 = vector.load %arg15[%c0_134, %c0_135, %c0_136] : memref<3x16x16xf32, #tpu.memory_space<vmem>>, vector<1x16x16xf32>
    %141 = vector.shape_cast %140 : vector<1x16x16xf32> to vector<16x16xf32>
    %c0_137 = arith.constant 0 : index
    %c120_138 = arith.constant 120 : index
    %142 = vector.load %arg25[%c0_137, %c120_138] : memref<16x256xf32, #tpu.memory_space<vmem>>, vector<16x128xf32>
    %cst_139 = arith.constant dense<0.000000e+00> : vector<16x128xf32>
    %143 = tpu.matmul %141, %142, %cst_139 {dimension_numbers = #tpu.dot_dimension_numbers<[1], [0], [0], [1], [0, 0, 1, 1], [], []>} : vector<16x16xf32>, vector<16x128xf32>, vector<16x128xf32> -> vector<16x128xf32>
    %144 = arith.addf %139, %143 : vector<16x128xf32>
    %c1_140 = arith.constant 1 : index
    %c0_141 = arith.constant 0 : index
    %c0_142 = arith.constant 0 : index
    %145 = vector.load %arg15[%c1_140, %c0_141, %c0_142] : memref<3x16x16xf32, #tpu.memory_space<vmem>>, vector<1x16x16xf32>
    %146 = vector.shape_cast %145 : vector<1x16x16xf32> to vector<16x16xf32>
    %c0_143 = arith.constant 0 : index
    %c124_144 = arith.constant 124 : index
    %147 = vector.load %arg25[%c0_143, %c124_144] : memref<16x256xf32, #tpu.memory_space<vmem>>, vector<16x128xf32>
    %cst_145 = arith.constant dense<0.000000e+00> : vector<16x128xf32>
    %148 = tpu.matmul %146, %147, %cst_145 {dimension_numbers = #tpu.dot_dimension_numbers<[1], [0], [0], [1], [0, 0, 1, 1], [], []>} : vector<16x16xf32>, vector<16x128xf32>, vector<16x128xf32> -> vector<16x128xf32>
    %149 = arith.addf %144, %148 : vector<16x128xf32>
    %c0_146 = arith.constant 0 : index
    %c0_147 = arith.constant 0 : index
    %150 = vector.load %arg16[%c0_146, %c0_147] : memref<16x1xf32, #tpu.memory_space<vmem>>, vector<16x1xf32>
    %151 = vector.broadcast %150 : vector<16x1xf32> to vector<16x128xf32>
    %152 = arith.addf %149, %151 : vector<16x128xf32>
    %cst_148 = arith.constant 0.000000e+00 : f32
    %153 = vector.broadcast %cst_148 : f32 to vector<16x128xf32>
    %154 = arith.cmpf oge, %152, %153 : vector<16x128xf32>
    %cst_149 = arith.constant 0.00999999977 : f32
    %155 = vector.broadcast %cst_149 : f32 to vector<16x128xf32>
    %156 = arith.mulf %155, %152 : vector<16x128xf32>
    %157 = arith.select %154, %152, %156 : vector<16x128xi1>, vector<16x128xf32>
    %c0_150 = arith.constant 0 : index
    %c0_151 = arith.constant 0 : index
    %158 = vector.load %arg17[%c0_150, %c0_151] : memref<16x8xf32, #tpu.memory_space<vmem>>, vector<16x8xf32>
    %cst_152 = arith.constant dense<0.000000e+00> : vector<16x128xf32>
    %159 = tpu.matmul %158, %106, %cst_152 {dimension_numbers = #tpu.dot_dimension_numbers<[1], [0], [0], [1], [0, 0, 1, 1], [], []>} : vector<16x8xf32>, vector<8x128xf32>, vector<16x128xf32> -> vector<16x128xf32>
    %c0_153 = arith.constant 0 : index
    %c0_154 = arith.constant 0 : index
    %160 = vector.load %arg18[%c0_153, %c0_154] : memref<16x1xf32, #tpu.memory_space<vmem>>, vector<16x1xf32>
    %161 = vector.broadcast %160 : vector<16x1xf32> to vector<16x128xf32>
    %162 = arith.addf %159, %161 : vector<16x128xf32>
    %163 = arith.addf %157, %162 : vector<16x128xf32>
    %c0_155 = arith.constant 0 : index
    %c248 = arith.constant 248 : index
    %164 = vector.load %arg24[%c0_155, %c248] : memref<8x256xf32, #tpu.memory_space<vmem>>, vector<8x8xf32>
    %c0_156 = arith.constant 0 : index
    %c120_157 = arith.constant 120 : index
    %165 = vector.load %arg24[%c0_156, %c120_157] : memref<8x256xf32, #tpu.memory_space<vmem>>, vector<8x8xf32>
    tpu.vector_store %arg24[%c0_156, %c120_157], %164 {strides = array<i32>} : memref<8x256xf32, #tpu.memory_space<vmem>>, vector<8x8xf32>,
    %c0_158 = arith.constant 0 : index
    %c248_159 = arith.constant 248 : index
    %166 = vector.load %arg25[%c0_158, %c248_159] : memref<16x256xf32, #tpu.memory_space<vmem>>, vector<16x8xf32>
    %c0_160 = arith.constant 0 : index
    %c120_161 = arith.constant 120 : index
    %167 = vector.load %arg25[%c0_160, %c120_161] : memref<16x256xf32, #tpu.memory_space<vmem>>, vector<16x8xf32>
    tpu.vector_store %arg25[%c0_160, %c120_161], %166 {strides = array<i32>} : memref<16x256xf32, #tpu.memory_space<vmem>>, vector<16x8xf32>,
    %168 = tpu.iota {dimensions = array<i32: 1>} : vector<16x128xi32>
    %c128_i32 = arith.constant 128 : i32
    %169 = arith.muli %arg1, %c128_i32 : i32
    %c256_i32 = arith.constant 256 : i32
    %170 = arith.subi %c256_i32, %169 : i32
    %171 = vector.broadcast %170 : i32 to vector<16x128xi32>
    %172 = arith.cmpi slt, %168, %171 : vector<16x128xi32>
    %cst_162 = arith.constant 0xFF800000 : f32
    %173 = vector.broadcast %cst_162 : f32 to vector<16x128xf32>
    %174 = arith.select %172, %163, %173 : vector<16x128xi1>, vector<16x128xf32>
    %cst_163 = arith.constant dense<0xFF800000> : vector<16xf32>
    %175 = vector.multi_reduction <maximumf>, %174, %cst_163 [1] : vector<16x128xf32> to vector<16xf32>
    %176 = vector.shape_cast %175 : vector<16xf32> to vector<16x1xf32>
    %c0_i32_164 = arith.constant 0 : i32
    %177 = arith.cmpi eq, %arg1, %c0_i32_164 : i32
    %178 = arith.extui %177 : i1 to i32
    %c0_i32_165 = arith.constant 0 : i32
    %179 = arith.cmpi ne, %178, %c0_i32_165 : i32
    scf.if %179 {
      %c0_168 = arith.constant 0 : index
      %c0_169 = arith.constant 0 : index
      %c0_170 = arith.constant 0 : index
      %183 = vector.load %arg19[%c0_168, %c0_169, %c0_170] : memref<1x16x1xf32, #tpu.memory_space<vmem>>, vector<1x16x1xf32>
      %184 = vector.shape_cast %183 : vector<1x16x1xf32> to vector<16x1xf32>
      %185 = vector.shape_cast %176 : vector<16x1xf32> to vector<1x16x1xf32>
      tpu.vector_store %arg19[%c0_168, %c0_169, %c0_170], %185 {strides = array<i32>} : memref<1x16x1xf32, #tpu.memory_space<vmem>>, vector<1x16x1xf32>,
    } else {
    }
    %c0_i32_166 = arith.constant 0 : i32
    %180 = arith.cmpi ne, %arg1, %c0_i32_166 : i32
    %181 = arith.extui %180 : i1 to i32
    %c0_i32_167 = arith.constant 0 : i32
    %182 = arith.cmpi ne, %181, %c0_i32_167 : i32
    scf.if %182 {
      %c0_168 = arith.constant 0 : index
      %c0_169 = arith.constant 0 : index
      %c0_170 = arith.constant 0 : index
      %183 = vector.load %arg19[%c0_168, %c0_169, %c0_170] : memref<1x16x1xf32, #tpu.memory_space<vmem>>, vector<1x16x1xf32>
      %184 = vector.shape_cast %183 : vector<1x16x1xf32> to vector<16x1xf32>
      %185 = arith.maximumf %184, %176 : vector<16x1xf32>
      %c0_171 = arith.constant 0 : index
      %c0_172 = arith.constant 0 : index
      %c0_173 = arith.constant 0 : index
      %186 = vector.load %arg19[%c0_171, %c0_172, %c0_173] : memref<1x16x1xf32, #tpu.memory_space<vmem>>, vector<1x16x1xf32>
      %187 = vector.shape_cast %186 : vector<1x16x1xf32> to vector<16x1xf32>
      %188 = vector.shape_cast %185 : vector<16x1xf32> to vector<1x16x1xf32>
      tpu.vector_store %arg19[%c0_171, %c0_172, %c0_173], %188 {strides = array<i32>} : memref<1x16x1xf32, #tpu.memory_space<vmem>>, vector<1x16x1xf32>,
    } else {
    }
    return
  }
  func.func @transform_0(%arg0: i32, %arg1: i32) -> (i32, i32, i32) {
    %c0_i32 = arith.constant 0 : i32
    %c0_i32_0 = arith.constant 0 : i32
    return %arg0, %c0_i32, %arg1 : i32, i32, i32
  }
  func.func @transform_1(%arg0: i32, %arg1: i32) -> (i32, i32, i32) {
    %c0_i32 = arith.constant 0 : i32
    %c0_i32_0 = arith.constant 0 : i32
    %c0_i32_1 = arith.constant 0 : i32
    %c0_i32_2 = arith.constant 0 : i32
    return %c0_i32, %c0_i32_0, %c0_i32_1 : i32, i32, i32
  }
  func.func @transform_2(%arg0: i32, %arg1: i32) -> (i32, i32) {
    %c0_i32 = arith.constant 0 : i32
    %c0_i32_0 = arith.constant 0 : i32
    %c0_i32_1 = arith.constant 0 : i32
    return %c0_i32, %c0_i32_0 : i32, i32
  }
  func.func @transform_3(%arg0: i32, %arg1: i32) -> (i32, i32, i32) {
    %c0_i32 = arith.constant 0 : i32
    %c0_i32_0 = arith.constant 0 : i32
    %c0_i32_1 = arith.constant 0 : i32
    %c0_i32_2 = arith.constant 0 : i32
    return %c0_i32, %c0_i32_0, %c0_i32_1 : i32, i32, i32
  }
  func.func @transform_4(%arg0: i32, %arg1: i32) -> (i32, i32) {
    %c0_i32 = arith.constant 0 : i32
    %c0_i32_0 = arith.constant 0 : i32
    %c0_i32_1 = arith.constant 0 : i32
    return %c0_i32, %c0_i32_0 : i32, i32
  }
  func.func @transform_5(%arg0: i32, %arg1: i32) -> (i32, i32) {
    %c0_i32 = arith.constant 0 : i32
    %c0_i32_0 = arith.constant 0 : i32
    %c0_i32_1 = arith.constant 0 : i32
    return %c0_i32, %c0_i32_0 : i32, i32
  }
  func.func @transform_6(%arg0: i32, %arg1: i32) -> (i32, i32) {
    %c0_i32 = arith.constant 0 : i32
    %c0_i32_0 = arith.constant 0 : i32
    %c0_i32_1 = arith.constant 0 : i32
    return %c0_i32, %c0_i32_0 : i32, i32
  }
  func.func @transform_7(%arg0: i32, %arg1: i32) -> (i32, i32, i32) {
    %c0_i32 = arith.constant 0 : i32
    %c0_i32_0 = arith.constant 0 : i32
    %c0_i32_1 = arith.constant 0 : i32
    %c0_i32_2 = arith.constant 0 : i32
    return %c0_i32, %c0_i32_0, %c0_i32_1 : i32, i32, i32
  }
  func.func @transform_8(%arg0: i32, %arg1: i32) -> (i32, i32) {
    %c0_i32 = arith.constant 0 : i32
    %c0_i32_0 = arith.constant 0 : i32
    %c0_i32_1 = arith.constant 0 : i32
    return %c0_i32, %c0_i32_0 : i32, i32
  }
  func.func @transform_9(%arg0: i32, %arg1: i32) -> (i32, i32, i32) {
    %c0_i32 = arith.constant 0 : i32
    %c0_i32_0 = arith.constant 0 : i32
    %c0_i32_1 = arith.constant 0 : i32
    %c0_i32_2 = arith.constant 0 : i32
    return %c0_i32, %c0_i32_0, %c0_i32_1 : i32, i32, i32
  }
  func.func @transform_10(%arg0: i32, %arg1: i32) -> (i32, i32) {
    %c0_i32 = arith.constant 0 : i32
    %c0_i32_0 = arith.constant 0 : i32
    %c0_i32_1 = arith.constant 0 : i32
    return %c0_i32, %c0_i32_0 : i32, i32
  }
  func.func @transform_11(%arg0: i32, %arg1: i32) -> (i32, i32, i32) {
    %c0_i32 = arith.constant 0 : i32
    %c0_i32_0 = arith.constant 0 : i32
    %c0_i32_1 = arith.constant 0 : i32
    %c0_i32_2 = arith.constant 0 : i32
    return %c0_i32, %c0_i32_0, %c0_i32_1 : i32, i32, i32
  }
  func.func @transform_12(%arg0: i32, %arg1: i32) -> (i32, i32) {
    %c0_i32 = arith.constant 0 : i32
    %c0_i32_0 = arith.constant 0 : i32
    %c0_i32_1 = arith.constant 0 : i32
    return %c0_i32, %c0_i32_0 : i32, i32
  }
  func.func @transform_13(%arg0: i32, %arg1: i32) -> (i32, i32, i32) {
    %c0_i32 = arith.constant 0 : i32
    %c0_i32_0 = arith.constant 0 : i32
    %c0_i32_1 = arith.constant 0 : i32
    %c0_i32_2 = arith.constant 0 : i32
    return %c0_i32, %c0_i32_0, %c0_i32_1 : i32, i32, i32
  }
  func.func @transform_14(%arg0: i32, %arg1: i32) -> (i32, i32) {
    %c0_i32 = arith.constant 0 : i32
    %c0_i32_0 = arith.constant 0 : i32
    %c0_i32_1 = arith.constant 0 : i32
    return %c0_i32, %c0_i32_0 : i32, i32
  }
  func.func @transform_15(%arg0: i32, %arg1: i32) -> (i32, i32) {
    %c0_i32 = arith.constant 0 : i32
    %c0_i32_0 = arith.constant 0 : i32
    %c0_i32_1 = arith.constant 0 : i32
    return %c0_i32, %c0_i32_0 : i32, i32
  }
  func.func @transform_16(%arg0: i32, %arg1: i32) -> (i32, i32) {
    %c0_i32 = arith.constant 0 : i32
    %c0_i32_0 = arith.constant 0 : i32
    %c0_i32_1 = arith.constant 0 : i32
    return %c0_i32, %c0_i32_0 : i32, i32
  }
  func.func @transform_17(%arg0: i32, %arg1: i32) -> (i32, i32, i32) {
    %c0_i32 = arith.constant 0 : i32
    %c0_i32_0 = arith.constant 0 : i32
    %c0_i32_1 = arith.constant 0 : i32
    return %arg0, %c0_i32, %c0_i32_0 : i32, i32, i32
  }
}

</mosaic_0001>

<llo_original>
// kernel: tpu_custom_call.1
$region0: #{tpu_custom_call.1}
  #allocation0 [shape = 'u32[]', space=smem, size = 0x4, offset = 0x4, fixed_abs, tag = 'smem constant byte address 0x4 - core index']
  #allocation1 [shape = 'u32[144,128]{1,0:T(1,128)}', space=vmem, size = 0x12000, scoped, tag = 'internal scratch']
  #allocation2 [shape = 'f32[4,256]{1,0:T(4,128)}', space=vmem, size = 0x1000, scoped, tag = 'scratch operand']
  #allocation3 [shape = 'f32[8,256]{1,0:T(8,128)}', space=vmem, size = 0x2000, scoped, tag = 'scratch operand']
  #allocation4 [shape = 'f32[8,256]{1,0:T(8,128)}', space=vmem, size = 0x2000, scoped, tag = 'scratch operand']
  #allocation5 [shape = 'f32[8,256]{1,0:T(8,128)}', space=vmem, size = 0x2000, scoped, tag = 'scratch operand']
  #allocation6 [shape = 'f32[8,256]{1,0:T(8,128)}', space=vmem, size = 0x2000, scoped, tag = 'scratch operand']
  #allocation7 [shape = 'f32[16,256]{1,0:T(8,128)}', space=vmem, size = 0x4000, scoped, tag = 'scratch operand']
  %s0 = inlined_call_operand.vmem [shape: f32[2,4,256], index: 0, kind: input, shape index: {}]
  %s1 = inlined_call_operand.vmem [shape: f32[3,8,4], index: 1, kind: input, shape index: {}]
  %s2 = inlined_call_operand.vmem [shape: f32[8,1], index: 2, kind: input, shape index: {}]
  %s3 = inlined_call_operand.vmem [shape: f32[3,8,8], index: 3, kind: input, shape index: {}]
  %s4 = inlined_call_operand.vmem [shape: f32[8,1], index: 4, kind: input, shape index: {}]
  %s5 = inlined_call_operand.vmem [shape: f32[8,4], index: 5, kind: input, shape index: {}]
  %s6 = inlined_call_operand.vmem [shape: f32[8,1], index: 6, kind: input, shape index: {}]
  %s7 = inlined_call_operand.vmem [shape: f32[3,8,8], index: 7, kind: input, shape index: {}]
  %s8 = inlined_call_operand.vmem [shape: f32[8,1], index: 8, kind: input, shape index: {}]
  %s9 = inlined_call_operand.vmem [shape: f32[3,8,8], index: 9, kind: input, shape index: {}]
  %s10 = inlined_call_operand.vmem [shape: f32[8,1], index: 10, kind: input, shape index: {}]
  %s11 = inlined_call_operand.vmem [shape: f32[3,16,8], index: 11, kind: input, shape index: {}]
  %s12 = inlined_call_operand.vmem [shape: f32[16,1], index: 12, kind: input, shape index: {}]
  %s13 = inlined_call_operand.vmem [shape: f32[3,16,16], index: 13, kind: input, shape index: {}]
  %s14 = inlined_call_operand.vmem [shape: f32[16,1], index: 14, kind: input, shape index: {}]
  %s15 = inlined_call_operand.vmem [shape: f32[16,8], index: 15, kind: input, shape index: {}]
  %s16 = inlined_call_operand.vmem [shape: f32[16,1], index: 16, kind: input, shape index: {}]
  %s17 = inlined_call_operand.vmem [shape: f32[2,16,1], index: 17, kind: output, shape index: {}]
  %s18 = sld [smem:[#allocation0]]
  $region121: #{tpu_custom_call.1} parent=0
    _
  %s20 = ssub.s32 1, %s18
  %s21 = scalar_select 0, %s20, %s18
  loop: start=0, step=1, limit=6
  $region2: #{tpu_custom_call.1} parent=0 // loop_pre_header
    _
  $region3: #{tpu_custom_call.1} parent=0 // loop_header
    %s23 = sphi 0, %s27
    %p24 = scmp.ge.s32.totalorder %s23, 6
    %s30 = sphi 0, %s42
    %s31 = sphi 0, %s38
    %s32 = sphi 0, %s30
    %s33 = sphi 0, %s31
    %s34 = sphi 0, %s32
    %s35 = sphi 0, %s33
    %s47 = sphi 0, %s49
    %s50 = sphi 0, %s47
    %s51 = sphi 0, %s50
    %s67 = sphi 0, %s51
    %s71 = sphi 0, %s71
    %s73 = sphi 0, %s71
    %s74 = sphi 0, %s73
    %s88 = sphi 0, %s74
    %s92 = sphi 0, %s92
    %s94 = sphi 0, %s92
    %s95 = sphi 0, %s94
    %s109 = sphi 0, %s95
    %s113 = sphi 0, %s113
    %s115 = sphi 0, %s113
    %s116 = sphi 0, %s115
    %s130 = sphi 0, %s116
    %s134 = sphi 0, %s134
    %s136 = sphi 0, %s134
    %s137 = sphi 0, %s136
    %s151 = sphi 0, %s137
    %s155 = sphi 0, %s155
    %s157 = sphi 0, %s155
    %s158 = sphi 0, %s157
    %s172 = sphi 0, %s158
    %s176 = sphi 0, %s176
    %s178 = sphi 0, %s176
    %s179 = sphi 0, %s178
    %s193 = sphi 0, %s179
    %s197 = sphi 0, %s197
    %s199 = sphi 0, %s197
    %s200 = sphi 0, %s199
    %s214 = sphi 0, %s200
    %s218 = sphi 0, %s218
    %s220 = sphi 0, %s218
    %s221 = sphi 0, %s220
    %s235 = sphi 0, %s221
    %s239 = sphi 0, %s239
    %s241 = sphi 0, %s239
    %s242 = sphi 0, %s241
    %s256 = sphi 0, %s242
    %s260 = sphi 0, %s260
    %s262 = sphi 0, %s260
    %s263 = sphi 0, %s262
    %s277 = sphi 0, %s263
    %s281 = sphi 0, %s281
    %s283 = sphi 0, %s281
    %s284 = sphi 0, %s283
    %s298 = sphi 0, %s284
    %s302 = sphi 0, %s302
    %s304 = sphi 0, %s302
    %s305 = sphi 0, %s304
    %s319 = sphi 0, %s305
    %s323 = sphi 0, %s323
    %s325 = sphi 0, %s323
    %s326 = sphi 0, %s325
    %s340 = sphi 0, %s326
    %s344 = sphi 0, %s344
    %s346 = sphi 0, %s344
    %s347 = sphi 0, %s346
    %s361 = sphi 0, %s347
    %s365 = sphi 0, %s365
    %s367 = sphi 0, %s365
    %s368 = sphi 0, %s367
    %s382 = sphi 0, %s368
    %s386 = sphi 0, %s386
    %s388 = sphi 0, %s386
    %s389 = sphi 0, %s388
    %s403 = sphi 0, %s389
    %s409 = sphi 0, %s411
    %s412 = sphi 0, %s409
    %s413 = sphi 0, %s412
    %s429 = sphi 0, %s413
  $region4: #{tpu_custom_call.1} parent=0 // loop_header_branch
    %26 = sbr.rel (%p24) target = $region8
  $region5: #{tpu_custom_call.1} parent=0 // loop_body
    %s28 = ssub.s32 %s23, 1
    %s29 = ssub.s32 %s23, 2
    %s36 = sadd.s32 1, %s31
    %p37 = scmp.ge.s32.totalorder %s36, 2
    %s38 = scalar_select %p37, 0, %s36
    %s39 = sadd.s32 1, %s30
    %s40 = scalar_select %p37, %s39, %s30
    %p41 = scmp.ge.s32.totalorder %s40, 2
    %s42 = scalar_select %p41, 0, %s40
    %s43 = ssub.s32 %s30, %s42
    %s44 = ssub.s32 %s31, %s38
    %s45 = sor.u32 %s43, %s44
    %p46 = scmp.eq.s32.totalorder %s45, 0
    %s48 = sadd.s32 %s47, 1
    %s49 = scalar_select %p46, %s47, %s48
    %p52 = pneg %p46
    %p53 = scmp.eq.s32.totalorder %s23, 3
    %p54 = por %p52, %p53
    %p55 = scmp.ne.s32.totalorder %s47, %s50
    %p56 = scmp.eq.s32.totalorder %s23, 0
    %p57 = por %p55, %p56
    %p58 = scmp.ne.s32.totalorder %s47, %s50
    %p59 = scmp.eq.s32.totalorder %s28, 3
    %p60 = por %p58, %p59
    %p61 = scmp.ne.s32.totalorder %s50, %s51
    %p62 = scmp.eq.s32.totalorder %s28, 0
    %p63 = por %p61, %p62
    %p64 = scmp.ne.s32.totalorder %s50, %s51
    %p65 = scmp.eq.s32.totalorder %s29, 3
    %p66 = por %p64, %p65
    %p68 = scmp.ne.s32.totalorder %s51, %s67
    %p69 = scmp.eq.s32.totalorder %s29, 0
    %p70 = por %p68, %p69
    %s72 = sadd.s32 %s71, 1
    %p75 = scmp.eq.s32.totalorder %s23, 3
    %p76 = scmp.ne.s32.totalorder %s71, %s73
    %p77 = scmp.eq.s32.totalorder %s23, 0
    %p78 = por %p76, %p77
    %p79 = scmp.ne.s32.totalorder %s71, %s73
    %p80 = scmp.eq.s32.totalorder %s28, 3
    %p81 = por %p79, %p80
    %p82 = scmp.ne.s32.totalorder %s73, %s74
    %p83 = scmp.eq.s32.totalorder %s28, 0
    %p84 = por %p82, %p83
    %p85 = scmp.ne.s32.totalorder %s73, %s74
    %p86 = scmp.eq.s32.totalorder %s29, 3
    %p87 = por %p85, %p86
    %p89 = scmp.ne.s32.totalorder %s74, %s88
    %p90 = scmp.eq.s32.totalorder %s29, 0
    %p91 = por %p89, %p90
    %s93 = sadd.s32 %s92, 1
    %p96 = scmp.eq.s32.totalorder %s23, 3
    %p97 = scmp.ne.s32.totalorder %s92, %s94
    %p98 = scmp.eq.s32.totalorder %s23, 0
    %p99 = por %p97, %p98
    %p100 = scmp.ne.s32.totalorder %s92, %s94
    %p101 = scmp.eq.s32.totalorder %s28, 3
    %p102 = por %p100, %p101
    %p103 = scmp.ne.s32.totalorder %s94, %s95
    %p104 = scmp.eq.s32.totalorder %s28, 0
    %p105 = por %p103, %p104
    %p106 = scmp.ne.s32.totalorder %s94, %s95
    %p107 = scmp.eq.s32.totalorder %s29, 3
    %p108 = por %p106, %p107
    %p110 = scmp.ne.s32.totalorder %s95, %s109
    %p111 = scmp.eq.s32.totalorder %s29, 0
    %p112 = por %p110, %p111
    %s114 = sadd.s32 %s113, 1
    %p117 = scmp.eq.s32.totalorder %s23, 3
    %p118 = scmp.ne.s32.totalorder %s113, %s115
    %p119 = scmp.eq.s32.totalorder %s23, 0
    %p120 = por %p118, %p119
    %p121 = scmp.ne.s32.totalorder %s113, %s115
    %p122 = scmp.eq.s32.totalorder %s28, 3
    %p123 = por %p121, %p122
    %p124 = scmp.ne.s32.totalorder %s115, %s116
    %p125 = scmp.eq.s32.totalorder %s28, 0
    %p126 = por %p124, %p125
    %p127 = scmp.ne.s32.totalorder %s115, %s116
    %p128 = scmp.eq.s32.totalorder %s29, 3
    %p129 = por %p127, %p128
    %p131 = scmp.ne.s32.totalorder %s116, %s130
    %p132 = scmp.eq.s32.totalorder %s29, 0
    %p133 = por %p131, %p132
    %s135 = sadd.s32 %s134, 1
    %p138 = scmp.eq.s32.totalorder %s23, 3
    %p139 = scmp.ne.s32.totalorder %s134, %s136
    %p140 = scmp.eq.s32.totalorder %s23, 0
    %p141 = por %p139, %p140
    %p142 = scmp.ne.s32.totalorder %s134, %s136
    %p143 = scmp.eq.s32.totalorder %s28, 3
    %p144 = por %p142, %p143
    %p145 = scmp.ne.s32.totalorder %s136, %s137
    %p146 = scmp.eq.s32.totalorder %s28, 0
    %p147 = por %p145, %p146
    %p148 = scmp.ne.s32.totalorder %s136, %s137
    %p149 = scmp.eq.s32.totalorder %s29, 3
    %p150 = por %p148, %p149
    %p152 = scmp.ne.s32.totalorder %s137, %s151
    %p153 = scmp.eq.s32.totalorder %s29, 0
    %p154 = por %p152, %p153
    %s156 = sadd.s32 %s155, 1
    %p159 = scmp.eq.s32.totalorder %s23, 3
    %p160 = scmp.ne.s32.totalorder %s155, %s157
    %p161 = scmp.eq.s32.totalorder %s23, 0
    %p162 = por %p160, %p161
    %p163 = scmp.ne.s32.totalorder %s155, %s157
    %p164 = scmp.eq.s32.totalorder %s28, 3
    %p165 = por %p163, %p164
    %p166 = scmp.ne.s32.totalorder %s157, %s158
    %p167 = scmp.eq.s32.totalorder %s28, 0
    %p168 = por %p166, %p167
    %p169 = scmp.ne.s32.totalorder %s157, %s158
    %p170 = scmp.eq.s32.totalorder %s29, 3
    %p171 = por %p169, %p170
    %p173 = scmp.ne.s32.totalorder %s158, %s172
    %p174 = scmp.eq.s32.totalorder %s29, 0
    %p175 = por %p173, %p174
    %s177 = sadd.s32 %s176, 1
    %p180 = scmp.eq.s32.totalorder %s23, 3
    %p181 = scmp.ne.s32.totalorder %s176, %s178
    %p182 = scmp.eq.s32.totalorder %s23, 0
    %p183 = por %p181, %p182
    %p184 = scmp.ne.s32.totalorder %s176, %s178
    %p185 = scmp.eq.s32.totalorder %s28, 3
    %p186 = por %p184, %p185
    %p187 = scmp.ne.s32.totalorder %s178, %s179
    %p188 = scmp.eq.s32.totalorder %s28, 0
    %p189 = por %p187, %p188
    %p190 = scmp.ne.s32.totalorder %s178, %s179
    %p191 = scmp.eq.s32.totalorder %s29, 3
    %p192 = por %p190, %p191
    %p194 = scmp.ne.s32.totalorder %s179, %s193
    %p195 = scmp.eq.s32.totalorder %s29, 0
    %p196 = por %p194, %p195
    %s198 = sadd.s32 %s197, 1
    %p201 = scmp.eq.s32.totalorder %s23, 3
    %p202 = scmp.ne.s32.totalorder %s197, %s199
    %p203 = scmp.eq.s32.totalorder %s23, 0
    %p204 = por %p202, %p203
    %p205 = scmp.ne.s32.totalorder %s197, %s199
    %p206 = scmp.eq.s32.totalorder %s28, 3
    %p207 = por %p205, %p206
    %p208 = scmp.ne.s32.totalorder %s199, %s200
    %p209 = scmp.eq.s32.totalorder %s28, 0
    %p210 = por %p208, %p209
    %p211 = scmp.ne.s32.totalorder %s199, %s200
    %p212 = scmp.eq.s32.totalorder %s29, 3
    %p213 = por %p211, %p212
    %p215 = scmp.ne.s32.totalorder %s200, %s214
    %p216 = scmp.eq.s32.totalorder %s29, 0
    %p217 = por %p215, %p216
    %s219 = sadd.s32 %s218, 1
    %p222 = scmp.eq.s32.totalorder %s23, 3
    %p223 = scmp.ne.s32.totalorder %s218, %s220
    %p224 = scmp.eq.s32.totalorder %s23, 0
    %p225 = por %p223, %p224
    %p226 = scmp.ne.s32.totalorder %s218, %s220
    %p227 = scmp.eq.s32.totalorder %s28, 3
    %p228 = por %p226, %p227
    %p229 = scmp.ne.s32.totalorder %s220, %s221
    %p230 = scmp.eq.s32.totalorder %s28, 0
    %p231 = por %p229, %p230
    %p232 = scmp.ne.s32.totalorder %s220, %s221
    %p233 = scmp.eq.s32.totalorder %s29, 3
    %p234 = por %p232, %p233
    %p236 = scmp.ne.s32.totalorder %s221, %s235
    %p237 = scmp.eq.s32.totalorder %s29, 0
    %p238 = por %p236, %p237
    %s240 = sadd.s32 %s239, 1
    %p243 = scmp.eq.s32.totalorder %s23, 3
    %p244 = scmp.ne.s32.totalorder %s239, %s241
    %p245 = scmp.eq.s32.totalorder %s23, 0
    %p246 = por %p244, %p245
    %p247 = scmp.ne.s32.totalorder %s239, %s241
    %p248 = scmp.eq.s32.totalorder %s28, 3
    %p249 = por %p247, %p248
    %p250 = scmp.ne.s32.totalorder %s241, %s242
    %p251 = scmp.eq.s32.totalorder %s28, 0
    %p252 = por %p250, %p251
    %p253 = scmp.ne.s32.totalorder %s241, %s242
    %p254 = scmp.eq.s32.totalorder %s29, 3
    %p255 = por %p253, %p254
    %p257 = scmp.ne.s32.totalorder %s242, %s256
    %p258 = scmp.eq.s32.totalorder %s29, 0
    %p259 = por %p257, %p258
    %s261 = sadd.s32 %s260, 1
    %p264 = scmp.eq.s32.totalorder %s23, 3
    %p265 = scmp.ne.s32.totalorder %s260, %s262
    %p266 = scmp.eq.s32.totalorder %s23, 0
    %p267 = por %p265, %p266
    %p268 = scmp.ne.s32.totalorder %s260, %s262
    %p269 = scmp.eq.s32.totalorder %s28, 3
    %p270 = por %p268, %p269
    %p271 = scmp.ne.s32.totalorder %s262, %s263
    %p272 = scmp.eq.s32.totalorder %s28, 0
    %p273 = por %p271, %p272
    %p274 = scmp.ne.s32.totalorder %s262, %s263
    %p275 = scmp.eq.s32.totalorder %s29, 3
    %p276 = por %p274, %p275
    %p278 = scmp.ne.s32.totalorder %s263, %s277
    %p279 = scmp.eq.s32.totalorder %s29, 0
    %p280 = por %p278, %p279
    %s282 = sadd.s32 %s281, 1
    %p285 = scmp.eq.s32.totalorder %s23, 3
    %p286 = scmp.ne.s32.totalorder %s281, %s283
    %p287 = scmp.eq.s32.totalorder %s23, 0
    %p288 = por %p286, %p287
    %p289 = scmp.ne.s32.totalorder %s281, %s283
    %p290 = scmp.eq.s32.totalorder %s28, 3
    %p291 = por %p289, %p290
    %p292 = scmp.ne.s32.totalorder %s283, %s284
    %p293 = scmp.eq.s32.totalorder %s28, 0
    %p294 = por %p292, %p293
    %p295 = scmp.ne.s32.totalorder %s283, %s284
    %p296 = scmp.eq.s32.totalorder %s29, 3
    %p297 = por %p295, %p296
    %p299 = scmp.ne.s32.totalorder %s284, %s298
    %p300 = scmp.eq.s32.totalorder %s29, 0
    %p301 = por %p299, %p300
    %s303 = sadd.s32 %s302, 1
    %p306 = scmp.eq.s32.totalorder %s23, 3
    %p307 = scmp.ne.s32.totalorder %s302, %s304
    %p308 = scmp.eq.s32.totalorder %s23, 0
    %p309 = por %p307, %p308
    %p310 = scmp.ne.s32.totalorder %s302, %s304
    %p311 = scmp.eq.s32.totalorder %s28, 3
    %p312 = por %p310, %p311
    %p313 = scmp.ne.s32.totalorder %s304, %s305
    %p314 = scmp.eq.s32.totalorder %s28, 0
    %p315 = por %p313, %p314
    %p316 = scmp.ne.s32.totalorder %s304, %s305
    %p317 = scmp.eq.s32.totalorder %s29, 3
    %p318 = por %p316, %p317
    %p320 = scmp.ne.s32.totalorder %s305, %s319
    %p321 = scmp.eq.s32.totalorder %s29, 0
    %p322 = por %p320, %p321
    %s324 = sadd.s32 %s323, 1
    %p327 = scmp.eq.s32.totalorder %s23, 3
    %p328 = scmp.ne.s32.totalorder %s323, %s325
    %p329 = scmp.eq.s32.totalorder %s23, 0
    %p330 = por %p328, %p329
    %p331 = scmp.ne.s32.totalorder %s323, %s325
    %p332 = scmp.eq.s32.totalorder %s28, 3
    %p333 = por %p331, %p332
    %p334 = scmp.ne.s32.totalorder %s325, %s326
    %p335 = scmp.eq.s32.totalorder %s28, 0
    %p336 = por %p334, %p335
    %p337 = scmp.ne.s32.totalorder %s325, %s326
    %p338 = scmp.eq.s32.totalorder %s29, 3
    %p339 = por %p337, %p338
    %p341 = scmp.ne.s32.totalorder %s326, %s340
    %p342 = scmp.eq.s32.totalorder %s29, 0
    %p343 = por %p341, %p342
    %s345 = sadd.s32 %s344, 1
    %p348 = scmp.eq.s32.totalorder %s23, 3
    %p349 = scmp.ne.s32.totalorder %s344, %s346
    %p350 = scmp.eq.s32.totalorder %s23, 0
    %p351 = por %p349, %p350
    %p352 = scmp.ne.s32.totalorder %s344, %s346
    %p353 = scmp.eq.s32.totalorder %s28, 3
    %p354 = por %p352, %p353
    %p355 = scmp.ne.s32.totalorder %s346, %s347
    %p356 = scmp.eq.s32.totalorder %s28, 0
    %p357 = por %p355, %p356
    %p358 = scmp.ne.s32.totalorder %s346, %s347
    %p359 = scmp.eq.s32.totalorder %s29, 3
    %p360 = por %p358, %p359
    %p362 = scmp.ne.s32.totalorder %s347, %s361
    %p363 = scmp.eq.s32.totalorder %s29, 0
    %p364 = por %p362, %p363
    %s366 = sadd.s32 %s365, 1
    %p369 = scmp.eq.s32.totalorder %s23, 3
    %p370 = scmp.ne.s32.totalorder %s365, %s367
    %p371 = scmp.eq.s32.totalorder %s23, 0
    %p372 = por %p370, %p371
    %p373 = scmp.ne.s32.totalorder %s365, %s367
    %p374 = scmp.eq.s32.totalorder %s28, 3
    %p375 = por %p373, %p374
    %p376 = scmp.ne.s32.totalorder %s367, %s368
    %p377 = scmp.eq.s32.totalorder %s28, 0
    %p378 = por %p376, %p377
    %p379 = scmp.ne.s32.totalorder %s367, %s368
    %p380 = scmp.eq.s32.totalorder %s29, 3
    %p381 = por %p379, %p380
    %p383 = scmp.ne.s32.totalorder %s368, %s382
    %p384 = scmp.eq.s32.totalorder %s29, 0
    %p385 = por %p383, %p384
    %s387 = sadd.s32 %s386, 1
    %p390 = scmp.eq.s32.totalorder %s23, 3
    %p391 = scmp.ne.s32.totalorder %s386, %s388
    %p392 = scmp.eq.s32.totalorder %s23, 0
    %p393 = por %p391, %p392
    %p394 = scmp.ne.s32.totalorder %s386, %s388
    %p395 = scmp.eq.s32.totalorder %s28, 3
    %p396 = por %p394, %p395
    %p397 = scmp.ne.s32.totalorder %s388, %s389
    %p398 = scmp.eq.s32.totalorder %s28, 0
    %p399 = por %p397, %p398
    %p400 = scmp.ne.s32.totalorder %s388, %s389
    %p401 = scmp.eq.s32.totalorder %s29, 3
    %p402 = por %p400, %p401
    %p404 = scmp.ne.s32.totalorder %s389, %s403
    %p405 = scmp.eq.s32.totalorder %s29, 0
    %p406 = por %p404, %p405
    %s407 = ssub.s32 %s30, %s42
    %p408 = scmp.eq.s32.totalorder %s407, 0
    %s410 = sadd.s32 %s409, 1
    %s411 = scalar_select %p408, %s409, %s410
    %p414 = pneg %p408
    %p415 = scmp.eq.s32.totalorder %s23, 3
    %p416 = por %p414, %p415
    %p417 = scmp.ne.s32.totalorder %s409, %s412
    %p418 = scmp.eq.s32.totalorder %s23, 0
    %p419 = por %p417, %p418
    %p420 = scmp.ne.s32.totalorder %s409, %s412
    %p421 = scmp.eq.s32.totalorder %s28, 3
    %p422 = por %p420, %p421
    %p423 = scmp.ne.s32.totalorder %s412, %s413
    %p424 = scmp.eq.s32.totalorder %s28, 0
    %p425 = por %p423, %p424
    %p426 = scmp.ne.s32.totalorder %s412, %s413
    %p427 = scmp.eq.s32.totalorder %s29, 3
    %p428 = por %p426, %p427
    %p430 = scmp.ne.s32.totalorder %s413, %s429
    %p431 = scmp.eq.s32.totalorder %s29, 0
    %p432 = por %p430, %p431
    %p433 = scmp.le.s32.totalorder 1, %s23
    %p434 = scmp.lt.s32.totalorder %s23, 5
    %p435 = pnand %p433, %p434
    %p436 = pneg %p435
    // Predicated region
    $region9: #{tpu_custom_call.1} parent=5 // pred_check
      _
    $region10: #{tpu_custom_call.1} parent=5 // pred_check_branch
      %438 = sbr.rel (%p435) target = $region12
    $region11: #{tpu_custom_call.1} parent=5 // pred_region
      %s439 = ssub.s32 %s23, 1
      // Predicated region
      $region13: #{tpu_custom_call.1} parent=11 // pred_check
        %p440 = pneg %p84
      $region14: #{tpu_custom_call.1} parent=11 // pred_check_branch
        %442 = sbr.rel (%p440) target = $region16
      $region15: #{tpu_custom_call.1} parent=11 // pred_region
        _
      $region16: #{tpu_custom_call.1} parent=11 // pred_fallthru
        _
      // Predicated region
      $region17: #{tpu_custom_call.1} parent=11 // pred_check
        %p443 = pneg %p105
      $region18: #{tpu_custom_call.1} parent=11 // pred_check_branch
        %445 = sbr.rel (%p443) target = $region20
      $region19: #{tpu_custom_call.1} parent=11 // pred_region
        _
      $region20: #{tpu_custom_call.1} parent=11 // pred_fallthru
        _
      // Predicated region
      $region21: #{tpu_custom_call.1} parent=11 // pred_check
        %p446 = pneg %p126
      $region22: #{tpu_custom_call.1} parent=11 // pred_check_branch
        %448 = sbr.rel (%p446) target = $region24
      $region23: #{tpu_custom_call.1} parent=11 // pred_region
        _
      $region24: #{tpu_custom_call.1} parent=11 // pred_fallthru
        _
      // Predicated region
      $region25: #{tpu_custom_call.1} parent=11 // pred_check
        %p449 = pneg %p147
      $region26: #{tpu_custom_call.1} parent=11 // pred_check_branch
        %451 = sbr.rel (%p449) target = $region28
      $region27: #{tpu_custom_call.1} parent=11 // pred_region
        _
      $region28: #{tpu_custom_call.1} parent=11 // pred_fallthru
        _
      // Predicated region
      $region29: #{tpu_custom_call.1} parent=11 // pred_check
        %p452 = pneg %p168
      $region30: #{tpu_custom_call.1} parent=11 // pred_check_branch
        %454 = sbr.rel (%p452) target = $region32
      $region31: #{tpu_custom_call.1} parent=11 // pred_region
        _
      $region32: #{tpu_custom_call.1} parent=11 // pred_fallthru
        _
      // Predicated region
      $region33: #{tpu_custom_call.1} parent=11 // pred_check
        %p455 = pneg %p189
      $region34: #{tpu_custom_call.1} parent=11 // pred_check_branch
        %457 = sbr.rel (%p455) target = $region36
      $region35: #{tpu_custom_call.1} parent=11 // pred_region
        _
      $region36: #{tpu_custom_call.1} parent=11 // pred_fallthru
        _
      // Predicated region
      $region37: #{tpu_custom_call.1} parent=11 // pred_check
        %p458 = pneg %p210
      $region38: #{tpu_custom_call.1} parent=11 // pred_check_branch
        %460 = sbr.rel (%p458) target = $region40
      $region39: #{tpu_custom_call.1} parent=11 // pred_region
        _
      $region40: #{tpu_custom_call.1} parent=11 // pred_fallthru
        _
      // Predicated region
      $region41: #{tpu_custom_call.1} parent=11 // pred_check
        %p461 = pneg %p231
      $region42: #{tpu_custom_call.1} parent=11 // pred_check_branch
        %463 = sbr.rel (%p461) target = $region44
      $region43: #{tpu_custom_call.1} parent=11 // pred_region
        _
      $region44: #{tpu_custom_call.1} parent=11 // pred_fallthru
        _
      // Predicated region
      $region45: #{tpu_custom_call.1} parent=11 // pred_check
        %p464 = pneg %p252
      $region46: #{tpu_custom_call.1} parent=11 // pred_check_branch
        %466 = sbr.rel (%p464) target = $region48
      $region47: #{tpu_custom_call.1} parent=11 // pred_region
        _
      $region48: #{tpu_custom_call.1} parent=11 // pred_fallthru
        _
      // Predicated region
      $region49: #{tpu_custom_call.1} parent=11 // pred_check
        %p467 = pneg %p273
      $region50: #{tpu_custom_call.1} parent=11 // pred_check_branch
        %469 = sbr.rel (%p467) target = $region52
      $region51: #{tpu_custom_call.1} parent=11 // pred_region
        _
      $region52: #{tpu_custom_call.1} parent=11 // pred_fallthru
        _
      // Predicated region
      $region53: #{tpu_custom_call.1} parent=11 // pred_check
        %p470 = pneg %p294
      $region54: #{tpu_custom_call.1} parent=11 // pred_check_branch
        %472 = sbr.rel (%p470) target = $region56
      $region55: #{tpu_custom_call.1} parent=11 // pred_region
        _
      $region56: #{tpu_custom_call.1} parent=11 // pred_fallthru
        _
      // Predicated region
      $region57: #{tpu_custom_call.1} parent=11 // pred_check
        %p473 = pneg %p315
      $region58: #{tpu_custom_call.1} parent=11 // pred_check_branch
        %475 = sbr.rel (%p473) target = $region60
      $region59: #{tpu_custom_call.1} parent=11 // pred_region
        _
      $region60: #{tpu_custom_call.1} parent=11 // pred_fallthru
        _
      // Predicated region
      $region61: #{tpu_custom_call.1} parent=11 // pred_check
        %p476 = pneg %p336
      $region62: #{tpu_custom_call.1} parent=11 // pred_check_branch
        %478 = sbr.rel (%p476) target = $region64
      $region63: #{tpu_custom_call.1} parent=11 // pred_region
        _
      $region64: #{tpu_custom_call.1} parent=11 // pred_fallthru
        _
      // Predicated region
      $region65: #{tpu_custom_call.1} parent=11 // pred_check
        %p479 = pneg %p357
      $region66: #{tpu_custom_call.1} parent=11 // pred_check_branch
        %481 = sbr.rel (%p479) target = $region68
      $region67: #{tpu_custom_call.1} parent=11 // pred_region
        _
      $region68: #{tpu_custom_call.1} parent=11 // pred_fallthru
        _
      // Predicated region
      $region69: #{tpu_custom_call.1} parent=11 // pred_check
        %p482 = pneg %p378
      $region70: #{tpu_custom_call.1} parent=11 // pred_check_branch
        %484 = sbr.rel (%p482) target = $region72
      $region71: #{tpu_custom_call.1} parent=11 // pred_region
        _
      $region72: #{tpu_custom_call.1} parent=11 // pred_fallthru
        _
      // Predicated region
      $region73: #{tpu_custom_call.1} parent=11 // pred_check
        %p485 = pneg %p399
      $region74: #{tpu_custom_call.1} parent=11 // pred_check_branch
        %487 = sbr.rel (%p485) target = $region76
      $region75: #{tpu_custom_call.1} parent=11 // pred_region
        _
      $region76: #{tpu_custom_call.1} parent=11 // pred_fallthru
        _
    $region12: #{tpu_custom_call.1} parent=5 // pred_fallthru
      _
    %p488 = scmp.lt.s32.totalorder %s23, 4
    // Predicated region
    $region77: #{tpu_custom_call.1} parent=5 // pred_check
      %p489 = pneg %p488
    $region78: #{tpu_custom_call.1} parent=5 // pred_check_branch
      %491 = sbr.rel (%p489) target = $region80
    $region79: #{tpu_custom_call.1} parent=5 // pred_region
      // Predicated region
      $region81: #{tpu_custom_call.1} parent=79 // pred_check
        %p492 = pneg %p57
      $region82: #{tpu_custom_call.1} parent=79 // pred_check_branch
        %494 = sbr.rel (%p492) target = $region84
      $region83: #{tpu_custom_call.1} parent=79 // pred_region
        %p495 = scmp.lt.s32.totalorder %s30, 1
        %s496 = scalar_select %p495, %s30, 1
        %p497 = scmp.lt.s32.totalorder %s31, 1
        %s498 = scalar_select %p497, %s31, 1
        %s499 = smul.addr %s496, 2
        %s500 = sadd.s32 %s498, %s499
        %s501 = smul.addr %s500, 4
        %s502 = scalar_lea.vmem %s0, %s501
      $region84: #{tpu_custom_call.1} parent=79 // pred_fallthru
        _
    $region80: #{tpu_custom_call.1} parent=5 // pred_fallthru
      _
    %p503 = scmp.le.s32.totalorder 1, %s23
    %p504 = scmp.lt.s32.totalorder %s23, 5
    %p505 = pnand %p503, %p504
    %p506 = pneg %p505
    // Predicated region
    $region85: #{tpu_custom_call.1} parent=5 // pred_check
      _
    $region86: #{tpu_custom_call.1} parent=5 // pred_check_branch
      %508 = sbr.rel (%p505) target = $region88
    $region87: #{tpu_custom_call.1} parent=5 // pred_region
      %s509 = ssub.s32 %s23, 1
      %p510 = scmp.lt.s32.totalorder %s32, 1
      %s511 = scalar_select %p510, %s32, 1
      %p512 = scmp.lt.s32.totalorder %s33, 1
      %s513 = scalar_select %p512, %s33, 1
      %s514 = smul.addr %s511, 2
      %s515 = sadd.s32 %s513, %s514
      %s516 = smul.addr %s515, 4
      %s517 = scalar_lea.vmem %s0, %s516
      %p518 = pneg %p63
      %p519 = pneg %p60
      %p520 = pneg %p84
      %p521 = pneg %p81
      %p522 = pneg %p105
      %p523 = pneg %p102
      %p524 = pneg %p126
      %p525 = pneg %p123
      %p526 = pneg %p147
      %p527 = pneg %p144
      %p528 = pneg %p168
      %p529 = pneg %p165
      %p530 = pneg %p189
      %p531 = pneg %p186
      %p532 = pneg %p210
      %p533 = pneg %p207
      %p534 = pneg %p231
      %p535 = pneg %p228
      %p536 = pneg %p252
      %p537 = pneg %p249
      %p538 = pneg %p273
      %p539 = pneg %p270
      %p540 = pneg %p294
      %p541 = pneg %p291
      %p542 = pneg %p315
      %p543 = pneg %p312
      %p544 = pneg %p336
      %p545 = pneg %p333
      %p546 = pneg %p357
      %p547 = pneg %p354
      %p548 = pneg %p378
      %p549 = pneg %p375
      %p550 = pneg %p399
      %p551 = pneg %p396
      %p552 = pneg %p425
      %p553 = pneg %p422
      %p554 = scmp.lt.s32.totalorder %s32, 1
      %s555 = scalar_select %p554, %s32, 1
      %s556 = smul.addr %s555, 2
      %s557 = smul.addr %s556, 8
      %s558 = scalar_lea.vmem %s17, %s557
      %p559 = scmp.lt.s32.totalorder %s32, 1
      %s560 = scalar_select %p559, %s32, 1
      %p561 = scmp.lt.s32.totalorder %s33, 1
      %s562 = scalar_select %p561, %s33, 1
      %s563 = smul.addr %s560, 2
      %s564 = sadd.s32 %s562, %s563
      %s565 = smul.addr %s564, 4
      %s566 = scalar_lea.vmem %s0, %s565
      %p567 = scmp.lt.s32.totalorder %s32, 1
      %s568 = scalar_select %p567, %s32, 1
      %s569 = smul.addr %s568, 2
      %s570 = smul.addr %s569, 8
      %s571 = scalar_lea.vmem %s17, %s570
      %v572 = vld [vmem:[%s566] sm:$0xf]
      %p573 = scmp.eq.s32.totalorder %s33, 0
      // Predicated region
      $region89: #{tpu_custom_call.1} parent=87 // pred_check
        %p574 = pneg %p573
      $region90: #{tpu_custom_call.1} parent=87 // pred_check_branch
        %576 = sbr.rel (%p574) target = $region92
      $region91: #{tpu_custom_call.1} parent=87 // pred_region
        %vm577 = vcmask 1044464
        %578 = vst.msk [vmem:[#allocation2] sm:$0xf] %vm577, 0.0
        %vm579 = vcmask 1048560
        %580 = vst.msk [vmem:[#allocation3] sm:$0xff] %vm579, 0.0
      $region92: #{tpu_custom_call.1} parent=87 // pred_fallthru
        _
      %581 = vst [vmem:[#allocation2 + $0x4] sm:$0xf] %v572
      %s582 = scalar_lea.vmem %s1, 16
      %v583 = vld [vmem:[%s582] sm:$0xff]
      %v584 = vld [vmem:[%s1] sm:$0xff]
      %v585 = vld [vmem:[#allocation2] sm:$0xff]
      %v587 = vcombine.high %v585, %v585
      %588 = vrot.lane.b32.xlu0 %v585, 2
      %v589 = vpop.permute.xlu0 %588
      %590 = vrot.lane.b32.xlu0 %v587, 2
      %v591 = vpop.permute.xlu0 %590
      %vm592 = vcmask 15360
      %v593 = vsel %vm592, %v589, %v591
      %vm594 = vcmask 31744
      %v596 = vsel %vm594, %v584, 0
      %vm598 = vcmask 1043456
      %v599 = vsel %vm598, %v593, 0
      %601 = vmatprep.subr.mxu0 0.0
      %602 = vmatpush1.msra.mxu0 %v599
      %603 = vmatprep.subr.mxu0 0.0
      %604 = vmatpush1.msra.mxu0 0.0
      %605 = vmatprep.subr.mxu0 0.0
      %606 = vmatpush1.msra.mxu0 0.0
      %607 = vmatprep.subr.mxu0 0.0
      %608 = vmatpush1.msra.mxu0 0.0
      %609 = vmatprep.subr.mxu0 0.0
      %610 = vmatpush1.msra.mxu0 0.0
      %611 = vmatprep.subr.mxu0 0.0
      %612 = vmatpush1.msra.mxu0 0.0
      %613 = vmatprep.subr.mxu0 0.0
      %614 = vmatpush1.msra.mxu0 0.0
      %615 = vmatprep.subr.mxu0 0.0
      %616 = vmatpush1.msra.mxu0 0.0
      %617 = vmatprep.subr.mxu0 0.0
      %618 = vmatpush1.msra.mxu0 0.0
      %619 = vmatprep.subr.mxu0 0.0
      %620 = vmatpush1.msra.mxu0 0.0
      %621 = vmatprep.subr.mxu0 0.0
      %622 = vmatpush1.msra.mxu0 0.0
      %623 = vmatprep.subr.mxu0 0.0
      %624 = vmatpush1.msra.mxu0 0.0
      %625 = vmatprep.subr.mxu0 0.0
      %626 = vmatpush1.msra.mxu0 0.0
      %627 = vmatprep.subr.mxu0 0.0
      %628 = vmatpush1.msra.mxu0 0.0
      %629 = vmatprep.subr.mxu0 0.0
      %630 = vmatpush1.msra.mxu0 0.0
      %631 = vmatprep.subr.mxu0 0.0
      %632 = vmatpush1.msra.mxu0 0.0
      %633 = vmatprep.subr.mxu0 0.0
      %634 = vmatpush1.msra.mxu0 0.0
      %635 = vmatprep.subr.mxu0 0.0
      %636 = vmatpush1.msra.mxu0 0.0
      %637 = vmatprep.subr.mxu0 0.0
      %638 = vmatpush1.msra.mxu0 0.0
      %639 = vmatprep.subr.mxu0 0.0
      %640 = vmatpush1.msra.mxu0 0.0
      %641 = vmatprep.subr.mxu0 0.0
      %642 = vmatpush1.msra.mxu0 0.0
      %643 = vmatprep.subr.mxu0 0.0
      %644 = vmatpush1.msra.mxu0 0.0
      %645 = vmatprep.subr.mxu0 0.0
      %646 = vmatpush1.msra.mxu0 0.0
      %647 = vmatprep.subr.mxu0 0.0
      %648 = vmatpush1.msra.mxu0 0.0
      %649 = vmatprep.subr.mxu0 0.0
      %650 = vmatpush1.msra.mxu0 0.0
      %651 = vmatprep.subr.mxu0 0.0
      %652 = vmatpush1.msra.mxu0 0.0
      %653 = vmatprep.subr.mxu0 0.0
      %654 = vmatpush1.msra.mxu0 0.0
      %655 = vmatprep.subr.mxu0 0.0
      %656 = vmatpush1.msra.mxu0 0.0
      %657 = vmatprep.subr.mxu0 0.0
      %658 = vmatpush1.msra.mxu0 0.0
      %659 = vmatprep.subr.mxu0 0.0
      %660 = vmatpush1.msra.mxu0 0.0
      %661 = vmatprep.subr.mxu0 0.0
      %662 = vmatpush1.msra.mxu0 0.0
      %663 = vmatprep.subr.mxu0 0.0
      %664 = vmatpush1.msra.mxu0 0.0
      %665 = vmatprep.mubr.f32.mxu0 0.0
      %666 = vmatmul.mubr.f32.gmra.mrb[0].mxu0 %v596
      %v667 = vpop.f32.mrb[0].mxu0
      %v668 = vadd.f32 0.0, %v667
      %v669 = vpop.f32.mrb[0].mxu0
      %670 = vdwg.mxu0
      %v672 = vsel %vm594, %v583, 0
      %v675 = vsel %vm598, %v572, 0
      %677 = vmatprep.subr.mxu0 0.0
      %678 = vmatpush1.msra.mxu0 %v675
      %679 = vmatprep.subr.mxu0 0.0
      %680 = vmatpush1.msra.mxu0 0.0
      %681 = vmatprep.subr.mxu0 0.0
      %682 = vmatpush1.msra.mxu0 0.0
      %683 = vmatprep.subr.mxu0 0.0
      %684 = vmatpush1.msra.mxu0 0.0
      %685 = vmatprep.subr.mxu0 0.0
      %686 = vmatpush1.msra.mxu0 0.0
      %687 = vmatprep.subr.mxu0 0.0
      %688 = vmatpush1.msra.mxu0 0.0
      %689 = vmatprep.subr.mxu0 0.0
      %690 = vmatpush1.msra.mxu0 0.0
      %691 = vmatprep.subr.mxu0 0.0
      %692 = vmatpush1.msra.mxu0 0.0
      %693 = vmatprep.subr.mxu0 0.0
      %694 = vmatpush1.msra.mxu0 0.0
      %695 = vmatprep.subr.mxu0 0.0
      %696 = vmatpush1.msra.mxu0 0.0
      %697 = vmatprep.subr.mxu0 0.0
      %698 = vmatpush1.msra.mxu0 0.0
      %699 = vmatprep.subr.mxu0 0.0
      %700 = vmatpush1.msra.mxu0 0.0
      %701 = vmatprep.subr.mxu0 0.0
      %702 = vmatpush1.msra.mxu0 0.0
      %703 = vmatprep.subr.mxu0 0.0
      %704 = vmatpush1.msra.mxu0 0.0
      %705 = vmatprep.subr.mxu0 0.0
      %706 = vmatpush1.msra.mxu0 0.0
      %707 = vmatprep.subr.mxu0 0.0
      %708 = vmatpush1.msra.mxu0 0.0
      %709 = vmatprep.subr.mxu0 0.0
      %710 = vmatpush1.msra.mxu0 0.0
      %711 = vmatprep.subr.mxu0 0.0
      %712 = vmatpush1.msra.mxu0 0.0
      %713 = vmatprep.subr.mxu0 0.0
      %714 = vmatpush1.msra.mxu0 0.0
      %715 = vmatprep.subr.mxu0 0.0
      %716 = vmatpush1.msra.mxu0 0.0
      %717 = vmatprep.subr.mxu0 0.0
      %718 = vmatpush1.msra.mxu0 0.0
      %719 = vmatprep.subr.mxu0 0.0
      %720 = vmatpush1.msra.mxu0 0.0
      %721 = vmatprep.subr.mxu0 0.0
      %722 = vmatpush1.msra.mxu0 0.0
      %723 = vmatprep.subr.mxu0 0.0
      %724 = vmatpush1.msra.mxu0 0.0
      %725 = vmatprep.subr.mxu0 0.0
      %726 = vmatpush1.msra.mxu0 0.0
      %727 = vmatprep.subr.mxu0 0.0
      %728 = vmatpush1.msra.mxu0 0.0
      %729 = vmatprep.subr.mxu0 0.0
      %730 = vmatpush1.msra.mxu0 0.0
      %731 = vmatprep.subr.mxu0 0.0
      %732 = vmatpush1.msra.mxu0 0.0
      %733 = vmatprep.subr.mxu0 0.0
      %734 = vmatpush1.msra.mxu0 0.0
      %735 = vmatprep.subr.mxu0 0.0
      %736 = vmatpush1.msra.mxu0 0.0
      %737 = vmatprep.subr.mxu0 0.0
      %738 = vmatpush1.msra.mxu0 0.0
      %739 = vmatprep.subr.mxu0 0.0
      %740 = vmatpush1.msra.mxu0 0.0
      %741 = vmatprep.mubr.f32.mxu0 0.0
      %742 = vmatmul.mubr.f32.gmra.mrb[0].mxu0 %v672
      %v743 = vpop.f32.mrb[0].mxu0
      %v744 = vadd.f32 %v668, %v743
      %v745 = vpop.f32.mrb[0].mxu0
      %746 = vdwg.mxu0
      %s747 = scalar_lea.vmem %s1, 8
      %v748 = vld [vmem:[%s747] sm:$0xff]
      %v749 = vld [vmem:[#allocation2] sm:$0xff]
      %v751 = vcombine.high %v749, %v749
      %752 = vrot.lane.b32.xlu0 %v749, 1
      %v753 = vpop.permute.xlu0 %752
      %754 = vrot.lane.b32.xlu0 %v751, 1
      %v755 = vpop.permute.xlu0 %754
      %vm756 = vcmask 7168
      %v757 = vsel %vm756, %v753, %v755
      %v759 = vsel %vm594, %v748, 0
      %v761 = vsel %vm598, %v757, 0
      %763 = vmatprep.subr.mxu0 0.0
      %764 = vmatpush1.msra.mxu0 %v761
      %765 = vmatprep.subr.mxu0 0.0
      %766 = vmatpush1.msra.mxu0 0.0
      %767 = vmatprep.subr.mxu0 0.0
      %768 = vmatpush1.msra.mxu0 0.0
      %769 = vmatprep.subr.mxu0 0.0
      %770 = vmatpush1.msra.mxu0 0.0
      %771 = vmatprep.subr.mxu0 0.0
      %772 = vmatpush1.msra.mxu0 0.0
      %773 = vmatprep.subr.mxu0 0.0
      %774 = vmatpush1.msra.mxu0 0.0
      %775 = vmatprep.subr.mxu0 0.0
      %776 = vmatpush1.msra.mxu0 0.0
      %777 = vmatprep.subr.mxu0 0.0
      %778 = vmatpush1.msra.mxu0 0.0
      %779 = vmatprep.subr.mxu0 0.0
      %780 = vmatpush1.msra.mxu0 0.0
      %781 = vmatprep.subr.mxu0 0.0
      %782 = vmatpush1.msra.mxu0 0.0
      %783 = vmatprep.subr.mxu0 0.0
      %784 = vmatpush1.msra.mxu0 0.0
      %785 = vmatprep.subr.mxu0 0.0
      %786 = vmatpush1.msra.mxu0 0.0
      %787 = vmatprep.subr.mxu0 0.0
      %788 = vmatpush1.msra.mxu0 0.0
      %789 = vmatprep.subr.mxu0 0.0
      %790 = vmatpush1.msra.mxu0 0.0
      %791 = vmatprep.subr.mxu0 0.0
      %792 = vmatpush1.msra.mxu0 0.0
      %793 = vmatprep.subr.mxu0 0.0
      %794 = vmatpush1.msra.mxu0 0.0
      %795 = vmatprep.subr.mxu0 0.0
      %796 = vmatpush1.msra.mxu0 0.0
      %797 = vmatprep.subr.mxu0 0.0
      %798 = vmatpush1.msra.mxu0 0.0
      %799 = vmatprep.subr.mxu0 0.0
      %800 = vmatpush1.msra.mxu0 0.0
      %801 = vmatprep.subr.mxu0 0.0
      %802 = vmatpush1.msra.mxu0 0.0
      %803 = vmatprep.subr.mxu0 0.0
      %804 = vmatpush1.msra.mxu0 0.0
      %805 = vmatprep.subr.mxu0 0.0
      %806 = vmatpush1.msra.mxu0 0.0
      %807 = vmatprep.subr.mxu0 0.0
      %808 = vmatpush1.msra.mxu0 0.0
      %809 = vmatprep.subr.mxu0 0.0
      %810 = vmatpush1.msra.mxu0 0.0
      %811 = vmatprep.subr.mxu0 0.0
      %812 = vmatpush1.msra.mxu0 0.0
      %813 = vmatprep.subr.mxu0 0.0
      %814 = vmatpush1.msra.mxu0 0.0
      %815 = vmatprep.subr.mxu0 0.0
      %816 = vmatpush1.msra.mxu0 0.0
      %817 = vmatprep.subr.mxu0 0.0
      %818 = vmatpush1.msra.mxu0 0.0
      %819 = vmatprep.subr.mxu0 0.0
      %820 = vmatpush1.msra.mxu0 0.0
      %821 = vmatprep.subr.mxu0 0.0
      %822 = vmatpush1.msra.mxu0 0.0
      %823 = vmatprep.subr.mxu0 0.0
      %824 = vmatpush1.msra.mxu0 0.0
      %825 = vmatprep.subr.mxu0 0.0
      %826 = vmatpush1.msra.mxu0 0.0
      %827 = vmatprep.mubr.f32.mxu0 0.0
      %828 = vmatmul.mubr.f32.gmra.mrb[0].mxu0 %v759
      %v829 = vpop.f32.mrb[0].mxu0
      %v830 = vadd.f32 0.0, %v829
      %v831 = vpop.f32.mrb[0].mxu0
      %832 = vdwg.mxu0
      %v833 = vadd.f32 %v744, %v830
      %v834 = vld [vmem:[%s2] sm:$0xff]
      %836 = vset.pattern.permute.xlu0 0
      %837 = vperm.xlu0 %836, %v834
      %v838 = vpop.permute.xlu0 %837
      %v840 = vadd.f32 %v833, %v838
      %vm841 = vcmp.ge.f32.partialorder %v840, 0.0
      %v842 = vmul.f32 %v840, 0.01
      %v843 = vsel %vm841, %v840, %v842
      %844 = vst [vmem:[#allocation3 + $0x8] sm:$0xff] %v843
      %s845 = scalar_lea.vmem %s3, 16
      %v846 = vld [vmem:[%s845] sm:$0xff]
      %v847 = vld [vmem:[%s3] sm:$0xff]
      %v848 = vld [vmem:[#allocation3] sm:$0xff]
      %v849 = vld [vmem:[#allocation3 + $0x8] sm:$0xff]
      %852 = vrot.lane.b32.xlu0 %v848, 2
      %v853 = vpop.permute.xlu0 %852
      %854 = vrot.lane.b32.xlu0 %v849, 2
      %v855 = vpop.permute.xlu0 %854
      %v856 = vsel %vm592, %v853, %v855
      %vm858 = vcmask 64512
      %v860 = vsel %vm858, %v847, 0
      %862 = vmatprep.subr.mxu0 0.0
      %863 = vmatpush1.msra.mxu0 %v856
      %864 = vmatprep.subr.mxu0 0.0
      %865 = vmatpush1.msra.mxu0 0.0
      %866 = vmatprep.subr.mxu0 0.0
      %867 = vmatpush1.msra.mxu0 0.0
      %868 = vmatprep.subr.mxu0 0.0
      %869 = vmatpush1.msra.mxu0 0.0
      %870 = vmatprep.subr.mxu0 0.0
      %871 = vmatpush1.msra.mxu0 0.0
      %872 = vmatprep.subr.mxu0 0.0
      %873 = vmatpush1.msra.mxu0 0.0
      %874 = vmatprep.subr.mxu0 0.0
      %875 = vmatpush1.msra.mxu0 0.0
      %876 = vmatprep.subr.mxu0 0.0
      %877 = vmatpush1.msra.mxu0 0.0
      %878 = vmatprep.subr.mxu0 0.0
      %879 = vmatpush1.msra.mxu0 0.0
      %880 = vmatprep.subr.mxu0 0.0
      %881 = vmatpush1.msra.mxu0 0.0
      %882 = vmatprep.subr.mxu0 0.0
      %883 = vmatpush1.msra.mxu0 0.0
      %884 = vmatprep.subr.mxu0 0.0
      %885 = vmatpush1.msra.mxu0 0.0
      %886 = vmatprep.subr.mxu0 0.0
      %887 = vmatpush1.msra.mxu0 0.0
      %888 = vmatprep.subr.mxu0 0.0
      %889 = vmatpush1.msra.mxu0 0.0
      %890 = vmatprep.subr.mxu0 0.0
      %891 = vmatpush1.msra.mxu0 0.0
      %892 = vmatprep.subr.mxu0 0.0
      %893 = vmatpush1.msra.mxu0 0.0
      %894 = vmatprep.subr.mxu0 0.0
      %895 = vmatpush1.msra.mxu0 0.0
      %896 = vmatprep.subr.mxu0 0.0
      %897 = vmatpush1.msra.mxu0 0.0
      %898 = vmatprep.subr.mxu0 0.0
      %899 = vmatpush1.msra.mxu0 0.0
      %900 = vmatprep.subr.mxu0 0.0
      %901 = vmatpush1.msra.mxu0 0.0
      %902 = vmatprep.subr.mxu0 0.0
      %903 = vmatpush1.msra.mxu0 0.0
      %904 = vmatprep.subr.mxu0 0.0
      %905 = vmatpush1.msra.mxu0 0.0
      %906 = vmatprep.subr.mxu0 0.0
      %907 = vmatpush1.msra.mxu0 0.0
      %908 = vmatprep.subr.mxu0 0.0
      %909 = vmatpush1.msra.mxu0 0.0
      %910 = vmatprep.subr.mxu0 0.0
      %911 = vmatpush1.msra.mxu0 0.0
      %912 = vmatprep.subr.mxu0 0.0
      %913 = vmatpush1.msra.mxu0 0.0
      %914 = vmatprep.subr.mxu0 0.0
      %915 = vmatpush1.msra.mxu0 0.0
      %916 = vmatprep.subr.mxu0 0.0
      %917 = vmatpush1.msra.mxu0 0.0
      %918 = vmatprep.subr.mxu0 0.0
      %919 = vmatpush1.msra.mxu0 0.0
      %920 = vmatprep.subr.mxu0 0.0
      %921 = vmatpush1.msra.mxu0 0.0
      %922 = vmatprep.subr.mxu0 0.0
      %923 = vmatpush1.msra.mxu0 0.0
      %924 = vmatprep.subr.mxu0 0.0
      %925 = vmatpush1.msra.mxu0 0.0
      %926 = vmatprep.mubr.f32.mxu0 0.0
      %927 = vmatmul.mubr.f32.gmra.mrb[0].mxu0 %v860
      %v928 = vpop.f32.mrb[0].mxu0
      %v929 = vadd.f32 0.0, %v928
      %v930 = vpop.f32.mrb[0].mxu0
      %931 = vdwg.mxu0
      %v933 = vsel %vm858, %v846, 0
      %935 = vmatprep.subr.mxu0 0.0
      %936 = vmatpush1.msra.mxu0 %v843
      %937 = vmatprep.subr.mxu0 0.0
      %938 = vmatpush1.msra.mxu0 0.0
      %939 = vmatprep.subr.mxu0 0.0
      %940 = vmatpush1.msra.mxu0 0.0
      %941 = vmatprep.subr.mxu0 0.0
      %942 = vmatpush1.msra.mxu0 0.0
      %943 = vmatprep.subr.mxu0 0.0
      %944 = vmatpush1.msra.mxu0 0.0
      %945 = vmatprep.subr.mxu0 0.0
      %946 = vmatpush1.msra.mxu0 0.0
      %947 = vmatprep.subr.mxu0 0.0
      %948 = vmatpush1.msra.mxu0 0.0
      %949 = vmatprep.subr.mxu0 0.0
      %950 = vmatpush1.msra.mxu0 0.0
      %951 = vmatprep.subr.mxu0 0.0
      %952 = vmatpush1.msra.mxu0 0.0
      %953 = vmatprep.subr.mxu0 0.0
      %954 = vmatpush1.msra.mxu0 0.0
      %955 = vmatprep.subr.mxu0 0.0
      %956 = vmatpush1.msra.mxu0 0.0
      %957 = vmatprep.subr.mxu0 0.0
      %958 = vmatpush1.msra.mxu0 0.0
      %959 = vmatprep.subr.mxu0 0.0
      %960 = vmatpush1.msra.mxu0 0.0
      %961 = vmatprep.subr.mxu0 0.0
      %962 = vmatpush1.msra.mxu0 0.0
      %963 = vmatprep.subr.mxu0 0.0
      %964 = vmatpush1.msra.mxu0 0.0
      %965 = vmatprep.subr.mxu0 0.0
      %966 = vmatpush1.msra.mxu0 0.0
      %967 = vmatprep.subr.mxu0 0.0
      %968 = vmatpush1.msra.mxu0 0.0
      %969 = vmatprep.subr.mxu0 0.0
      %970 = vmatpush1.msra.mxu0 0.0
      %971 = vmatprep.subr.mxu0 0.0
      %972 = vmatpush1.msra.mxu0 0.0
      %973 = vmatprep.subr.mxu0 0.0
      %974 = vmatpush1.msra.mxu0 0.0
      %975 = vmatprep.subr.mxu0 0.0
      %976 = vmatpush1.msra.mxu0 0.0
      %977 = vmatprep.subr.mxu0 0.0
      %978 = vmatpush1.msra.mxu0 0.0
      %979 = vmatprep.subr.mxu0 0.0
      %980 = vmatpush1.msra.mxu0 0.0
      %981 = vmatprep.subr.mxu0 0.0
      %982 = vmatpush1.msra.mxu0 0.0
      %983 = vmatprep.subr.mxu0 0.0
      %984 = vmatpush1.msra.mxu0 0.0
      %985 = vmatprep.subr.mxu0 0.0
      %986 = vmatpush1.msra.mxu0 0.0
      %987 = vmatprep.subr.mxu0 0.0
      %988 = vmatpush1.msra.mxu0 0.0
      %989 = vmatprep.subr.mxu0 0.0
      %990 = vmatpush1.msra.mxu0 0.0
      %991 = vmatprep.subr.mxu0 0.0
      %992 = vmatpush1.msra.mxu0 0.0
      %993 = vmatprep.subr.mxu0 0.0
      %994 = vmatpush1.msra.mxu0 0.0
      %995 = vmatprep.subr.mxu0 0.0
      %996 = vmatpush1.msra.mxu0 0.0
      %997 = vmatprep.subr.mxu0 0.0
      %998 = vmatpush1.msra.mxu0 0.0
      %999 = vmatprep.mubr.f32.mxu0 0.0
      %1000 = vmatmul.mubr.f32.gmra.mrb[0].mxu0 %v933
      %v1001 = vpop.f32.mrb[0].mxu0
      %v1002 = vadd.f32 %v929, %v1001
      %v1003 = vpop.f32.mrb[0].mxu0
      %1004 = vdwg.mxu0
      %s1005 = scalar_lea.vmem %s3, 8
      %v1006 = vld [vmem:[%s1005] sm:$0xff]
      %1007 = vrot.lane.b32.xlu0 %v848, 1
      %v1008 = vpop.permute.xlu0 %1007
      %1009 = vrot.lane.b32.xlu0 %v849, 1
      %v1010 = vpop.permute.xlu0 %1009
      %v1011 = vsel %vm756, %v1008, %v1010
      %v1014 = vsel %vm858, %v1006, 0
      %1016 = vmatprep.subr.mxu0 0.0
      %1017 = vmatpush1.msra.mxu0 %v1011
      %1018 = vmatprep.subr.mxu0 0.0
      %1019 = vmatpush1.msra.mxu0 0.0
      %1020 = vmatprep.subr.mxu0 0.0
      %1021 = vmatpush1.msra.mxu0 0.0
      %1022 = vmatprep.subr.mxu0 0.0
      %1023 = vmatpush1.msra.mxu0 0.0
      %1024 = vmatprep.subr.mxu0 0.0
      %1025 = vmatpush1.msra.mxu0 0.0
      %1026 = vmatprep.subr.mxu0 0.0
      %1027 = vmatpush1.msra.mxu0 0.0
      %1028 = vmatprep.subr.mxu0 0.0
      %1029 = vmatpush1.msra.mxu0 0.0
      %1030 = vmatprep.subr.mxu0 0.0
      %1031 = vmatpush1.msra.mxu0 0.0
      %1032 = vmatprep.subr.mxu0 0.0
      %1033 = vmatpush1.msra.mxu0 0.0
      %1034 = vmatprep.subr.mxu0 0.0
      %1035 = vmatpush1.msra.mxu0 0.0
      %1036 = vmatprep.subr.mxu0 0.0
      %1037 = vmatpush1.msra.mxu0 0.0
      %1038 = vmatprep.subr.mxu0 0.0
      %1039 = vmatpush1.msra.mxu0 0.0
      %1040 = vmatprep.subr.mxu0 0.0
      %1041 = vmatpush1.msra.mxu0 0.0
      %1042 = vmatprep.subr.mxu0 0.0
      %1043 = vmatpush1.msra.mxu0 0.0
      %1044 = vmatprep.subr.mxu0 0.0
      %1045 = vmatpush1.msra.mxu0 0.0
      %1046 = vmatprep.subr.mxu0 0.0
      %1047 = vmatpush1.msra.mxu0 0.0
      %1048 = vmatprep.subr.mxu0 0.0
      %1049 = vmatpush1.msra.mxu0 0.0
      %1050 = vmatprep.subr.mxu0 0.0
      %1051 = vmatpush1.msra.mxu0 0.0
      %1052 = vmatprep.subr.mxu0 0.0
      %1053 = vmatpush1.msra.mxu0 0.0
      %1054 = vmatprep.subr.mxu0 0.0
      %1055 = vmatpush1.msra.mxu0 0.0
      %1056 = vmatprep.subr.mxu0 0.0
      %1057 = vmatpush1.msra.mxu0 0.0
      %1058 = vmatprep.subr.mxu0 0.0
      %1059 = vmatpush1.msra.mxu0 0.0
      %1060 = vmatprep.subr.mxu0 0.0
      %1061 = vmatpush1.msra.mxu0 0.0
      %1062 = vmatprep.subr.mxu0 0.0
      %1063 = vmatpush1.msra.mxu0 0.0
      %1064 = vmatprep.subr.mxu0 0.0
      %1065 = vmatpush1.msra.mxu0 0.0
      %1066 = vmatprep.subr.mxu0 0.0
      %1067 = vmatpush1.msra.mxu0 0.0
      %1068 = vmatprep.subr.mxu0 0.0
      %1069 = vmatpush1.msra.mxu0 0.0
      %1070 = vmatprep.subr.mxu0 0.0
      %1071 = vmatpush1.msra.mxu0 0.0
      %1072 = vmatprep.subr.mxu0 0.0
      %1073 = vmatpush1.msra.mxu0 0.0
      %1074 = vmatprep.subr.mxu0 0.0
      %1075 = vmatpush1.msra.mxu0 0.0
      %1076 = vmatprep.subr.mxu0 0.0
      %1077 = vmatpush1.msra.mxu0 0.0
      %1078 = vmatprep.subr.mxu0 0.0
      %1079 = vmatpush1.msra.mxu0 0.0
      %1080 = vmatprep.mubr.f32.mxu0 0.0
      %1081 = vmatmul.mubr.f32.gmra.mrb[0].mxu0 %v1014
      %v1082 = vpop.f32.mrb[0].mxu0
      %v1083 = vadd.f32 0.0, %v1082
      %v1084 = vpop.f32.mrb[0].mxu0
      %1085 = vdwg.mxu0
      %v1086 = vadd.f32 %v1002, %v1083
      %v1087 = vld [vmem:[%s4] sm:$0xff]
      %1089 = vset.pattern.permute.xlu0 0
      %1090 = vperm.xlu0 %1089, %v1087
      %v1091 = vpop.permute.xlu0 %1090
      %v1093 = vadd.f32 %v1086, %v1091
      %vm1094 = vcmp.ge.f32.partialorder %v1093, 0.0
      %v1095 = vmul.f32 %v1093, 0.01
      %v1096 = vsel %vm1094, %v1093, %v1095
      %v1097 = vld [vmem:[%s5] sm:$0xff]
      %v1098 = vld [vmem:[%s6] sm:$0xff]
      %1100 = vset.pattern.permute.xlu0 0
      %1101 = vperm.xlu0 %1100, %v1098
      %v1102 = vpop.permute.xlu0 %1101
      %v1105 = vsel %vm594, %v1097, 0
      %1107 = vmatprep.subr.mxu0 0.0
      %1108 = vmatpush1.msra.mxu0 %v675
      %1109 = vmatprep.subr.mxu0 0.0
      %1110 = vmatpush1.msra.mxu0 0.0
      %1111 = vmatprep.subr.mxu0 0.0
      %1112 = vmatpush1.msra.mxu0 0.0
      %1113 = vmatprep.subr.mxu0 0.0
      %1114 = vmatpush1.msra.mxu0 0.0
      %1115 = vmatprep.subr.mxu0 0.0
      %1116 = vmatpush1.msra.mxu0 0.0
      %1117 = vmatprep.subr.mxu0 0.0
      %1118 = vmatpush1.msra.mxu0 0.0
      %1119 = vmatprep.subr.mxu0 0.0
      %1120 = vmatpush1.msra.mxu0 0.0
      %1121 = vmatprep.subr.mxu0 0.0
      %1122 = vmatpush1.msra.mxu0 0.0
      %1123 = vmatprep.subr.mxu0 0.0
      %1124 = vmatpush1.msra.mxu0 0.0
      %1125 = vmatprep.subr.mxu0 0.0
      %1126 = vmatpush1.msra.mxu0 0.0
      %1127 = vmatprep.subr.mxu0 0.0
      %1128 = vmatpush1.msra.mxu0 0.0
      %1129 = vmatprep.subr.mxu0 0.0
      %1130 = vmatpush1.msra.mxu0 0.0
      %1131 = vmatprep.subr.mxu0 0.0
      %1132 = vmatpush1.msra.mxu0 0.0
      %1133 = vmatprep.subr.mxu0 0.0
      %1134 = vmatpush1.msra.mxu0 0.0
      %1135 = vmatprep.subr.mxu0 0.0
      %1136 = vmatpush1.msra.mxu0 0.0
      %1137 = vmatprep.subr.mxu0 0.0
      %1138 = vmatpush1.msra.mxu0 0.0
      %1139 = vmatprep.subr.mxu0 0.0
      %1140 = vmatpush1.msra.mxu0 0.0
      %1141 = vmatprep.subr.mxu0 0.0
      %1142 = vmatpush1.msra.mxu0 0.0
      %1143 = vmatprep.subr.mxu0 0.0
      %1144 = vmatpush1.msra.mxu0 0.0
      %1145 = vmatprep.subr.mxu0 0.0
      %1146 = vmatpush1.msra.mxu0 0.0
      %1147 = vmatprep.subr.mxu0 0.0
      %1148 = vmatpush1.msra.mxu0 0.0
      %1149 = vmatprep.subr.mxu0 0.0
      %1150 = vmatpush1.msra.mxu0 0.0
      %1151 = vmatprep.subr.mxu0 0.0
      %1152 = vmatpush1.msra.mxu0 0.0
      %1153 = vmatprep.subr.mxu0 0.0
      %1154 = vmatpush1.msra.mxu0 0.0
      %1155 = vmatprep.subr.mxu0 0.0
      %1156 = vmatpush1.msra.mxu0 0.0
      %1157 = vmatprep.subr.mxu0 0.0
      %1158 = vmatpush1.msra.mxu0 0.0
      %1159 = vmatprep.subr.mxu0 0.0
      %1160 = vmatpush1.msra.mxu0 0.0
      %1161 = vmatprep.subr.mxu0 0.0
      %1162 = vmatpush1.msra.mxu0 0.0
      %1163 = vmatprep.subr.mxu0 0.0
      %1164 = vmatpush1.msra.mxu0 0.0
      %1165 = vmatprep.subr.mxu0 0.0
      %1166 = vmatpush1.msra.mxu0 0.0
      %1167 = vmatprep.subr.mxu0 0.0
      %1168 = vmatpush1.msra.mxu0 0.0
      %1169 = vmatprep.subr.mxu0 0.0
      %1170 = vmatpush1.msra.mxu0 0.0
      %1171 = vmatprep.mubr.f32.mxu0 0.0
      %1172 = vmatmul.mubr.f32.gmra.mrb[0].mxu0 %v1105
      %v1173 = vpop.f32.mrb[0].mxu0
      %v1174 = vadd.f32 %v1102, %v1173
      %v1175 = vpop.f32.mrb[0].mxu0
      %1176 = vdwg.mxu0
      %v1177 = vadd.f32 %v1096, %v1174
      %v1178 = vld [vmem:[#allocation2 + $0x4] sm:$0xf]
      %vm1179 = vcmask 1044464
      %1180 = vst.msk [vmem:[#allocation2] sm:$0xf] %vm1179, %v1178
      %v1181 = vld [vmem:[#allocation3 + $0x8] sm:$0xff]
      %vm1182 = vcmask 1048560
      %1183 = vst.msk [vmem:[#allocation3] sm:$0xff] %vm1182, %v1181
      // Predicated region
      $region93: #{tpu_custom_call.1} parent=87 // pred_check
        %p1184 = pneg %p573
      $region94: #{tpu_custom_call.1} parent=87 // pred_check_branch
        %1186 = sbr.rel (%p1184) target = $region96
      $region95: #{tpu_custom_call.1} parent=87 // pred_region
        %vm1187 = vcmask 1048544
        %1188 = vst.msk [vmem:[#allocation4] sm:$0xff] %vm1187, 0.0
        %1189 = vst.msk [vmem:[#allocation5] sm:$0xff] %vm1187, 0.0
      $region96: #{tpu_custom_call.1} parent=87 // pred_fallthru
        _
      %1190 = vst [vmem:[#allocation4 + $0x8] sm:$0xff] %v1177
      %s1191 = scalar_lea.vmem %s7, 16
      %v1192 = vld [vmem:[%s1191] sm:$0xff]
      %v1193 = vld [vmem:[%s7] sm:$0xff]
      %v1194 = vld [vmem:[#allocation4] sm:$0xff]
      %v1195 = vld [vmem:[#allocation4 + $0x8] sm:$0xff]
      %1198 = vrot.lane.b32.xlu0 %v1194, 4
      %v1199 = vpop.permute.xlu0 %1198
      %1200 = vrot.lane.b32.xlu0 %v1195, 4
      %v1201 = vpop.permute.xlu0 %1200
      %v1202 = vsel %vm594, %v1199, %v1201
      %v1205 = vsel %vm858, %v1193, 0
      %1207 = vmatprep.subr.mxu0 0.0
      %1208 = vmatpush1.msra.mxu0 %v1202
      %1209 = vmatprep.subr.mxu0 0.0
      %1210 = vmatpush1.msra.mxu0 0.0
      %1211 = vmatprep.subr.mxu0 0.0
      %1212 = vmatpush1.msra.mxu0 0.0
      %1213 = vmatprep.subr.mxu0 0.0
      %1214 = vmatpush1.msra.mxu0 0.0
      %1215 = vmatprep.subr.mxu0 0.0
      %1216 = vmatpush1.msra.mxu0 0.0
      %1217 = vmatprep.subr.mxu0 0.0
      %1218 = vmatpush1.msra.mxu0 0.0
      %1219 = vmatprep.subr.mxu0 0.0
      %1220 = vmatpush1.msra.mxu0 0.0
      %1221 = vmatprep.subr.mxu0 0.0
      %1222 = vmatpush1.msra.mxu0 0.0
      %1223 = vmatprep.subr.mxu0 0.0
      %1224 = vmatpush1.msra.mxu0 0.0
      %1225 = vmatprep.subr.mxu0 0.0
      %1226 = vmatpush1.msra.mxu0 0.0
      %1227 = vmatprep.subr.mxu0 0.0
      %1228 = vmatpush1.msra.mxu0 0.0
      %1229 = vmatprep.subr.mxu0 0.0
      %1230 = vmatpush1.msra.mxu0 0.0
      %1231 = vmatprep.subr.mxu0 0.0
      %1232 = vmatpush1.msra.mxu0 0.0
      %1233 = vmatprep.subr.mxu0 0.0
      %1234 = vmatpush1.msra.mxu0 0.0
      %1235 = vmatprep.subr.mxu0 0.0
      %1236 = vmatpush1.msra.mxu0 0.0
      %1237 = vmatprep.subr.mxu0 0.0
      %1238 = vmatpush1.msra.mxu0 0.0
      %1239 = vmatprep.subr.mxu0 0.0
      %1240 = vmatpush1.msra.mxu0 0.0
      %1241 = vmatprep.subr.mxu0 0.0
      %1242 = vmatpush1.msra.mxu0 0.0
      %1243 = vmatprep.subr.mxu0 0.0
      %1244 = vmatpush1.msra.mxu0 0.0
      %1245 = vmatprep.subr.mxu0 0.0
      %1246 = vmatpush1.msra.mxu0 0.0
      %1247 = vmatprep.subr.mxu0 0.0
      %1248 = vmatpush1.msra.mxu0 0.0
      %1249 = vmatprep.subr.mxu0 0.0
      %1250 = vmatpush1.msra.mxu0 0.0
      %1251 = vmatprep.subr.mxu0 0.0
      %1252 = vmatpush1.msra.mxu0 0.0
      %1253 = vmatprep.subr.mxu0 0.0
      %1254 = vmatpush1.msra.mxu0 0.0
      %1255 = vmatprep.subr.mxu0 0.0
      %1256 = vmatpush1.msra.mxu0 0.0
      %1257 = vmatprep.subr.mxu0 0.0
      %1258 = vmatpush1.msra.mxu0 0.0
      %1259 = vmatprep.subr.mxu0 0.0
      %1260 = vmatpush1.msra.mxu0 0.0
      %1261 = vmatprep.subr.mxu0 0.0
      %1262 = vmatpush1.msra.mxu0 0.0
      %1263 = vmatprep.subr.mxu0 0.0
      %1264 = vmatpush1.msra.mxu0 0.0
      %1265 = vmatprep.subr.mxu0 0.0
      %1266 = vmatpush1.msra.mxu0 0.0
      %1267 = vmatprep.subr.mxu0 0.0
      %1268 = vmatpush1.msra.mxu0 0.0
      %1269 = vmatprep.subr.mxu0 0.0
      %1270 = vmatpush1.msra.mxu0 0.0
      %1271 = vmatprep.mubr.f32.mxu0 0.0
      %1272 = vmatmul.mubr.f32.gmra.mrb[0].mxu0 %v1205
      %v1273 = vpop.f32.mrb[0].mxu0
      %v1274 = vadd.f32 0.0, %v1273
      %v1275 = vpop.f32.mrb[0].mxu0
      %1276 = vdwg.mxu0
      %v1278 = vsel %vm858, %v1192, 0
      %1280 = vmatprep.subr.mxu0 0.0
      %1281 = vmatpush1.msra.mxu0 %v1177
      %1282 = vmatprep.subr.mxu0 0.0
      %1283 = vmatpush1.msra.mxu0 0.0
      %1284 = vmatprep.subr.mxu0 0.0
      %1285 = vmatpush1.msra.mxu0 0.0
      %1286 = vmatprep.subr.mxu0 0.0
      %1287 = vmatpush1.msra.mxu0 0.0
      %1288 = vmatprep.subr.mxu0 0.0
      %1289 = vmatpush1.msra.mxu0 0.0
      %1290 = vmatprep.subr.mxu0 0.0
      %1291 = vmatpush1.msra.mxu0 0.0
      %1292 = vmatprep.subr.mxu0 0.0
      %1293 = vmatpush1.msra.mxu0 0.0
      %1294 = vmatprep.subr.mxu0 0.0
      %1295 = vmatpush1.msra.mxu0 0.0
      %1296 = vmatprep.subr.mxu0 0.0
      %1297 = vmatpush1.msra.mxu0 0.0
      %1298 = vmatprep.subr.mxu0 0.0
      %1299 = vmatpush1.msra.mxu0 0.0
      %1300 = vmatprep.subr.mxu0 0.0
      %1301 = vmatpush1.msra.mxu0 0.0
      %1302 = vmatprep.subr.mxu0 0.0
      %1303 = vmatpush1.msra.mxu0 0.0
      %1304 = vmatprep.subr.mxu0 0.0
      %1305 = vmatpush1.msra.mxu0 0.0
      %1306 = vmatprep.subr.mxu0 0.0
      %1307 = vmatpush1.msra.mxu0 0.0
      %1308 = vmatprep.subr.mxu0 0.0
      %1309 = vmatpush1.msra.mxu0 0.0
      %1310 = vmatprep.subr.mxu0 0.0
      %1311 = vmatpush1.msra.mxu0 0.0
      %1312 = vmatprep.subr.mxu0 0.0
      %1313 = vmatpush1.msra.mxu0 0.0
      %1314 = vmatprep.subr.mxu0 0.0
      %1315 = vmatpush1.msra.mxu0 0.0
      %1316 = vmatprep.subr.mxu0 0.0
      %1317 = vmatpush1.msra.mxu0 0.0
      %1318 = vmatprep.subr.mxu0 0.0
      %1319 = vmatpush1.msra.mxu0 0.0
      %1320 = vmatprep.subr.mxu0 0.0
      %1321 = vmatpush1.msra.mxu0 0.0
      %1322 = vmatprep.subr.mxu0 0.0
      %1323 = vmatpush1.msra.mxu0 0.0
      %1324 = vmatprep.subr.mxu0 0.0
      %1325 = vmatpush1.msra.mxu0 0.0
      %1326 = vmatprep.subr.mxu0 0.0
      %1327 = vmatpush1.msra.mxu0 0.0
      %1328 = vmatprep.subr.mxu0 0.0
      %1329 = vmatpush1.msra.mxu0 0.0
      %1330 = vmatprep.subr.mxu0 0.0
      %1331 = vmatpush1.msra.mxu0 0.0
      %1332 = vmatprep.subr.mxu0 0.0
      %1333 = vmatpush1.msra.mxu0 0.0
      %1334 = vmatprep.subr.mxu0 0.0
      %1335 = vmatpush1.msra.mxu0 0.0
      %1336 = vmatprep.subr.mxu0 0.0
      %1337 = vmatpush1.msra.mxu0 0.0
      %1338 = vmatprep.subr.mxu0 0.0
      %1339 = vmatpush1.msra.mxu0 0.0
      %1340 = vmatprep.subr.mxu0 0.0
      %1341 = vmatpush1.msra.mxu0 0.0
      %1342 = vmatprep.subr.mxu0 0.0
      %1343 = vmatpush1.msra.mxu0 0.0
      %1344 = vmatprep.mubr.f32.mxu0 0.0
      %1345 = vmatmul.mubr.f32.gmra.mrb[0].mxu0 %v1278
      %v1346 = vpop.f32.mrb[0].mxu0
      %v1347 = vadd.f32 %v1274, %v1346
      %v1348 = vpop.f32.mrb[0].mxu0
      %1349 = vdwg.mxu0
      %s1350 = scalar_lea.vmem %s7, 8
      %v1351 = vld [vmem:[%s1350] sm:$0xff]
      %1352 = vrot.lane.b32.xlu0 %v1194, 2
      %v1353 = vpop.permute.xlu0 %1352
      %1354 = vrot.lane.b32.xlu0 %v1195, 2
      %v1355 = vpop.permute.xlu0 %1354
      %v1356 = vsel %vm592, %v1353, %v1355
      %v1359 = vsel %vm858, %v1351, 0
      %1361 = vmatprep.subr.mxu0 0.0
      %1362 = vmatpush1.msra.mxu0 %v1356
      %1363 = vmatprep.subr.mxu0 0.0
      %1364 = vmatpush1.msra.mxu0 0.0
      %1365 = vmatprep.subr.mxu0 0.0
      %1366 = vmatpush1.msra.mxu0 0.0
      %1367 = vmatprep.subr.mxu0 0.0
      %1368 = vmatpush1.msra.mxu0 0.0
      %1369 = vmatprep.subr.mxu0 0.0
      %1370 = vmatpush1.msra.mxu0 0.0
      %1371 = vmatprep.subr.mxu0 0.0
      %1372 = vmatpush1.msra.mxu0 0.0
      %1373 = vmatprep.subr.mxu0 0.0
      %1374 = vmatpush1.msra.mxu0 0.0
      %1375 = vmatprep.subr.mxu0 0.0
      %1376 = vmatpush1.msra.mxu0 0.0
      %1377 = vmatprep.subr.mxu0 0.0
      %1378 = vmatpush1.msra.mxu0 0.0
      %1379 = vmatprep.subr.mxu0 0.0
      %1380 = vmatpush1.msra.mxu0 0.0
      %1381 = vmatprep.subr.mxu0 0.0
      %1382 = vmatpush1.msra.mxu0 0.0
      %1383 = vmatprep.subr.mxu0 0.0
      %1384 = vmatpush1.msra.mxu0 0.0
      %1385 = vmatprep.subr.mxu0 0.0
      %1386 = vmatpush1.msra.mxu0 0.0
      %1387 = vmatprep.subr.mxu0 0.0
      %1388 = vmatpush1.msra.mxu0 0.0
      %1389 = vmatprep.subr.mxu0 0.0
      %1390 = vmatpush1.msra.mxu0 0.0
      %1391 = vmatprep.subr.mxu0 0.0
      %1392 = vmatpush1.msra.mxu0 0.0
      %1393 = vmatprep.subr.mxu0 0.0
      %1394 = vmatpush1.msra.mxu0 0.0
      %1395 = vmatprep.subr.mxu0 0.0
      %1396 = vmatpush1.msra.mxu0 0.0
      %1397 = vmatprep.subr.mxu0 0.0
      %1398 = vmatpush1.msra.mxu0 0.0
      %1399 = vmatprep.subr.mxu0 0.0
      %1400 = vmatpush1.msra.mxu0 0.0
      %1401 = vmatprep.subr.mxu0 0.0
      %1402 = vmatpush1.msra.mxu0 0.0
      %1403 = vmatprep.subr.mxu0 0.0
      %1404 = vmatpush1.msra.mxu0 0.0
      %1405 = vmatprep.subr.mxu0 0.0
      %1406 = vmatpush1.msra.mxu0 0.0
      %1407 = vmatprep.subr.mxu0 0.0
      %1408 = vmatpush1.msra.mxu0 0.0
      %1409 = vmatprep.subr.mxu0 0.0
      %1410 = vmatpush1.msra.mxu0 0.0
      %1411 = vmatprep.subr.mxu0 0.0
      %1412 = vmatpush1.msra.mxu0 0.0
      %1413 = vmatprep.subr.mxu0 0.0
      %1414 = vmatpush1.msra.mxu0 0.0
      %1415 = vmatprep.subr.mxu0 0.0
      %1416 = vmatpush1.msra.mxu0 0.0
      %1417 = vmatprep.subr.mxu0 0.0
      %1418 = vmatpush1.msra.mxu0 0.0
      %1419 = vmatprep.subr.mxu0 0.0
      %1420 = vmatpush1.msra.mxu0 0.0
      %1421 = vmatprep.subr.mxu0 0.0
      %1422 = vmatpush1.msra.mxu0 0.0
      %1423 = vmatprep.subr.mxu0 0.0
      %1424 = vmatpush1.msra.mxu0 0.0
      %1425 = vmatprep.mubr.f32.mxu0 0.0
      %1426 = vmatmul.mubr.f32.gmra.mrb[0].mxu0 %v1359
      %v1427 = vpop.f32.mrb[0].mxu0
      %v1428 = vadd.f32 0.0, %v1427
      %v1429 = vpop.f32.mrb[0].mxu0
      %1430 = vdwg.mxu0
      %v1431 = vadd.f32 %v1347, %v1428
      %v1432 = vld [vmem:[%s8] sm:$0xff]
      %1434 = vset.pattern.permute.xlu0 0
      %1435 = vperm.xlu0 %1434, %v1432
      %v1436 = vpop.permute.xlu0 %1435
      %v1438 = vadd.f32 %v1431, %v1436
      %vm1439 = vcmp.ge.f32.partialorder %v1438, 0.0
      %v1440 = vmul.f32 %v1438, 0.01
      %v1441 = vsel %vm1439, %v1438, %v1440
      %1442 = vst [vmem:[#allocation5 + $0x8] sm:$0xff] %v1441
      %s1443 = scalar_lea.vmem %s9, 16
      %v1444 = vld [vmem:[%s1443] sm:$0xff]
      %v1445 = vld [vmem:[%s9] sm:$0xff]
      %v1446 = vld [vmem:[#allocation5] sm:$0xff]
      %v1447 = vld [vmem:[#allocation5 + $0x8] sm:$0xff]
      %1450 = vrot.lane.b32.xlu0 %v1446, 4
      %v1451 = vpop.permute.xlu0 %1450
      %1452 = vrot.lane.b32.xlu0 %v1447, 4
      %v1453 = vpop.permute.xlu0 %1452
      %v1454 = vsel %vm594, %v1451, %v1453
      %v1457 = vsel %vm858, %v1445, 0
      %1459 = vmatprep.subr.mxu0 0.0
      %1460 = vmatpush1.msra.mxu0 %v1454
      %1461 = vmatprep.subr.mxu0 0.0
      %1462 = vmatpush1.msra.mxu0 0.0
      %1463 = vmatprep.subr.mxu0 0.0
      %1464 = vmatpush1.msra.mxu0 0.0
      %1465 = vmatprep.subr.mxu0 0.0
      %1466 = vmatpush1.msra.mxu0 0.0
      %1467 = vmatprep.subr.mxu0 0.0
      %1468 = vmatpush1.msra.mxu0 0.0
      %1469 = vmatprep.subr.mxu0 0.0
      %1470 = vmatpush1.msra.mxu0 0.0
      %1471 = vmatprep.subr.mxu0 0.0
      %1472 = vmatpush1.msra.mxu0 0.0
      %1473 = vmatprep.subr.mxu0 0.0
      %1474 = vmatpush1.msra.mxu0 0.0
      %1475 = vmatprep.subr.mxu0 0.0
      %1476 = vmatpush1.msra.mxu0 0.0
      %1477 = vmatprep.subr.mxu0 0.0
      %1478 = vmatpush1.msra.mxu0 0.0
      %1479 = vmatprep.subr.mxu0 0.0
      %1480 = vmatpush1.msra.mxu0 0.0
      %1481 = vmatprep.subr.mxu0 0.0
      %1482 = vmatpush1.msra.mxu0 0.0
      %1483 = vmatprep.subr.mxu0 0.0
      %1484 = vmatpush1.msra.mxu0 0.0
      %1485 = vmatprep.subr.mxu0 0.0
      %1486 = vmatpush1.msra.mxu0 0.0
      %1487 = vmatprep.subr.mxu0 0.0
      %1488 = vmatpush1.msra.mxu0 0.0
      %1489 = vmatprep.subr.mxu0 0.0
      %1490 = vmatpush1.msra.mxu0 0.0
      %1491 = vmatprep.subr.mxu0 0.0
      %1492 = vmatpush1.msra.mxu0 0.0
      %1493 = vmatprep.subr.mxu0 0.0
      %1494 = vmatpush1.msra.mxu0 0.0
      %1495 = vmatprep.subr.mxu0 0.0
      %1496 = vmatpush1.msra.mxu0 0.0
      %1497 = vmatprep.subr.mxu0 0.0
      %1498 = vmatpush1.msra.mxu0 0.0
      %1499 = vmatprep.subr.mxu0 0.0
      %1500 = vmatpush1.msra.mxu0 0.0
      %1501 = vmatprep.subr.mxu0 0.0
      %1502 = vmatpush1.msra.mxu0 0.0
      %1503 = vmatprep.subr.mxu0 0.0
      %1504 = vmatpush1.msra.mxu0 0.0
      %1505 = vmatprep.subr.mxu0 0.0
      %1506 = vmatpush1.msra.mxu0 0.0
      %1507 = vmatprep.subr.mxu0 0.0
      %1508 = vmatpush1.msra.mxu0 0.0
      %1509 = vmatprep.subr.mxu0 0.0
      %1510 = vmatpush1.msra.mxu0 0.0
      %1511 = vmatprep.subr.mxu0 0.0
      %1512 = vmatpush1.msra.mxu0 0.0
      %1513 = vmatprep.subr.mxu0 0.0
      %1514 = vmatpush1.msra.mxu0 0.0
      %1515 = vmatprep.subr.mxu0 0.0
      %1516 = vmatpush1.msra.mxu0 0.0
      %1517 = vmatprep.subr.mxu0 0.0
      %1518 = vmatpush1.msra.mxu0 0.0
      %1519 = vmatprep.subr.mxu0 0.0
      %1520 = vmatpush1.msra.mxu0 0.0
      %1521 = vmatprep.subr.mxu0 0.0
      %1522 = vmatpush1.msra.mxu0 0.0
      %1523 = vmatprep.mubr.f32.mxu0 0.0
      %1524 = vmatmul.mubr.f32.gmra.mrb[0].mxu0 %v1457
      %v1525 = vpop.f32.mrb[0].mxu0
      %v1526 = vadd.f32 0.0, %v1525
      %v1527 = vpop.f32.mrb[0].mxu0
      %1528 = vdwg.mxu0
      %v1530 = vsel %vm858, %v1444, 0
      %1532 = vmatprep.subr.mxu0 0.0
      %1533 = vmatpush1.msra.mxu0 %v1441
      %1534 = vmatprep.subr.mxu0 0.0
      %1535 = vmatpush1.msra.mxu0 0.0
      %1536 = vmatprep.subr.mxu0 0.0
      %1537 = vmatpush1.msra.mxu0 0.0
      %1538 = vmatprep.subr.mxu0 0.0
      %1539 = vmatpush1.msra.mxu0 0.0
      %1540 = vmatprep.subr.mxu0 0.0
      %1541 = vmatpush1.msra.mxu0 0.0
      %1542 = vmatprep.subr.mxu0 0.0
      %1543 = vmatpush1.msra.mxu0 0.0
      %1544 = vmatprep.subr.mxu0 0.0
      %1545 = vmatpush1.msra.mxu0 0.0
      %1546 = vmatprep.subr.mxu0 0.0
      %1547 = vmatpush1.msra.mxu0 0.0
      %1548 = vmatprep.subr.mxu0 0.0
      %1549 = vmatpush1.msra.mxu0 0.0
      %1550 = vmatprep.subr.mxu0 0.0
      %1551 = vmatpush1.msra.mxu0 0.0
      %1552 = vmatprep.subr.mxu0 0.0
      %1553 = vmatpush1.msra.mxu0 0.0
      %1554 = vmatprep.subr.mxu0 0.0
      %1555 = vmatpush1.msra.mxu0 0.0
      %1556 = vmatprep.subr.mxu0 0.0
      %1557 = vmatpush1.msra.mxu0 0.0
      %1558 = vmatprep.subr.mxu0 0.0
      %1559 = vmatpush1.msra.mxu0 0.0
      %1560 = vmatprep.subr.mxu0 0.0
      %1561 = vmatpush1.msra.mxu0 0.0
      %1562 = vmatprep.subr.mxu0 0.0
      %1563 = vmatpush1.msra.mxu0 0.0
      %1564 = vmatprep.subr.mxu0 0.0
      %1565 = vmatpush1.msra.mxu0 0.0
      %1566 = vmatprep.subr.mxu0 0.0
      %1567 = vmatpush1.msra.mxu0 0.0
      %1568 = vmatprep.subr.mxu0 0.0
      %1569 = vmatpush1.msra.mxu0 0.0
      %1570 = vmatprep.subr.mxu0 0.0
      %1571 = vmatpush1.msra.mxu0 0.0
      %1572 = vmatprep.subr.mxu0 0.0
      %1573 = vmatpush1.msra.mxu0 0.0
      %1574 = vmatprep.subr.mxu0 0.0
      %1575 = vmatpush1.msra.mxu0 0.0
      %1576 = vmatprep.subr.mxu0 0.0
      %1577 = vmatpush1.msra.mxu0 0.0
      %1578 = vmatprep.subr.mxu0 0.0
      %1579 = vmatpush1.msra.mxu0 0.0
      %1580 = vmatprep.subr.mxu0 0.0
      %1581 = vmatpush1.msra.mxu0 0.0
      %1582 = vmatprep.subr.mxu0 0.0
      %1583 = vmatpush1.msra.mxu0 0.0
      %1584 = vmatprep.subr.mxu0 0.0
      %1585 = vmatpush1.msra.mxu0 0.0
      %1586 = vmatprep.subr.mxu0 0.0
      %1587 = vmatpush1.msra.mxu0 0.0
      %1588 = vmatprep.subr.mxu0 0.0
      %1589 = vmatpush1.msra.mxu0 0.0
      %1590 = vmatprep.subr.mxu0 0.0
      %1591 = vmatpush1.msra.mxu0 0.0
      %1592 = vmatprep.subr.mxu0 0.0
      %1593 = vmatpush1.msra.mxu0 0.0
      %1594 = vmatprep.subr.mxu0 0.0
      %1595 = vmatpush1.msra.mxu0 0.0
      %1596 = vmatprep.mubr.f32.mxu0 0.0
      %1597 = vmatmul.mubr.f32.gmra.mrb[0].mxu0 %v1530
      %v1598 = vpop.f32.mrb[0].mxu0
      %v1599 = vadd.f32 %v1526, %v1598
      %v1600 = vpop.f32.mrb[0].mxu0
      %1601 = vdwg.mxu0
      %s1602 = scalar_lea.vmem %s9, 8
      %v1603 = vld [vmem:[%s1602] sm:$0xff]
      %1604 = vrot.lane.b32.xlu0 %v1446, 2
      %v1605 = vpop.permute.xlu0 %1604
      %1606 = vrot.lane.b32.xlu0 %v1447, 2
      %v1607 = vpop.permute.xlu0 %1606
      %v1608 = vsel %vm592, %v1605, %v1607
      %v1611 = vsel %vm858, %v1603, 0
      %1613 = vmatprep.subr.mxu0 0.0
      %1614 = vmatpush1.msra.mxu0 %v1608
      %1615 = vmatprep.subr.mxu0 0.0
      %1616 = vmatpush1.msra.mxu0 0.0
      %1617 = vmatprep.subr.mxu0 0.0
      %1618 = vmatpush1.msra.mxu0 0.0
      %1619 = vmatprep.subr.mxu0 0.0
      %1620 = vmatpush1.msra.mxu0 0.0
      %1621 = vmatprep.subr.mxu0 0.0
      %1622 = vmatpush1.msra.mxu0 0.0
      %1623 = vmatprep.subr.mxu0 0.0
      %1624 = vmatpush1.msra.mxu0 0.0
      %1625 = vmatprep.subr.mxu0 0.0
      %1626 = vmatpush1.msra.mxu0 0.0
      %1627 = vmatprep.subr.mxu0 0.0
      %1628 = vmatpush1.msra.mxu0 0.0
      %1629 = vmatprep.subr.mxu0 0.0
      %1630 = vmatpush1.msra.mxu0 0.0
      %1631 = vmatprep.subr.mxu0 0.0
      %1632 = vmatpush1.msra.mxu0 0.0
      %1633 = vmatprep.subr.mxu0 0.0
      %1634 = vmatpush1.msra.mxu0 0.0
      %1635 = vmatprep.subr.mxu0 0.0
      %1636 = vmatpush1.msra.mxu0 0.0
      %1637 = vmatprep.subr.mxu0 0.0
      %1638 = vmatpush1.msra.mxu0 0.0
      %1639 = vmatprep.subr.mxu0 0.0
      %1640 = vmatpush1.msra.mxu0 0.0
      %1641 = vmatprep.subr.mxu0 0.0
      %1642 = vmatpush1.msra.mxu0 0.0
      %1643 = vmatprep.subr.mxu0 0.0
      %1644 = vmatpush1.msra.mxu0 0.0
      %1645 = vmatprep.subr.mxu0 0.0
      %1646 = vmatpush1.msra.mxu0 0.0
      %1647 = vmatprep.subr.mxu0 0.0
      %1648 = vmatpush1.msra.mxu0 0.0
      %1649 = vmatprep.subr.mxu0 0.0
      %1650 = vmatpush1.msra.mxu0 0.0
      %1651 = vmatprep.subr.mxu0 0.0
      %1652 = vmatpush1.msra.mxu0 0.0
      %1653 = vmatprep.subr.mxu0 0.0
      %1654 = vmatpush1.msra.mxu0 0.0
      %1655 = vmatprep.subr.mxu0 0.0
      %1656 = vmatpush1.msra.mxu0 0.0
      %1657 = vmatprep.subr.mxu0 0.0
      %1658 = vmatpush1.msra.mxu0 0.0
      %1659 = vmatprep.subr.mxu0 0.0
      %1660 = vmatpush1.msra.mxu0 0.0
      %1661 = vmatprep.subr.mxu0 0.0
      %1662 = vmatpush1.msra.mxu0 0.0
      %1663 = vmatprep.subr.mxu0 0.0
      %1664 = vmatpush1.msra.mxu0 0.0
      %1665 = vmatprep.subr.mxu0 0.0
      %1666 = vmatpush1.msra.mxu0 0.0
      %1667 = vmatprep.subr.mxu0 0.0
      %1668 = vmatpush1.msra.mxu0 0.0
      %1669 = vmatprep.subr.mxu0 0.0
      %1670 = vmatpush1.msra.mxu0 0.0
      %1671 = vmatprep.subr.mxu0 0.0
      %1672 = vmatpush1.msra.mxu0 0.0
      %1673 = vmatprep.subr.mxu0 0.0
      %1674 = vmatpush1.msra.mxu0 0.0
      %1675 = vmatprep.subr.mxu0 0.0
      %1676 = vmatpush1.msra.mxu0 0.0
      %1677 = vmatprep.mubr.f32.mxu0 0.0
      %1678 = vmatmul.mubr.f32.gmra.mrb[0].mxu0 %v1611
      %v1679 = vpop.f32.mrb[0].mxu0
      %v1680 = vadd.f32 0.0, %v1679
      %v1681 = vpop.f32.mrb[0].mxu0
      %1682 = vdwg.mxu0
      %v1683 = vadd.f32 %v1599, %v1680
      %v1684 = vld [vmem:[%s10] sm:$0xff]
      %1686 = vset.pattern.permute.xlu0 0
      %1687 = vperm.xlu0 %1686, %v1684
      %v1688 = vpop.permute.xlu0 %1687
      %v1690 = vadd.f32 %v1683, %v1688
      %vm1691 = vcmp.ge.f32.partialorder %v1690, 0.0
      %v1692 = vmul.f32 %v1690, 0.01
      %v1693 = vsel %vm1691, %v1690, %v1692
      %v1694 = vadd.f32 %v1693, %v1177
      %v1695 = vld [vmem:[#allocation4 + $0x8] sm:$0xff]
      %vm1696 = vcmask 1048544
      %1697 = vst.msk [vmem:[#allocation4] sm:$0xff] %vm1696, %v1695
      %v1698 = vld [vmem:[#allocation5 + $0x8] sm:$0xff]
      %1699 = vst.msk [vmem:[#allocation5] sm:$0xff] %vm1696, %v1698
      // Predicated region
      $region97: #{tpu_custom_call.1} parent=87 // pred_check
        %p1700 = pneg %p573
      $region98: #{tpu_custom_call.1} parent=87 // pred_check_branch
        %1702 = sbr.rel (%p1700) target = $region100
      $region99: #{tpu_custom_call.1} parent=87 // pred_region
        %vm1703 = vcmask 1048512
        %1704 = vst.msk [vmem:[#allocation6] sm:$0xff] %vm1703, 0.0
        %1705 = vst.msk [vmem:[#allocation7] sm:$0xff] %vm1703, 0.0
        %1706 = vst.msk [vmem:[#allocation7 + $0x10] sm:$0xff] %vm1703, 0.0
      $region100: #{tpu_custom_call.1} parent=87 // pred_fallthru
        _
      %1707 = vst [vmem:[#allocation6 + $0x8] sm:$0xff] %v1694
      %s1708 = scalar_lea.vmem %s11, 32
      %v1709 = vld [vmem:[%s1708] sm:$0xff]
      %v1710 = vld [vmem:[%s1708 + $0x8] sm:$0xff]
      %v1711 = vld [vmem:[%s11] sm:$0xff]
      %v1712 = vld [vmem:[%s11 + $0x8] sm:$0xff]
      %v1713 = vld [vmem:[#allocation6] sm:$0xff]
      %v1714 = vld [vmem:[#allocation6 + $0x8] sm:$0xff]
      %1717 = vrot.lane.b32.xlu0 %v1713, 8
      %v1718 = vpop.permute.xlu0 %1717
      %1719 = vrot.lane.b32.xlu0 %v1714, 8
      %v1720 = vpop.permute.xlu0 %1719
      %v1721 = vsel %vm858, %v1718, %v1720
      %v1724 = vsel %vm858, %v1711, 0
      %v1727 = vsel %vm858, %v1712, 0
      %1729 = vmatprep.subr.mxu0 0.0
      %1730 = vmatpush1.msra.mxu0 %v1721
      %1731 = vmatprep.subr.mxu0 0.0
      %1732 = vmatpush1.msra.mxu0 0.0
      %1733 = vmatprep.subr.mxu0 0.0
      %1734 = vmatpush1.msra.mxu0 0.0
      %1735 = vmatprep.subr.mxu0 0.0
      %1736 = vmatpush1.msra.mxu0 0.0
      %1737 = vmatprep.subr.mxu0 0.0
      %1738 = vmatpush1.msra.mxu0 0.0
      %1739 = vmatprep.subr.mxu0 0.0
      %1740 = vmatpush1.msra.mxu0 0.0
      %1741 = vmatprep.subr.mxu0 0.0
      %1742 = vmatpush1.msra.mxu0 0.0
      %1743 = vmatprep.subr.mxu0 0.0
      %1744 = vmatpush1.msra.mxu0 0.0
      %1745 = vmatprep.subr.mxu0 0.0
      %1746 = vmatpush1.msra.mxu0 0.0
      %1747 = vmatprep.subr.mxu0 0.0
      %1748 = vmatpush1.msra.mxu0 0.0
      %1749 = vmatprep.subr.mxu0 0.0
      %1750 = vmatpush1.msra.mxu0 0.0
      %1751 = vmatprep.subr.mxu0 0.0
      %1752 = vmatpush1.msra.mxu0 0.0
      %1753 = vmatprep.subr.mxu0 0.0
      %1754 = vmatpush1.msra.mxu0 0.0
      %1755 = vmatprep.subr.mxu0 0.0
      %1756 = vmatpush1.msra.mxu0 0.0
      %1757 = vmatprep.subr.mxu0 0.0
      %1758 = vmatpush1.msra.mxu0 0.0
      %1759 = vmatprep.subr.mxu0 0.0
      %1760 = vmatpush1.msra.mxu0 0.0
      %1761 = vmatprep.subr.mxu0 0.0
      %1762 = vmatpush1.msra.mxu0 0.0
      %1763 = vmatprep.subr.mxu0 0.0
      %1764 = vmatpush1.msra.mxu0 0.0
      %1765 = vmatprep.subr.mxu0 0.0
      %1766 = vmatpush1.msra.mxu0 0.0
      %1767 = vmatprep.subr.mxu0 0.0
      %1768 = vmatpush1.msra.mxu0 0.0
      %1769 = vmatprep.subr.mxu0 0.0
      %1770 = vmatpush1.msra.mxu0 0.0
      %1771 = vmatprep.subr.mxu0 0.0
      %1772 = vmatpush1.msra.mxu0 0.0
      %1773 = vmatprep.subr.mxu0 0.0
      %1774 = vmatpush1.msra.mxu0 0.0
      %1775 = vmatprep.subr.mxu0 0.0
      %1776 = vmatpush1.msra.mxu0 0.0
      %1777 = vmatprep.subr.mxu0 0.0
      %1778 = vmatpush1.msra.mxu0 0.0
      %1779 = vmatprep.subr.mxu0 0.0
      %1780 = vmatpush1.msra.mxu0 0.0
      %1781 = vmatprep.subr.mxu0 0.0
      %1782 = vmatpush1.msra.mxu0 0.0
      %1783 = vmatprep.subr.mxu0 0.0
      %1784 = vmatpush1.msra.mxu0 0.0
      %1785 = vmatprep.subr.mxu0 0.0
      %1786 = vmatpush1.msra.mxu0 0.0
      %1787 = vmatprep.subr.mxu0 0.0
      %1788 = vmatpush1.msra.mxu0 0.0
      %1789 = vmatprep.subr.mxu0 0.0
      %1790 = vmatpush1.msra.mxu0 0.0
      %1791 = vmatprep.subr.mxu0 0.0
      %1792 = vmatpush1.msra.mxu0 0.0
      %1793 = vmatprep.mubr.f32.mxu0 0.0
      %1794 = vmatmul.mubr.f32.gmra.mrb[0].mxu0 %v1724
      %v1795 = vpop.f32.mrb[0].mxu0
      %v1796 = vadd.f32 0.0, %v1795
      %v1797 = vpop.f32.mrb[0].mxu0
      %1798 = vmatprep.mubr.f32.mxu0 0.0
      %1799 = vmatmul.mubr.f32.gmra.mrb[0].mxu0 %v1727
      %v1800 = vpop.f32.mrb[0].mxu0
      %v1801 = vadd.f32 0.0, %v1800
      %v1802 = vpop.f32.mrb[0].mxu0
      %1803 = vdwg.mxu0
      %v1805 = vsel %vm858, %v1709, 0
      %v1808 = vsel %vm858, %v1710, 0
      %1810 = vmatprep.subr.mxu0 0.0
      %1811 = vmatpush1.msra.mxu0 %v1694
      %1812 = vmatprep.subr.mxu0 0.0
      %1813 = vmatpush1.msra.mxu0 0.0
      %1814 = vmatprep.subr.mxu0 0.0
      %1815 = vmatpush1.msra.mxu0 0.0
      %1816 = vmatprep.subr.mxu0 0.0
      %1817 = vmatpush1.msra.mxu0 0.0
      %1818 = vmatprep.subr.mxu0 0.0
      %1819 = vmatpush1.msra.mxu0 0.0
      %1820 = vmatprep.subr.mxu0 0.0
      %1821 = vmatpush1.msra.mxu0 0.0
      %1822 = vmatprep.subr.mxu0 0.0
      %1823 = vmatpush1.msra.mxu0 0.0
      %1824 = vmatprep.subr.mxu0 0.0
      %1825 = vmatpush1.msra.mxu0 0.0
      %1826 = vmatprep.subr.mxu0 0.0
      %1827 = vmatpush1.msra.mxu0 0.0
      %1828 = vmatprep.subr.mxu0 0.0
      %1829 = vmatpush1.msra.mxu0 0.0
      %1830 = vmatprep.subr.mxu0 0.0
      %1831 = vmatpush1.msra.mxu0 0.0
      %1832 = vmatprep.subr.mxu0 0.0
      %1833 = vmatpush1.msra.mxu0 0.0
      %1834 = vmatprep.subr.mxu0 0.0
      %1835 = vmatpush1.msra.mxu0 0.0
      %1836 = vmatprep.subr.mxu0 0.0
      %1837 = vmatpush1.msra.mxu0 0.0
      %1838 = vmatprep.subr.mxu0 0.0
      %1839 = vmatpush1.msra.mxu0 0.0
      %1840 = vmatprep.subr.mxu0 0.0
      %1841 = vmatpush1.msra.mxu0 0.0
      %1842 = vmatprep.subr.mxu0 0.0
      %1843 = vmatpush1.msra.mxu0 0.0
      %1844 = vmatprep.subr.mxu0 0.0
      %1845 = vmatpush1.msra.mxu0 0.0
      %1846 = vmatprep.subr.mxu0 0.0
      %1847 = vmatpush1.msra.mxu0 0.0
      %1848 = vmatprep.subr.mxu0 0.0
      %1849 = vmatpush1.msra.mxu0 0.0
      %1850 = vmatprep.subr.mxu0 0.0
      %1851 = vmatpush1.msra.mxu0 0.0
      %1852 = vmatprep.subr.mxu0 0.0
      %1853 = vmatpush1.msra.mxu0 0.0
      %1854 = vmatprep.subr.mxu0 0.0
      %1855 = vmatpush1.msra.mxu0 0.0
      %1856 = vmatprep.subr.mxu0 0.0
      %1857 = vmatpush1.msra.mxu0 0.0
      %1858 = vmatprep.subr.mxu0 0.0
      %1859 = vmatpush1.msra.mxu0 0.0
      %1860 = vmatprep.subr.mxu0 0.0
      %1861 = vmatpush1.msra.mxu0 0.0
      %1862 = vmatprep.subr.mxu0 0.0
      %1863 = vmatpush1.msra.mxu0 0.0
      %1864 = vmatprep.subr.mxu0 0.0
      %1865 = vmatpush1.msra.mxu0 0.0
      %1866 = vmatprep.subr.mxu0 0.0
      %1867 = vmatpush1.msra.mxu0 0.0
      %1868 = vmatprep.subr.mxu0 0.0
      %1869 = vmatpush1.msra.mxu0 0.0
      %1870 = vmatprep.subr.mxu0 0.0
      %1871 = vmatpush1.msra.mxu0 0.0
      %1872 = vmatprep.subr.mxu0 0.0
      %1873 = vmatpush1.msra.mxu0 0.0
      %1874 = vmatprep.mubr.f32.mxu0 0.0
      %1875 = vmatmul.mubr.f32.gmra.mrb[0].mxu0 %v1805
      %v1876 = vpop.f32.mrb[0].mxu0
      %v1877 = vadd.f32 %v1796, %v1876
      %v1878 = vpop.f32.mrb[0].mxu0
      %1879 = vmatprep.mubr.f32.mxu0 0.0
      %1880 = vmatmul.mubr.f32.gmra.mrb[0].mxu0 %v1808
      %v1881 = vpop.f32.mrb[0].mxu0
      %v1882 = vadd.f32 %v1801, %v1881
      %v1883 = vpop.f32.mrb[0].mxu0
      %1884 = vdwg.mxu0
      %s1885 = scalar_lea.vmem %s11, 16
      %v1886 = vld [vmem:[%s1885] sm:$0xff]
      %v1887 = vld [vmem:[%s1885 + $0x8] sm:$0xff]
      %1888 = vrot.lane.b32.xlu0 %v1713, 4
      %v1889 = vpop.permute.xlu0 %1888
      %1890 = vrot.lane.b32.xlu0 %v1714, 4
      %v1891 = vpop.permute.xlu0 %1890
      %v1892 = vsel %vm594, %v1889, %v1891
      %v1895 = vsel %vm858, %v1886, 0
      %v1898 = vsel %vm858, %v1887, 0
      %1900 = vmatprep.subr.mxu0 0.0
      %1901 = vmatpush1.msra.mxu0 %v1892
      %1902 = vmatprep.subr.mxu0 0.0
      %1903 = vmatpush1.msra.mxu0 0.0
      %1904 = vmatprep.subr.mxu0 0.0
      %1905 = vmatpush1.msra.mxu0 0.0
      %1906 = vmatprep.subr.mxu0 0.0
      %1907 = vmatpush1.msra.mxu0 0.0
      %1908 = vmatprep.subr.mxu0 0.0
      %1909 = vmatpush1.msra.mxu0 0.0
      %1910 = vmatprep.subr.mxu0 0.0
      %1911 = vmatpush1.msra.mxu0 0.0
      %1912 = vmatprep.subr.mxu0 0.0
      %1913 = vmatpush1.msra.mxu0 0.0
      %1914 = vmatprep.subr.mxu0 0.0
      %1915 = vmatpush1.msra.mxu0 0.0
      %1916 = vmatprep.subr.mxu0 0.0
      %1917 = vmatpush1.msra.mxu0 0.0
      %1918 = vmatprep.subr.mxu0 0.0
      %1919 = vmatpush1.msra.mxu0 0.0
      %1920 = vmatprep.subr.mxu0 0.0
      %1921 = vmatpush1.msra.mxu0 0.0
      %1922 = vmatprep.subr.mxu0 0.0
      %1923 = vmatpush1.msra.mxu0 0.0
      %1924 = vmatprep.subr.mxu0 0.0
      %1925 = vmatpush1.msra.mxu0 0.0
      %1926 = vmatprep.subr.mxu0 0.0
      %1927 = vmatpush1.msra.mxu0 0.0
      %1928 = vmatprep.subr.mxu0 0.0
      %1929 = vmatpush1.msra.mxu0 0.0
      %1930 = vmatprep.subr.mxu0 0.0
      %1931 = vmatpush1.msra.mxu0 0.0
      %1932 = vmatprep.subr.mxu0 0.0
      %1933 = vmatpush1.msra.mxu0 0.0
      %1934 = vmatprep.subr.mxu0 0.0
      %1935 = vmatpush1.msra.mxu0 0.0
      %1936 = vmatprep.subr.mxu0 0.0
      %1937 = vmatpush1.msra.mxu0 0.0
      %1938 = vmatprep.subr.mxu0 0.0
      %1939 = vmatpush1.msra.mxu0 0.0
      %1940 = vmatprep.subr.mxu0 0.0
      %1941 = vmatpush1.msra.mxu0 0.0
      %1942 = vmatprep.subr.mxu0 0.0
      %1943 = vmatpush1.msra.mxu0 0.0
      %1944 = vmatprep.subr.mxu0 0.0
      %1945 = vmatpush1.msra.mxu0 0.0
      %1946 = vmatprep.subr.mxu0 0.0
      %1947 = vmatpush1.msra.mxu0 0.0
      %1948 = vmatprep.subr.mxu0 0.0
      %1949 = vmatpush1.msra.mxu0 0.0
      %1950 = vmatprep.subr.mxu0 0.0
      %1951 = vmatpush1.msra.mxu0 0.0
      %1952 = vmatprep.subr.mxu0 0.0
      %1953 = vmatpush1.msra.mxu0 0.0
      %1954 = vmatprep.subr.mxu0 0.0
      %1955 = vmatpush1.msra.mxu0 0.0
      %1956 = vmatprep.subr.mxu0 0.0
      %1957 = vmatpush1.msra.mxu0 0.0
      %1958 = vmatprep.subr.mxu0 0.0
      %1959 = vmatpush1.msra.mxu0 0.0
      %1960 = vmatprep.subr.mxu0 0.0
      %1961 = vmatpush1.msra.mxu0 0.0
      %1962 = vmatprep.subr.mxu0 0.0
      %1963 = vmatpush1.msra.mxu0 0.0
      %1964 = vmatprep.mubr.f32.mxu0 0.0
      %1965 = vmatmul.mubr.f32.gmra.mrb[0].mxu0 %v1895
      %v1966 = vpop.f32.mrb[0].mxu0
      %v1967 = vadd.f32 0.0, %v1966
      %v1968 = vpop.f32.mrb[0].mxu0
      %1969 = vmatprep.mubr.f32.mxu0 0.0
      %1970 = vmatmul.mubr.f32.gmra.mrb[0].mxu0 %v1898
      %v1971 = vpop.f32.mrb[0].mxu0
      %v1972 = vadd.f32 0.0, %v1971
      %v1973 = vpop.f32.mrb[0].mxu0
      %1974 = vdwg.mxu0
      %v1975 = vadd.f32 %v1877, %v1967
      %v1976 = vadd.f32 %v1882, %v1972
      %v1977 = vld [vmem:[%s12] sm:$0xff]
      %v1978 = vld [vmem:[%s12 + $0x8] sm:$0xff]
      %1980 = vset.pattern.permute.xlu0 0
      %1981 = vperm.xlu0 %1980, %v1977
      %v1982 = vpop.permute.xlu0 %1981
      %1985 = vset.pattern.permute.xlu0 0
      %1986 = vperm.xlu0 %1985, %v1978
      %v1987 = vpop.permute.xlu0 %1986
      %v1989 = vadd.f32 %v1975, %v1982
      %v1990 = vadd.f32 %v1976, %v1987
      %vm1991 = vcmp.ge.f32.partialorder %v1989, 0.0
      %vm1992 = vcmp.ge.f32.partialorder %v1990, 0.0
      %v1993 = vmul.f32 %v1989, 0.01
      %v1994 = vmul.f32 %v1990, 0.01
      %v1995 = vsel %vm1991, %v1989, %v1993
      %v1996 = vsel %vm1992, %v1990, %v1994
      %1997 = vst [vmem:[#allocation7 + $0x8] sm:$0xff] %v1995
      %1998 = vst [vmem:[#allocation7 + $0x18] sm:$0xff] %v1996
      %s1999 = scalar_lea.vmem %s13, 32
      %v2000 = vld [vmem:[%s1999] sm:$0xff]
      %v2001 = vld [vmem:[%s1999 + $0x8] sm:$0xff]
      %v2002 = vld [vmem:[%s13] sm:$0xff]
      %v2003 = vld [vmem:[%s13 + $0x8] sm:$0xff]
      %v2004 = vld [vmem:[#allocation7] sm:$0xff]
      %v2005 = vld [vmem:[#allocation7 + $0x8] sm:$0xff]
      %v2006 = vld [vmem:[#allocation7 + $0x10] sm:$0xff]
      %v2007 = vld [vmem:[#allocation7 + $0x18] sm:$0xff]
      %2012 = vrot.lane.b32.xlu0 %v2004, 8
      %v2013 = vpop.permute.xlu0 %2012
      %2014 = vrot.lane.b32.xlu0 %v2005, 8
      %v2015 = vpop.permute.xlu0 %2014
      %2016 = vrot.lane.b32.xlu0 %v2006, 8
      %v2017 = vpop.permute.xlu0 %2016
      %2018 = vrot.lane.b32.xlu0 %v2007, 8
      %v2019 = vpop.permute.xlu0 %2018
      %v2020 = vsel %vm858, %v2013, %v2015
      %v2021 = vsel %vm858, %v2017, %v2019
      %vm2024 = vcmask 130048
      %v2026 = vsel %vm2024, %v2002, 0
      %v2029 = vsel %vm2024, %v2003, 0
      %2031 = vmatprep.subr.mxu0 0.0
      %2032 = vmatpush1.msra.mxu0 %v2020
      %2033 = vmatprep.subr.mxu0 0.0
      %2034 = vmatpush1.msra.mxu0 %v2021
      %2035 = vmatprep.subr.mxu0 0.0
      %2036 = vmatpush1.msra.mxu0 0.0
      %2037 = vmatprep.subr.mxu0 0.0
      %2038 = vmatpush1.msra.mxu0 0.0
      %2039 = vmatprep.subr.mxu0 0.0
      %2040 = vmatpush1.msra.mxu0 0.0
      %2041 = vmatprep.subr.mxu0 0.0
      %2042 = vmatpush1.msra.mxu0 0.0
      %2043 = vmatprep.subr.mxu0 0.0
      %2044 = vmatpush1.msra.mxu0 0.0
      %2045 = vmatprep.subr.mxu0 0.0
      %2046 = vmatpush1.msra.mxu0 0.0
      %2047 = vmatprep.subr.mxu0 0.0
      %2048 = vmatpush1.msra.mxu0 0.0
      %2049 = vmatprep.subr.mxu0 0.0
      %2050 = vmatpush1.msra.mxu0 0.0
      %2051 = vmatprep.subr.mxu0 0.0
      %2052 = vmatpush1.msra.mxu0 0.0
      %2053 = vmatprep.subr.mxu0 0.0
      %2054 = vmatpush1.msra.mxu0 0.0
      %2055 = vmatprep.subr.mxu0 0.0
      %2056 = vmatpush1.msra.mxu0 0.0
      %2057 = vmatprep.subr.mxu0 0.0
      %2058 = vmatpush1.msra.mxu0 0.0
      %2059 = vmatprep.subr.mxu0 0.0
      %2060 = vmatpush1.msra.mxu0 0.0
      %2061 = vmatprep.subr.mxu0 0.0
      %2062 = vmatpush1.msra.mxu0 0.0
      %2063 = vmatprep.subr.mxu0 0.0
      %2064 = vmatpush1.msra.mxu0 0.0
      %2065 = vmatprep.subr.mxu0 0.0
      %2066 = vmatpush1.msra.mxu0 0.0
      %2067 = vmatprep.subr.mxu0 0.0
      %2068 = vmatpush1.msra.mxu0 0.0
      %2069 = vmatprep.subr.mxu0 0.0
      %2070 = vmatpush1.msra.mxu0 0.0
      %2071 = vmatprep.subr.mxu0 0.0
      %2072 = vmatpush1.msra.mxu0 0.0
      %2073 = vmatprep.subr.mxu0 0.0
      %2074 = vmatpush1.msra.mxu0 0.0
      %2075 = vmatprep.subr.mxu0 0.0
      %2076 = vmatpush1.msra.mxu0 0.0
      %2077 = vmatprep.subr.mxu0 0.0
      %2078 = vmatpush1.msra.mxu0 0.0
      %2079 = vmatprep.subr.mxu0 0.0
      %2080 = vmatpush1.msra.mxu0 0.0
      %2081 = vmatprep.subr.mxu0 0.0
      %2082 = vmatpush1.msra.mxu0 0.0
      %2083 = vmatprep.subr.mxu0 0.0
      %2084 = vmatpush1.msra.mxu0 0.0
      %2085 = vmatprep.subr.mxu0 0.0
      %2086 = vmatpush1.msra.mxu0 0.0
      %2087 = vmatprep.subr.mxu0 0.0
      %2088 = vmatpush1.msra.mxu0 0.0
      %2089 = vmatprep.subr.mxu0 0.0
      %2090 = vmatpush1.msra.mxu0 0.0
      %2091 = vmatprep.subr.mxu0 0.0
      %2092 = vmatpush1.msra.mxu0 0.0
      %2093 = vmatprep.subr.mxu0 0.0
      %2094 = vmatpush1.msra.mxu0 0.0
      %2095 = vmatprep.mubr.f32.mxu0 0.0
      %2096 = vmatmul.mubr.f32.gmra.mrb[0].mxu0 %v2026
      %v2097 = vpop.f32.mrb[0].mxu0
      %v2098 = vadd.f32 0.0, %v2097
      %v2099 = vpop.f32.mrb[0].mxu0
      %2100 = vmatprep.mubr.f32.mxu0 0.0
      %2101 = vmatmul.mubr.f32.gmra.mrb[0].mxu0 %v2029
      %v2102 = vpop.f32.mrb[0].mxu0
      %v2103 = vadd.f32 0.0, %v2102
      %v2104 = vpop.f32.mrb[0].mxu0
      %2105 = vdwg.mxu0
      %v2107 = vsel %vm2024, %v2000, 0
      %v2110 = vsel %vm2024, %v2001, 0
      %2112 = vmatprep.subr.mxu0 0.0
      %2113 = vmatpush1.msra.mxu0 %v1995
      %2114 = vmatprep.subr.mxu0 0.0
      %2115 = vmatpush1.msra.mxu0 %v1996
      %2116 = vmatprep.subr.mxu0 0.0
      %2117 = vmatpush1.msra.mxu0 0.0
      %2118 = vmatprep.subr.mxu0 0.0
      %2119 = vmatpush1.msra.mxu0 0.0
      %2120 = vmatprep.subr.mxu0 0.0
      %2121 = vmatpush1.msra.mxu0 0.0
      %2122 = vmatprep.subr.mxu0 0.0
      %2123 = vmatpush1.msra.mxu0 0.0
      %2124 = vmatprep.subr.mxu0 0.0
      %2125 = vmatpush1.msra.mxu0 0.0
      %2126 = vmatprep.subr.mxu0 0.0
      %2127 = vmatpush1.msra.mxu0 0.0
      %2128 = vmatprep.subr.mxu0 0.0
      %2129 = vmatpush1.msra.mxu0 0.0
      %2130 = vmatprep.subr.mxu0 0.0
      %2131 = vmatpush1.msra.mxu0 0.0
      %2132 = vmatprep.subr.mxu0 0.0
      %2133 = vmatpush1.msra.mxu0 0.0
      %2134 = vmatprep.subr.mxu0 0.0
      %2135 = vmatpush1.msra.mxu0 0.0
      %2136 = vmatprep.subr.mxu0 0.0
      %2137 = vmatpush1.msra.mxu0 0.0
      %2138 = vmatprep.subr.mxu0 0.0
      %2139 = vmatpush1.msra.mxu0 0.0
      %2140 = vmatprep.subr.mxu0 0.0
      %2141 = vmatpush1.msra.mxu0 0.0
      %2142 = vmatprep.subr.mxu0 0.0
      %2143 = vmatpush1.msra.mxu0 0.0
      %2144 = vmatprep.subr.mxu0 0.0
      %2145 = vmatpush1.msra.mxu0 0.0
      %2146 = vmatprep.subr.mxu0 0.0
      %2147 = vmatpush1.msra.mxu0 0.0
      %2148 = vmatprep.subr.mxu0 0.0
      %2149 = vmatpush1.msra.mxu0 0.0
      %2150 = vmatprep.subr.mxu0 0.0
      %2151 = vmatpush1.msra.mxu0 0.0
      %2152 = vmatprep.subr.mxu0 0.0
      %2153 = vmatpush1.msra.mxu0 0.0
      %2154 = vmatprep.subr.mxu0 0.0
      %2155 = vmatpush1.msra.mxu0 0.0
      %2156 = vmatprep.subr.mxu0 0.0
      %2157 = vmatpush1.msra.mxu0 0.0
      %2158 = vmatprep.subr.mxu0 0.0
      %2159 = vmatpush1.msra.mxu0 0.0
      %2160 = vmatprep.subr.mxu0 0.0
      %2161 = vmatpush1.msra.mxu0 0.0
      %2162 = vmatprep.subr.mxu0 0.0
      %2163 = vmatpush1.msra.mxu0 0.0
      %2164 = vmatprep.subr.mxu0 0.0
      %2165 = vmatpush1.msra.mxu0 0.0
      %2166 = vmatprep.subr.mxu0 0.0
      %2167 = vmatpush1.msra.mxu0 0.0
      %2168 = vmatprep.subr.mxu0 0.0
      %2169 = vmatpush1.msra.mxu0 0.0
      %2170 = vmatprep.subr.mxu0 0.0
      %2171 = vmatpush1.msra.mxu0 0.0
      %2172 = vmatprep.subr.mxu0 0.0
      %2173 = vmatpush1.msra.mxu0 0.0
      %2174 = vmatprep.subr.mxu0 0.0
      %2175 = vmatpush1.msra.mxu0 0.0
      %2176 = vmatprep.mubr.f32.mxu0 0.0
      %2177 = vmatmul.mubr.f32.gmra.mrb[0].mxu0 %v2107
      %v2178 = vpop.f32.mrb[0].mxu0
      %v2179 = vadd.f32 %v2098, %v2178
      %v2180 = vpop.f32.mrb[0].mxu0
      %2181 = vmatprep.mubr.f32.mxu0 0.0
      %2182 = vmatmul.mubr.f32.gmra.mrb[0].mxu0 %v2110
      %v2183 = vpop.f32.mrb[0].mxu0
      %v2184 = vadd.f32 %v2103, %v2183
      %v2185 = vpop.f32.mrb[0].mxu0
      %2186 = vdwg.mxu0
      %s2187 = scalar_lea.vmem %s13, 16
      %v2188 = vld [vmem:[%s2187] sm:$0xff]
      %v2189 = vld [vmem:[%s2187 + $0x8] sm:$0xff]
      %2190 = vrot.lane.b32.xlu0 %v2004, 4
      %v2191 = vpop.permute.xlu0 %2190
      %2192 = vrot.lane.b32.xlu0 %v2005, 4
      %v2193 = vpop.permute.xlu0 %2192
      %2194 = vrot.lane.b32.xlu0 %v2006, 4
      %v2195 = vpop.permute.xlu0 %2194
      %2196 = vrot.lane.b32.xlu0 %v2007, 4
      %v2197 = vpop.permute.xlu0 %2196
      %v2198 = vsel %vm594, %v2191, %v2193
      %v2199 = vsel %vm594, %v2195, %v2197
      %v2203 = vsel %vm2024, %v2188, 0
      %v2206 = vsel %vm2024, %v2189, 0
      %2208 = vmatprep.subr.mxu0 0.0
      %2209 = vmatpush1.msra.mxu0 %v2198
      %2210 = vmatprep.subr.mxu0 0.0
      %2211 = vmatpush1.msra.mxu0 %v2199
      %2212 = vmatprep.subr.mxu0 0.0
      %2213 = vmatpush1.msra.mxu0 0.0
      %2214 = vmatprep.subr.mxu0 0.0
      %2215 = vmatpush1.msra.mxu0 0.0
      %2216 = vmatprep.subr.mxu0 0.0
      %2217 = vmatpush1.msra.mxu0 0.0
      %2218 = vmatprep.subr.mxu0 0.0
      %2219 = vmatpush1.msra.mxu0 0.0
      %2220 = vmatprep.subr.mxu0 0.0
      %2221 = vmatpush1.msra.mxu0 0.0
      %2222 = vmatprep.subr.mxu0 0.0
      %2223 = vmatpush1.msra.mxu0 0.0
      %2224 = vmatprep.subr.mxu0 0.0
      %2225 = vmatpush1.msra.mxu0 0.0
      %2226 = vmatprep.subr.mxu0 0.0
      %2227 = vmatpush1.msra.mxu0 0.0
      %2228 = vmatprep.subr.mxu0 0.0
      %2229 = vmatpush1.msra.mxu0 0.0
      %2230 = vmatprep.subr.mxu0 0.0
      %2231 = vmatpush1.msra.mxu0 0.0
      %2232 = vmatprep.subr.mxu0 0.0
      %2233 = vmatpush1.msra.mxu0 0.0
      %2234 = vmatprep.subr.mxu0 0.0
      %2235 = vmatpush1.msra.mxu0 0.0
      %2236 = vmatprep.subr.mxu0 0.0
      %2237 = vmatpush1.msra.mxu0 0.0
      %2238 = vmatprep.subr.mxu0 0.0
      %2239 = vmatpush1.msra.mxu0 0.0
      %2240 = vmatprep.subr.mxu0 0.0
      %2241 = vmatpush1.msra.mxu0 0.0
      %2242 = vmatprep.subr.mxu0 0.0
      %2243 = vmatpush1.msra.mxu0 0.0
      %2244 = vmatprep.subr.mxu0 0.0
      %2245 = vmatpush1.msra.mxu0 0.0
      %2246 = vmatprep.subr.mxu0 0.0
      %2247 = vmatpush1.msra.mxu0 0.0
      %2248 = vmatprep.subr.mxu0 0.0
      %2249 = vmatpush1.msra.mxu0 0.0
      %2250 = vmatprep.subr.mxu0 0.0
      %2251 = vmatpush1.msra.mxu0 0.0
      %2252 = vmatprep.subr.mxu0 0.0
      %2253 = vmatpush1.msra.mxu0 0.0
      %2254 = vmatprep.subr.mxu0 0.0
      %2255 = vmatpush1.msra.mxu0 0.0
      %2256 = vmatprep.subr.mxu0 0.0
      %2257 = vmatpush1.msra.mxu0 0.0
      %2258 = vmatprep.subr.mxu0 0.0
      %2259 = vmatpush1.msra.mxu0 0.0
      %2260 = vmatprep.subr.mxu0 0.0
      %2261 = vmatpush1.msra.mxu0 0.0
      %2262 = vmatprep.subr.mxu0 0.0
      %2263 = vmatpush1.msra.mxu0 0.0
      %2264 = vmatprep.subr.mxu0 0.0
      %2265 = vmatpush1.msra.mxu0 0.0
      %2266 = vmatprep.subr.mxu0 0.0
      %2267 = vmatpush1.msra.mxu0 0.0
      %2268 = vmatprep.subr.mxu0 0.0
      %2269 = vmatpush1.msra.mxu0 0.0
      %2270 = vmatprep.subr.mxu0 0.0
      %2271 = vmatpush1.msra.mxu0 0.0
      %2272 = vmatprep.mubr.f32.mxu0 0.0
      %2273 = vmatmul.mubr.f32.gmra.mrb[0].mxu0 %v2203
      %v2274 = vpop.f32.mrb[0].mxu0
      %v2275 = vadd.f32 0.0, %v2274
      %v2276 = vpop.f32.mrb[0].mxu0
      %2277 = vmatprep.mubr.f32.mxu0 0.0
      %2278 = vmatmul.mubr.f32.gmra.mrb[0].mxu0 %v2206
      %v2279 = vpop.f32.mrb[0].mxu0
      %v2280 = vadd.f32 0.0, %v2279
      %v2281 = vpop.f32.mrb[0].mxu0
      %2282 = vdwg.mxu0
      %v2283 = vadd.f32 %v2179, %v2275
      %v2284 = vadd.f32 %v2184, %v2280
      %v2285 = vld [vmem:[%s14] sm:$0xff]
      %v2286 = vld [vmem:[%s14 + $0x8] sm:$0xff]
      %2288 = vset.pattern.permute.xlu0 0
      %2289 = vperm.xlu0 %2288, %v2285
      %v2290 = vpop.permute.xlu0 %2289
      %2293 = vset.pattern.permute.xlu0 0
      %2294 = vperm.xlu0 %2293, %v2286
      %v2295 = vpop.permute.xlu0 %2294
      %v2297 = vadd.f32 %v2283, %v2290
      %v2298 = vadd.f32 %v2284, %v2295
      %vm2299 = vcmp.ge.f32.partialorder %v2297, 0.0
      %vm2300 = vcmp.ge.f32.partialorder %v2298, 0.0
      %v2301 = vmul.f32 %v2297, 0.01
      %v2302 = vmul.f32 %v2298, 0.01
      %v2303 = vsel %vm2299, %v2297, %v2301
      %v2304 = vsel %vm2300, %v2298, %v2302
      %v2305 = vld [vmem:[%s15] sm:$0xff]
      %v2306 = vld [vmem:[%s15 + $0x8] sm:$0xff]
      %v2307 = vld [vmem:[%s16] sm:$0xff]
      %v2308 = vld [vmem:[%s16 + $0x8] sm:$0xff]
      %2310 = vset.pattern.permute.xlu0 0
      %2311 = vperm.xlu0 %2310, %v2307
      %v2312 = vpop.permute.xlu0 %2311
      %2315 = vset.pattern.permute.xlu0 0
      %2316 = vperm.xlu0 %2315, %v2308
      %v2317 = vpop.permute.xlu0 %2316
      %v2320 = vsel %vm858, %v2305, 0
      %v2323 = vsel %vm858, %v2306, 0
      %2325 = vmatprep.subr.mxu0 0.0
      %2326 = vmatpush1.msra.mxu0 %v1694
      %2327 = vmatprep.subr.mxu0 0.0
      %2328 = vmatpush1.msra.mxu0 0.0
      %2329 = vmatprep.subr.mxu0 0.0
      %2330 = vmatpush1.msra.mxu0 0.0
      %2331 = vmatprep.subr.mxu0 0.0
      %2332 = vmatpush1.msra.mxu0 0.0
      %2333 = vmatprep.subr.mxu0 0.0
      %2334 = vmatpush1.msra.mxu0 0.0
      %2335 = vmatprep.subr.mxu0 0.0
      %2336 = vmatpush1.msra.mxu0 0.0
      %2337 = vmatprep.subr.mxu0 0.0
      %2338 = vmatpush1.msra.mxu0 0.0
      %2339 = vmatprep.subr.mxu0 0.0
      %2340 = vmatpush1.msra.mxu0 0.0
      %2341 = vmatprep.subr.mxu0 0.0
      %2342 = vmatpush1.msra.mxu0 0.0
      %2343 = vmatprep.subr.mxu0 0.0
      %2344 = vmatpush1.msra.mxu0 0.0
      %2345 = vmatprep.subr.mxu0 0.0
      %2346 = vmatpush1.msra.mxu0 0.0
      %2347 = vmatprep.subr.mxu0 0.0
      %2348 = vmatpush1.msra.mxu0 0.0
      %2349 = vmatprep.subr.mxu0 0.0
      %2350 = vmatpush1.msra.mxu0 0.0
      %2351 = vmatprep.subr.mxu0 0.0
      %2352 = vmatpush1.msra.mxu0 0.0
      %2353 = vmatprep.subr.mxu0 0.0
      %2354 = vmatpush1.msra.mxu0 0.0
      %2355 = vmatprep.subr.mxu0 0.0
      %2356 = vmatpush1.msra.mxu0 0.0
      %2357 = vmatprep.subr.mxu0 0.0
      %2358 = vmatpush1.msra.mxu0 0.0
      %2359 = vmatprep.subr.mxu0 0.0
      %2360 = vmatpush1.msra.mxu0 0.0
      %2361 = vmatprep.subr.mxu0 0.0
      %2362 = vmatpush1.msra.mxu0 0.0
      %2363 = vmatprep.subr.mxu0 0.0
      %2364 = vmatpush1.msra.mxu0 0.0
      %2365 = vmatprep.subr.mxu0 0.0
      %2366 = vmatpush1.msra.mxu0 0.0
      %2367 = vmatprep.subr.mxu0 0.0
      %2368 = vmatpush1.msra.mxu0 0.0
      %2369 = vmatprep.subr.mxu0 0.0
      %2370 = vmatpush1.msra.mxu0 0.0
      %2371 = vmatprep.subr.mxu0 0.0
      %2372 = vmatpush1.msra.mxu0 0.0
      %2373 = vmatprep.subr.mxu0 0.0
      %2374 = vmatpush1.msra.mxu0 0.0
      %2375 = vmatprep.subr.mxu0 0.0
      %2376 = vmatpush1.msra.mxu0 0.0
      %2377 = vmatprep.subr.mxu0 0.0
      %2378 = vmatpush1.msra.mxu0 0.0
      %2379 = vmatprep.subr.mxu0 0.0
      %2380 = vmatpush1.msra.mxu0 0.0
      %2381 = vmatprep.subr.mxu0 0.0
      %2382 = vmatpush1.msra.mxu0 0.0
      %2383 = vmatprep.subr.mxu0 0.0
      %2384 = vmatpush1.msra.mxu0 0.0
      %2385 = vmatprep.subr.mxu0 0.0
      %2386 = vmatpush1.msra.mxu0 0.0
      %2387 = vmatprep.subr.mxu0 0.0
      %2388 = vmatpush1.msra.mxu0 0.0
      %2389 = vmatprep.mubr.f32.mxu0 0.0
      %2390 = vmatmul.mubr.f32.gmra.mrb[0].mxu0 %v2320
      %v2391 = vpop.f32.mrb[0].mxu0
      %v2392 = vadd.f32 %v2312, %v2391
      %v2393 = vpop.f32.mrb[0].mxu0
      %2394 = vmatprep.mubr.f32.mxu0 0.0
      %2395 = vmatmul.mubr.f32.gmra.mrb[0].mxu0 %v2323
      %v2396 = vpop.f32.mrb[0].mxu0
      %v2397 = vadd.f32 %v2317, %v2396
      %v2398 = vpop.f32.mrb[0].mxu0
      %2399 = vdwg.mxu0
      %v2400 = vadd.f32 %v2303, %v2392
      %v2401 = vadd.f32 %v2304, %v2397
      %v2402 = vld [vmem:[#allocation6 + $0x8] sm:$0xff]
      %vm2403 = vcmask 1048512
      %2404 = vst.msk [vmem:[#allocation6] sm:$0xff] %vm2403, %v2402
      %v2405 = vld [vmem:[#allocation7 + $0x8] sm:$0xff]
      %v2406 = vld [vmem:[#allocation7 + $0x18] sm:$0xff]
      %2407 = vst.msk [vmem:[#allocation7] sm:$0xff] %vm2403, %v2405
      %2408 = vst.msk [vmem:[#allocation7 + $0x10] sm:$0xff] %vm2403, %v2406
      %v2409 = vlaneseq
      %v2410 = vand.u32 %v2409, 127
      %s2411 = smul.u32 %s33, 128
      %s2412 = ssub.s32 256, %s2411
      %v2413 = vstv %s2412
      %vm2414 = vcmp.lt.s32.totalorder %v2410, %v2413
      %v2415 = vsel %vm2414, %v2400, -inf
      %v2416 = vsel %vm2414, %v2401, -inf
      %2417 = vmax.xlane.f32.xlu0 %v2415
      %v2418 = vpop.xlane.xlu0 %2417
      %2419 = vmax.xlane.f32.xlu0 %v2416
      %v2420 = vpop.xlane.xlu0 %2419
      // Predicated region
      $region101: #{tpu_custom_call.1} parent=87 // pred_check
        %p2421 = pneg %p573
      $region102: #{tpu_custom_call.1} parent=87 // pred_check_branch
        %2423 = sbr.rel (%p2421) target = $region104
      $region103: #{tpu_custom_call.1} parent=87 // pred_region
        %2424 = vst.msk [vmem:[%s571] sm:$0xff] %vm756, %v2418
        %2425 = vst.msk [vmem:[%s571 + $0x8] sm:$0xff] %vm756, %v2420
      $region104: #{tpu_custom_call.1} parent=87 // pred_fallthru
        _
      %p2426 = scmp.ne.s32.totalorder %s33, 0
      // Predicated region
      $region105: #{tpu_custom_call.1} parent=87 // pred_check
        %p2427 = pneg %p2426
      $region106: #{tpu_custom_call.1} parent=87 // pred_check_branch
        %2429 = sbr.rel (%p2427) target = $region108
      $region107: #{tpu_custom_call.1} parent=87 // pred_region
        %v2430 = vld [vmem:[%s571] sm:$0xff]
        %v2431 = vld [vmem:[%s571 + $0x8] sm:$0xff]
        %v2432 = vmax.f32 %v2430, %v2418
        %v2433 = vmax.f32 %v2431, %v2420
        %2434 = vst.msk [vmem:[%s571] sm:$0xff] %vm756, %v2432
        %2435 = vst.msk [vmem:[%s571 + $0x8] sm:$0xff] %vm756, %v2433
      $region108: #{tpu_custom_call.1} parent=87 // pred_fallthru
        _
      %p2436 = scmp.lt.s32.totalorder %s32, 1
      %s2437 = scalar_select %p2436, %s32, 1
      %s2438 = smul.addr %s2437, 2
      %s2439 = smul.addr %s2438, 8
      %s2440 = scalar_lea.vmem %s17, %s2439
      // Predicated region
      $region109: #{tpu_custom_call.1} parent=87 // pred_check
        %p2441 = pneg %p422
      $region110: #{tpu_custom_call.1} parent=87 // pred_check_branch
        %2443 = sbr.rel (%p2441) target = $region112
      $region111: #{tpu_custom_call.1} parent=87 // pred_region
        _
      $region112: #{tpu_custom_call.1} parent=87 // pred_fallthru
        _
    $region88: #{tpu_custom_call.1} parent=5 // pred_fallthru
      _
    %p2444 = scmp.le.s32.totalorder 2, %s23
    // Predicated region
    $region113: #{tpu_custom_call.1} parent=5 // pred_check
      %p2445 = pneg %p2444
    $region114: #{tpu_custom_call.1} parent=5 // pred_check_branch
      %2447 = sbr.rel (%p2445) target = $region116
    $region115: #{tpu_custom_call.1} parent=5 // pred_region
      %s2448 = ssub.s32 %s23, 2
      // Predicated region
      $region117: #{tpu_custom_call.1} parent=115 // pred_check
        %p2449 = pneg %p428
      $region118: #{tpu_custom_call.1} parent=115 // pred_check_branch
        %2451 = sbr.rel (%p2449) target = $region120
      $region119: #{tpu_custom_call.1} parent=115 // pred_region
        %p2452 = scmp.lt.s32.totalorder %s34, 1
        %s2453 = scalar_select %p2452, %s34, 1
        %s2454 = smul.addr %s2453, 2
        %s2455 = smul.addr %s2454, 8
        %s2456 = scalar_lea.vmem %s17, %s2455
      $region120: #{tpu_custom_call.1} parent=115 // pred_fallthru
        _
    $region116: #{tpu_custom_call.1} parent=5 // pred_fallthru
      _
  $region6: #{tpu_custom_call.1} parent=0 // loop_footer
    %s27 = sadd.s32 1, %s23
  $region7: #{tpu_custom_call.1} parent=0 // loop_footer_branch
    %22 = sbr.rel target = $region3
  $region8: #{tpu_custom_call.1} parent=0 // loop_exit
    _

</llo_original>
